<compile_context>
chip_gen: v5e
topology: v5e:2x2
jax: 0.10.0
libtpu: 0.0.40
codegen_flags: <defaults>
</compile_context>

<pallas_src>
import numpy as np

import jax
import jax.numpy as jnp
from jax.experimental import pallas as pl
from jax.experimental.pallas import tpu as pltpu


# Order of the 9 (row-shift, col-shift) neighbourhoods used by the final conv.
_SHIFTS = tuple((dr, dc) for dr in (-1, 0, 1) for dc in (-1, 0, 1))


# ----------------------------------------------------------------------------
# One-time parameter preparation (layout transforms done once, outside kernel)
# ----------------------------------------------------------------------------
def _build_interleave(h, w):
    """0/1 matrices scattering phase outputs (input grid h x w) to row-major
    output order.  P[0] maps input (r, c) -> output row 2r*2w + 2c,
    P[1] maps to 2r*2w + 2c + 1."""
    n = h * w
    w2 = 2 * w
    nout = 4 * n
    p = np.zeros((2, nout, n), np.float32)
    for r in range(h):
        for c in range(w):
            m = r * w + c
            q = 2 * r * w2 + 2 * c
            p[0, q, m] = 1.0
            p[1, q + 1, m] = 1.0
    return jnp.asarray(p)


def _build_phase_weight(wt):
    """Phase-stacked weight for ConvTranspose2d(k=3, s=2, p=1, output_padding=1).

    wt: PyTorch ConvTranspose2d weight (Cin, Cout, 3, 3).
    Returns (4*Cin, 4*Cout):
      K blocks (rows)   : [x(r,c) | x(r,c+1) | x(r+1,c) | x(r+1,c+1)]
      lane blocks (cols): [phase(0,0) | phase(1,0) | phase(0,1) | phase(1,1)]
    where phase (a, b) produces output pixel (2r+a, 2c+b)."""
    cin, cout = wt.shape[0], wt.shape[1]
    zero = jnp.zeros((cin, cout), jnp.float32)

    def phase_block(a, b):
        kh = 1 if a == 0 else 2
        kw = 1 if b == 0 else 2
        r0 = wt[:, :, kh, kw]                                    # tap (r,   c)
        r1 = wt[:, :, kh, 0] if b == 1 else zero                 # tap (r,   c+1)
        r2 = wt[:, :, 0, kw] if a == 1 else zero                 # tap (r+1, c)
        r3 = wt[:, :, 0, 0] if (a == 1 and b == 1) else zero     # tap (r+1, c+1)
        return jnp.concatenate([r0, r1, r2, r3], axis=0)         # (4*Cin, Cout)

    return jnp.concatenate(
        [phase_block(0, 0), phase_block(1, 0), phase_block(0, 1), phase_block(1, 1)],
        axis=1)


def _build_final_conv_weight(conv_w):
    """Final 3x3 conv (32->1) expressed in the phase-major layout of layer 3.

    Layer 3's output y(2r+a, 2c+b, ch) lives at row (a + 2b)*32 + ch, lane
    16r + c of a (128, 256) array.  For output pixel (2r+alpha, 2c+beta) the
    9 conv taps decompose into 9 lane shifts (dr, dc) of that array; this
    builds, per shift, the (out_phase, phase*channel) coefficient matrix.
    Rows 4..7 are zero padding (keeps the matmul LHS sublane-tile aligned)."""
    wc = np.asarray(conv_w)[0]                       # (32, 3, 3)  (ch, kh, kw)
    # u = alpha + kh - 1  ->  (row shift dr, source phase a)
    table = {-1: (-1, 1), 0: (0, 0), 1: (0, 1), 2: (1, 0)}
    wfin = np.zeros((len(_SHIFTS), 8, 128), np.float32)
    for si, (dr, dc) in enumerate(_SHIFTS):
        for alpha in (0, 1):
            for beta in (0, 1):
                prow = 2 * alpha + beta
                for kh in range(3):
                    dru, a = table[alpha + kh - 1]
                    if dru != dr:
                        continue
                    for kw in range(3):
                        dcv, b = table[beta + kw - 1]
                        if dcv != dc:
                            continue
                        c0 = (a + 2 * b) * 32
                        wfin[si, prow, c0:c0 + 32] += wc[:, kh, kw]
    return jnp.asarray(wfin)


def prepare_params(p):
    fc1w = p["fc1_w"]  # (2048, 2) torch Linear layout (out, in); NCHW-flat columns
    fc1w_k = fc1w.T.reshape(2, 128, 4, 4).transpose(0, 2, 3, 1).reshape(2, 16, 128)
    fc1b_k = p["fc1_b"].reshape(128, 4, 4).transpose(1, 2, 0).reshape(16, 128)
    return {
        "fc1w": fc1w_k,
        "fc1b": fc1b_k,
        "wph1": _build_phase_weight(p["tp1_w"]).astype(jnp.bfloat16),  # (512, 512)
        "b1": p["tp1_b"].reshape(1, 128),
        "p1": _build_interleave(4, 4),                                  # (2, 64, 16)
        "wph2": _build_phase_weight(p["tp2_w"]).astype(jnp.bfloat16),  # (512, 256)
        "b2": p["tp2_b"].reshape(1, 64),
        "p2": _build_interleave(8, 8),                                  # (2, 256, 64)
        "wph3": _build_phase_weight(p["tp3_w"]).astype(jnp.bfloat16),  # (256, 128)
        "b3": jnp.tile(p["tp3_b"].reshape(1, 32), (1, 4)),              # (1, 128)
        "wfin": _build_final_conv_weight(p["conv1_w"]),                 # (9, 8, 128)
        "cb": p["conv1_b"].reshape(1, 1),
    }


# ----------------------------------------------------------------------------
# Fused decoder kernel
# ----------------------------------------------------------------------------
def _decoder_kernel(z_ref, fc1w, fc1b, wph1, b1, p1, wph2, b2, p2,
                    wph3, b3, wfin, cb, o_ref, a1, a2, a3):
    f32 = jnp.float32
    bf16 = jnp.bfloat16

    # Halo pad rows must be zero for the r+1 tap reads below.  Re-zero every
    # grid step (cheap, and required under megacore "parallel" sharding).
    a1[16:24, :] = jnp.zeros((8, 128), f32)
    a2[64:80, :] = jnp.zeros((16, 128), f32)
    a3[256:280, :] = jnp.zeros((24, 64), f32)

    # ---- fc1: 2 -> 2048 as two VPU AXPYs (weight pre-permuted to NHWC) -----
    b_idx = pl.program_id(0)
    z0 = z_ref[b_idx, 0]
    z1 = z_ref[b_idx, 1]
    a1[0:16, :] = z0 * fc1w[0] + z1 * fc1w[1] + fc1b[...]

    # ---- ConvTranspose2d(s=2) + ReLU via sub-pixel phase decomposition -----
    def tconv(in_ref, h, w, cout, wph_ref, p_ref, b_ref, out_ref):
        """Flat-NHWC in (rows [0,n) data, [n,n+w+1) zero pad) -> flat-NHWC out.
        Requires w to be a power of two (lane mask uses & (w-1))."""
        n = h * w
        w2 = 2 * w
        nout = 4 * n
        col = jax.lax.broadcasted_iota(jnp.int32, (n, 1), 0) & (w - 1)
        mask_w = (col != (w - 1)).astype(f32)
        x00 = in_ref[0:n, :]
        xw = in_ref[1:n + 1, :] * mask_w
        xh = in_ref[w:w + n, :]
        xhw = in_ref[w + 1:w + 1 + n, :] * mask_w
        x4 = jnp.concatenate([x00, xw, xh, xhw], axis=1).astype(bf16)  # (n, 4Cin)
        ph = jnp.dot(x4, wph_ref[...], preferred_element_type=f32)     # (n, 4Cout)

        # Interleave phases back to row-major flat NHWC.  even = even output
        # rows already at their final flat positions; odd = odd output rows,
        # written with a +w2 row offset.  Bias + ReLU folded into the stores.
        ya = jnp.dot(p_ref[0], ph[:, 0:2 * cout], preferred_element_type=f32)
        yb = jnp.dot(p_ref[1], ph[:, 2 * cout:4 * cout],
                     preferred_element_type=f32)
        even = ya[:, 0:cout] + yb[:, 0:cout]
        odd = ya[:, cout:2 * cout] + yb[:, cout:2 * cout]
        bias = b_ref[...]
        out_ref[0:w2, :] = jnp.maximum(even[0:w2, :] + bias, 0.0)
        out_ref[w2:nout, :] = jnp.maximum(
            even[w2:nout, :] + odd[0:nout - w2, :] + bias, 0.0)

    tconv(a1, 4, 4, 128, wph1, p1, b1, a2)     # (4,4,128)  -> (8,8,128)
    tconv(a2, 8, 8, 64, wph2, p2, b2, a3)      # (8,8,128)  -> (16,16,64)

    # ---- layer 3 (64 -> 32, 16x16 -> 32x32): phase matmul only --------------
    col = jax.lax.broadcasted_iota(jnp.int32, (256, 1), 0) & 15
    mask_w = (col != 15).astype(f32)
    x00 = a3[0:256, :]
    xw = a3[1:257, :] * mask_w
    xh = a3[16:272, :]
    xhw = a3[17:273, :] * mask_w
    x4 = jnp.concatenate([x00, xw, xh, xhw], axis=1).astype(bf16)   # (256, 256)
    ph = jnp.dot(x4, wph3[...], preferred_element_type=f32)         # (256, 128)
    y3 = jnp.maximum(ph + b3[...], 0.0)
    yt = y3.T                                                       # (128, 256)
    # yt[(a+2b)*32+ch, 16r+c] = relu-activation of pixel (2r+a, 2c+b, ch)

    # ---- final 3x3 conv (32 -> 1) + sigmoid, evaluated in phase space -------
    lane = jax.lax.broadcasted_iota(jnp.int32, (1, 256), 1)
    c16 = lane & 15
    mc_hi = (c16 != 15).astype(f32)     # reading column c+1 invalid at c==15
    mc_lo = (c16 != 0).astype(f32)      # reading column c-1 invalid at c==0
    mr_hi = (lane < 240).astype(f32)    # reading row r+1 invalid at r==15
    mr_lo = (lane >= 16).astype(f32)    # reading row r-1 invalid at r==0

    acc = jnp.zeros((8, 256), f32)
    for si, (dr, dc) in enumerate(_SHIFTS):
        d = 16 * dr + dc                # lane shift for position (r+dr, c+dc)
        if d == 0:
            ys = yt
        else:
            dm = d % 256                # wrapped lanes are all masked below
            ys = jnp.concatenate([yt[:, dm:], yt[:, :dm]], axis=1)
        if dc == 1:
            ys = ys * mc_hi
        elif dc == -1:
            ys = ys * mc_lo
        if dr == 1:
            ys = ys * mr_hi
        elif dr == -1:
            ys = ys * mr_lo
        acc = acc + jnp.dot(wfin[si], ys, preferred_element_type=f32)

    # Lane-dense output: rows = output phase (2*alpha + beta), lanes = 16r + c.
    o_ref[0] = jax.nn.sigmoid(acc[0:4, :] + cb[...])


def decoder_forward(prep, z):
    B = z.shape[0]
    out = pl.pallas_call(
        _decoder_kernel,
        out_shape=jax.ShapeDtypeStruct((B, 4, 256), jnp.float32),
        grid=(B,),
        in_specs=[
            pl.BlockSpec(memory_space=pltpu.MemorySpace.SMEM),     # z (scalars)
            pl.BlockSpec((2, 16, 128), lambda b: (0, 0, 0)),       # fc1w
            pl.BlockSpec((16, 128), lambda b: (0, 0)),             # fc1b
            pl.BlockSpec((512, 512), lambda b: (0, 0)),            # wph1 (bf16)
            pl.BlockSpec((1, 128), lambda b: (0, 0)),              # b1
            pl.BlockSpec((2, 64, 16), lambda b: (0, 0, 0)),        # p1
            pl.BlockSpec((512, 256), lambda b: (0, 0)),            # wph2 (bf16)
            pl.BlockSpec((1, 64), lambda b: (0, 0)),               # b2
            pl.BlockSpec((2, 256, 64), lambda b: (0, 0, 0)),       # p2
            pl.BlockSpec((256, 128), lambda b: (0, 0)),            # wph3 (bf16)
            pl.BlockSpec((1, 128), lambda b: (0, 0)),              # b3 (tiled x4)
            pl.BlockSpec((9, 8, 128), lambda b: (0, 0, 0)),        # wfin
            pl.BlockSpec((1, 1), lambda b: (0, 0)),                # conv1 bias
        ],
        out_specs=pl.BlockSpec((1, 4, 256), lambda b: (b, 0, 0)),
        scratch_shapes=[
            pltpu.VMEM((24, 128), jnp.float32),    # fc1 out:  4x4x128 flat + pad
            pltpu.VMEM((80, 128), jnp.float32),    # tp1 out:  8x8x128 flat + pad
            pltpu.VMEM((280, 64), jnp.float32),    # tp2 out: 16x16x64 flat + pad
        ],
        compiler_params=pltpu.CompilerParams(
            dimension_semantics=("parallel",),
            vmem_limit_bytes=32 * 1024 * 1024,
        ),
    )(z, prep["fc1w"], prep["fc1b"], prep["wph1"], prep["b1"], prep["p1"],
      prep["wph2"], prep["b2"], prep["p2"], prep["wph3"], prep["b3"],
      prep["wfin"], prep["cb"])
    # Un-phase the (4, 256) block: rows = 2*alpha + beta, lanes = 16*r + c,
    # pixel = (2r + alpha, 2c + beta).
    out = out.reshape(B, 2, 2, 16, 16).transpose(0, 3, 1, 4, 2)
    return out.reshape(B, 1, 32, 32)


# ----------------------------------------------------------------------------
# Parameters (deterministic, PyTorch-style shapes and init scale)
# ----------------------------------------------------------------------------
def init_params(key):
    ks = jax.random.split(key, 10)

    def u(k, shape, fan_in):
        bound = 1.0 / jnp.sqrt(fan_in)
        return jax.random.uniform(k, shape, jnp.float32, -bound, bound)

    return {
        "fc1_w": u(ks[0], (2048, 2), 2.0),               # nn.Linear: (out, in)
        "fc1_b": u(ks[1], (2048,), 2.0),
        "tp1_w": u(ks[2], (128, 128, 3, 3), 128 * 9.0),  # ConvT: (Cin,Cout,kh,kw)
        "tp1_b": u(ks[3], (128,), 128 * 9.0),
        "tp2_w": u(ks[4], (128, 64, 3, 3), 128 * 9.0),
        "tp2_b": u(ks[5], (64,), 128 * 9.0),
        "tp3_w": u(ks[6], (64, 32, 3, 3), 64 * 9.0),
        "tp3_b": u(ks[7], (32,), 64 * 9.0),
        "conv1_w": u(ks[8], (1, 32, 3, 3), 32 * 9.0),    # Conv2d: (Cout,Cin,kh,kw)
        "conv1_b": u(ks[9], (1,), 32 * 9.0),
    }


# ----------------------------------------------------------------------------
# Pure-JAX reference
# ----------------------------------------------------------------------------
def reference_forward(p, z):
    hi = jax.lax.Precision.HIGHEST
    x = jnp.dot(z, p["fc1_w"].T, precision=hi) + p["fc1_b"]
    x = x.reshape(-1, 128, 4, 4)  # NCHW

    def tconv_relu(x, wt, b):
        w = jnp.flip(wt, axis=(2, 3)).transpose(1, 0, 2, 3)  # OIHW
        y = jax.lax.conv_general_dilated(
            x, w, window_strides=(1, 1), padding=((1, 2), (1, 2)),
            lhs_dilation=(2, 2),
            dimension_numbers=("NCHW", "OIHW", "NCHW"), precision=hi)
        return jax.nn.relu(y + b.reshape(1, -1, 1, 1))

    x = tconv_relu(x, p["tp1_w"], p["tp1_b"])
    x = tconv_relu(x, p["tp2_w"], p["tp2_b"])
    x = tconv_relu(x, p["tp3_w"], p["tp3_b"])
    y = jax.lax.conv_general_dilated(
        x, p["conv1_w"], (1, 1), ((1, 1), (1, 1)),
        dimension_numbers=("NCHW", "OIHW", "NCHW"), precision=hi)
    return jax.nn.sigmoid(y + p["conv1_b"].reshape(1, -1, 1, 1))


if __name__ == "__main__":
    B = 2
    key = jax.random.PRNGKey(0)
    k_in, k_par = jax.random.split(key)
    z = jax.random.normal(k_in, (B, 2), jnp.float32)   # latent input (B, 2)
    params = init_params(k_par)
    prep = prepare_params(params)                      # one-time weight re-layout

    fwd = jax.jit(decoder_forward)
    out = jax.block_until_ready(fwd(prep, z))
    assert out.shape == (B, 1, 32, 32), out.shape

    ref = jax.block_until_ready(reference_forward(params, z))
    max_err = float(jnp.max(jnp.abs(out - ref)))
    assert jnp.allclose(out, ref, rtol=2e-3, atol=2e-3), max_err
    print("KERNEL_OK")
</pallas_src>

<mosaic_0001>
module attributes {stable_mosaic.version = 11 : i64} {
  func.func @_decoder_kernel(%arg0: i32, %arg1: memref<2x2xf32, #tpu.memory_space<smem>>, %arg2: memref<2x16x128xf32, #tpu.memory_space<vmem>>, %arg3: memref<16x128xf32, #tpu.memory_space<vmem>>, %arg4: memref<512x512xbf16, #tpu.memory_space<vmem>>, %arg5: memref<1x128xf32, #tpu.memory_space<vmem>>, %arg6: memref<2x64x16xf32, #tpu.memory_space<vmem>>, %arg7: memref<512x256xbf16, #tpu.memory_space<vmem>>, %arg8: memref<1x64xf32, #tpu.memory_space<vmem>>, %arg9: memref<2x256x64xf32, #tpu.memory_space<vmem>>, %arg10: memref<256x128xbf16, #tpu.memory_space<vmem>>, %arg11: memref<1x128xf32, #tpu.memory_space<vmem>>, %arg12: memref<9x8x128xf32, #tpu.memory_space<vmem>>, %arg13: memref<1x1xf32, #tpu.memory_space<vmem>>, %arg14: memref<1x4x256xf32, #tpu.memory_space<vmem>>, %arg15: memref<24x128xf32, #tpu.memory_space<vmem>>, %arg16: memref<80x128xf32, #tpu.memory_space<vmem>>, %arg17: memref<280x64xf32, #tpu.memory_space<vmem>>) attributes {dimension_semantics = [#tpu.dimension_semantics<parallel>], iteration_bounds = array<i64: 2>, scalar_prefetch = 0 : i64, scratch_operands = 3 : i64, tpu.core_type = #tpu.core_type<tc>, window_params = [{transform_indices = @transform_0, window_bounds = array<i64: 2, 2>}, {pipeline_mode = #tpu.pipeline_mode<synchronous>, transform_indices = @transform_1, window_bounds = array<i64: 2, 16, 128>}, {pipeline_mode = #tpu.pipeline_mode<synchronous>, transform_indices = @transform_2, window_bounds = array<i64: 16, 128>}, {pipeline_mode = #tpu.pipeline_mode<synchronous>, transform_indices = @transform_3, window_bounds = array<i64: 512, 512>}, {pipeline_mode = #tpu.pipeline_mode<synchronous>, transform_indices = @transform_4, window_bounds = array<i64: 1, 128>}, {pipeline_mode = #tpu.pipeline_mode<synchronous>, transform_indices = @transform_5, window_bounds = array<i64: 2, 64, 16>}, {pipeline_mode = #tpu.pipeline_mode<synchronous>, transform_indices = @transform_6, window_bounds = array<i64: 512, 256>}, {pipeline_mode = #tpu.pipeline_mode<synchronous>, transform_indices = @transform_7, window_bounds = array<i64: 1, 64>}, {pipeline_mode = #tpu.pipeline_mode<synchronous>, transform_indices = @transform_8, window_bounds = array<i64: 2, 256, 64>}, {pipeline_mode = #tpu.pipeline_mode<synchronous>, transform_indices = @transform_9, window_bounds = array<i64: 256, 128>}, {pipeline_mode = #tpu.pipeline_mode<synchronous>, transform_indices = @transform_10, window_bounds = array<i64: 1, 128>}, {pipeline_mode = #tpu.pipeline_mode<synchronous>, transform_indices = @transform_11, window_bounds = array<i64: 9, 8, 128>}, {pipeline_mode = #tpu.pipeline_mode<synchronous>, transform_indices = @transform_12, window_bounds = array<i64: 1, 1>}, {transform_indices = @transform_13, window_bounds = array<i64: 1, 4, 256>}]} {
    %cst = arith.constant 0.000000e+00 : f32
    %0 = vector.broadcast %cst : f32 to vector<8x128xf32>
    %c16 = arith.constant 16 : index
    %c0 = arith.constant 0 : index
    %1 = vector.load %arg15[%c16, %c0] : memref<24x128xf32, #tpu.memory_space<vmem>>, vector<8x128xf32>
    tpu.vector_store %arg15[%c16, %c0], %0 {strides = array<i32>} : memref<24x128xf32, #tpu.memory_space<vmem>>, vector<8x128xf32>,
    %cst_0 = arith.constant 0.000000e+00 : f32
    %2 = vector.broadcast %cst_0 : f32 to vector<16x128xf32>
    %c64 = arith.constant 64 : index
    %c0_1 = arith.constant 0 : index
    %3 = vector.load %arg16[%c64, %c0_1] : memref<80x128xf32, #tpu.memory_space<vmem>>, vector<16x128xf32>
    tpu.vector_store %arg16[%c64, %c0_1], %2 {strides = array<i32>} : memref<80x128xf32, #tpu.memory_space<vmem>>, vector<16x128xf32>,
    %cst_2 = arith.constant 0.000000e+00 : f32
    %4 = vector.broadcast %cst_2 : f32 to vector<24x64xf32>
    %c256 = arith.constant 256 : index
    %c0_3 = arith.constant 0 : index
    %5 = vector.load %arg17[%c256, %c0_3] : memref<280x64xf32, #tpu.memory_space<vmem>>, vector<24x64xf32>
    tpu.vector_store %arg17[%c256, %c0_3], %4 {strides = array<i32>} : memref<280x64xf32, #tpu.memory_space<vmem>>, vector<24x64xf32>,
    %6 = arith.index_cast %arg0 : i32 to index
    %c0_4 = arith.constant 0 : index
    %7 = memref.load %arg1[%6, %c0_4] : memref<2x2xf32, #tpu.memory_space<smem>>
    %8 = arith.index_cast %arg0 : i32 to index
    %c1 = arith.constant 1 : index
    %9 = memref.load %arg1[%8, %c1] : memref<2x2xf32, #tpu.memory_space<smem>>
    %c0_5 = arith.constant 0 : index
    %c0_6 = arith.constant 0 : index
    %c0_7 = arith.constant 0 : index
    %10 = vector.load %arg2[%c0_5, %c0_6, %c0_7] : memref<2x16x128xf32, #tpu.memory_space<vmem>>, vector<1x16x128xf32>
    %11 = vector.shape_cast %10 : vector<1x16x128xf32> to vector<16x128xf32>
    %12 = vector.broadcast %7 : f32 to vector<16x128xf32>
    %13 = arith.mulf %12, %11 : vector<16x128xf32>
    %c1_8 = arith.constant 1 : index
    %c0_9 = arith.constant 0 : index
    %c0_10 = arith.constant 0 : index
    %14 = vector.load %arg2[%c1_8, %c0_9, %c0_10] : memref<2x16x128xf32, #tpu.memory_space<vmem>>, vector<1x16x128xf32>
    %15 = vector.shape_cast %14 : vector<1x16x128xf32> to vector<16x128xf32>
    %16 = vector.broadcast %9 : f32 to vector<16x128xf32>
    %17 = arith.mulf %16, %15 : vector<16x128xf32>
    %18 = arith.addf %13, %17 : vector<16x128xf32>
    %c0_11 = arith.constant 0 : index
    %c0_12 = arith.constant 0 : index
    %19 = vector.load %arg3[%c0_11, %c0_12] : memref<16x128xf32, #tpu.memory_space<vmem>>, vector<16x128xf32>
    %20 = arith.addf %18, %19 : vector<16x128xf32>
    %c0_13 = arith.constant 0 : index
    %c0_14 = arith.constant 0 : index
    %21 = vector.load %arg15[%c0_13, %c0_14] : memref<24x128xf32, #tpu.memory_space<vmem>>, vector<16x128xf32>
    tpu.vector_store %arg15[%c0_13, %c0_14], %20 {strides = array<i32>} : memref<24x128xf32, #tpu.memory_space<vmem>>, vector<16x128xf32>,
    %22 = tpu.iota {dimensions = array<i32: 0>} : vector<16x1xi32>
    %c3_i32 = arith.constant 3 : i32
    %23 = vector.broadcast %c3_i32 : i32 to vector<16x1xi32>
    %24 = arith.andi %22, %23 : vector<16x1xi32>
    %c3_i32_15 = arith.constant 3 : i32
    %25 = vector.broadcast %c3_i32_15 : i32 to vector<16x1xi32>
    %26 = arith.cmpi ne, %24, %25 : vector<16x1xi32>
    %27 = arith.extui %26 : vector<16x1xi1> to vector<16x1xi32>
    %28 = arith.sitofp %27 : vector<16x1xi32> to vector<16x1xf32>
    %c0_16 = arith.constant 0 : index
    %c0_17 = arith.constant 0 : index
    %29 = vector.load %arg15[%c0_16, %c0_17] : memref<24x128xf32, #tpu.memory_space<vmem>>, vector<16x128xf32>
    %c1_18 = arith.constant 1 : index
    %c0_19 = arith.constant 0 : index
    %30 = vector.load %arg15[%c1_18, %c0_19] : memref<24x128xf32, #tpu.memory_space<vmem>>, vector<16x128xf32>
    %31 = vector.broadcast %28 : vector<16x1xf32> to vector<16x128xf32>
    %32 = arith.mulf %30, %31 : vector<16x128xf32>
    %c4 = arith.constant 4 : index
    %c0_20 = arith.constant 0 : index
    %33 = vector.load %arg15[%c4, %c0_20] : memref<24x128xf32, #tpu.memory_space<vmem>>, vector<16x128xf32>
    %c5 = arith.constant 5 : index
    %c0_21 = arith.constant 0 : index
    %34 = vector.load %arg15[%c5, %c0_21] : memref<24x128xf32, #tpu.memory_space<vmem>>, vector<16x128xf32>
    %35 = vector.broadcast %28 : vector<16x1xf32> to vector<16x128xf32>
    %36 = arith.mulf %34, %35 : vector<16x128xf32>
    %37 = tpu.concatenate %29, %32, %33, %36 in 1 : vector<16x128xf32>, vector<16x128xf32>, vector<16x128xf32>, vector<16x128xf32> -> vector<16x512xf32>
    %38 = arith.truncf %37 : vector<16x512xf32> to vector<16x512xbf16>
    %c0_22 = arith.constant 0 : index
    %c0_23 = arith.constant 0 : index
    %39 = vector.load %arg4[%c0_22, %c0_23] : memref<512x512xbf16, #tpu.memory_space<vmem>>, vector<512x512xbf16>
    %cst_24 = arith.constant dense<0.000000e+00> : vector<16x512xf32>
    %40 = tpu.matmul %38, %39, %cst_24 {dimension_numbers = #tpu.dot_dimension_numbers<[1], [0], [0], [1], [0, 0, 1, 1], [], []>} : vector<16x512xbf16>, vector<512x512xbf16>, vector<16x512xf32> -> vector<16x512xf32>
    %c0_25 = arith.constant 0 : index
    %c0_26 = arith.constant 0 : index
    %c0_27 = arith.constant 0 : index
    %41 = vector.load %arg6[%c0_25, %c0_26, %c0_27] : memref<2x64x16xf32, #tpu.memory_space<vmem>>, vector<1x64x16xf32>
    %42 = vector.shape_cast %41 : vector<1x64x16xf32> to vector<64x16xf32>
    %43 = vector.extract_strided_slice %40 {offsets = [0, 0], sizes = [16, 256], strides = [1, 1]} : vector<16x512xf32> to vector<16x256xf32>
    %cst_28 = arith.constant dense<0.000000e+00> : vector<64x256xf32>
    %44 = tpu.matmul %42, %43, %cst_28 {dimension_numbers = #tpu.dot_dimension_numbers<[1], [0], [0], [1], [0, 0, 1, 1], [], []>} : vector<64x16xf32>, vector<16x256xf32>, vector<64x256xf32> -> vector<64x256xf32>
    %c1_29 = arith.constant 1 : index
    %c0_30 = arith.constant 0 : index
    %c0_31 = arith.constant 0 : index
    %45 = vector.load %arg6[%c1_29, %c0_30, %c0_31] : memref<2x64x16xf32, #tpu.memory_space<vmem>>, vector<1x64x16xf32>
    %46 = vector.shape_cast %45 : vector<1x64x16xf32> to vector<64x16xf32>
    %47 = vector.extract_strided_slice %40 {offsets = [0, 256], sizes = [16, 256], strides = [1, 1]} : vector<16x512xf32> to vector<16x256xf32>
    %cst_32 = arith.constant dense<0.000000e+00> : vector<64x256xf32>
    %48 = tpu.matmul %46, %47, %cst_32 {dimension_numbers = #tpu.dot_dimension_numbers<[1], [0], [0], [1], [0, 0, 1, 1], [], []>} : vector<64x16xf32>, vector<16x256xf32>, vector<64x256xf32> -> vector<64x256xf32>
    %49 = vector.extract_strided_slice %44 {offsets = [0, 0], sizes = [64, 128], strides = [1, 1]} : vector<64x256xf32> to vector<64x128xf32>
    %50 = vector.extract_strided_slice %48 {offsets = [0, 0], sizes = [64, 128], strides = [1, 1]} : vector<64x256xf32> to vector<64x128xf32>
    %51 = arith.addf %49, %50 : vector<64x128xf32>
    %52 = vector.extract_strided_slice %44 {offsets = [0, 128], sizes = [64, 128], strides = [1, 1]} : vector<64x256xf32> to vector<64x128xf32>
    %53 = vector.extract_strided_slice %48 {offsets = [0, 128], sizes = [64, 128], strides = [1, 1]} : vector<64x256xf32> to vector<64x128xf32>
    %54 = arith.addf %52, %53 : vector<64x128xf32>
    %c0_33 = arith.constant 0 : index
    %c0_34 = arith.constant 0 : index
    %55 = vector.load %arg5[%c0_33, %c0_34] : memref<1x128xf32, #tpu.memory_space<vmem>>, vector<1x128xf32>
    %56 = vector.extract_strided_slice %51 {offsets = [0, 0], sizes = [8, 128], strides = [1, 1]} : vector<64x128xf32> to vector<8x128xf32>
    %57 = vector.broadcast %55 : vector<1x128xf32> to vector<8x128xf32>
    %58 = arith.addf %56, %57 : vector<8x128xf32>
    %cst_35 = arith.constant 0.000000e+00 : f32
    %59 = vector.broadcast %cst_35 : f32 to vector<8x128xf32>
    %60 = arith.maximumf %58, %59 : vector<8x128xf32>
    %c0_36 = arith.constant 0 : index
    %c0_37 = arith.constant 0 : index
    %61 = vector.load %arg16[%c0_36, %c0_37] : memref<80x128xf32, #tpu.memory_space<vmem>>, vector<8x128xf32>
    tpu.vector_store %arg16[%c0_36, %c0_37], %60 {strides = array<i32>} : memref<80x128xf32, #tpu.memory_space<vmem>>, vector<8x128xf32>,
    %62 = vector.extract_strided_slice %51 {offsets = [8, 0], sizes = [56, 128], strides = [1, 1]} : vector<64x128xf32> to vector<56x128xf32>
    %63 = vector.extract_strided_slice %54 {offsets = [0, 0], sizes = [56, 128], strides = [1, 1]} : vector<64x128xf32> to vector<56x128xf32>
    %64 = arith.addf %62, %63 : vector<56x128xf32>
    %65 = vector.broadcast %55 : vector<1x128xf32> to vector<56x128xf32>
    %66 = arith.addf %64, %65 : vector<56x128xf32>
    %cst_38 = arith.constant 0.000000e+00 : f32
    %67 = vector.broadcast %cst_38 : f32 to vector<56x128xf32>
    %68 = arith.maximumf %66, %67 : vector<56x128xf32>
    %c8 = arith.constant 8 : index
    %c0_39 = arith.constant 0 : index
    %69 = vector.load %arg16[%c8, %c0_39] : memref<80x128xf32, #tpu.memory_space<vmem>>, vector<56x128xf32>
    tpu.vector_store %arg16[%c8, %c0_39], %68 {strides = array<i32>} : memref<80x128xf32, #tpu.memory_space<vmem>>, vector<56x128xf32>,
    %70 = tpu.iota {dimensions = array<i32: 0>} : vector<64x1xi32>
    %c7_i32 = arith.constant 7 : i32
    %71 = vector.broadcast %c7_i32 : i32 to vector<64x1xi32>
    %72 = arith.andi %70, %71 : vector<64x1xi32>
    %c7_i32_40 = arith.constant 7 : i32
    %73 = vector.broadcast %c7_i32_40 : i32 to vector<64x1xi32>
    %74 = arith.cmpi ne, %72, %73 : vector<64x1xi32>
    %75 = arith.extui %74 : vector<64x1xi1> to vector<64x1xi32>
    %76 = arith.sitofp %75 : vector<64x1xi32> to vector<64x1xf32>
    %c0_41 = arith.constant 0 : index
    %c0_42 = arith.constant 0 : index
    %77 = vector.load %arg16[%c0_41, %c0_42] : memref<80x128xf32, #tpu.memory_space<vmem>>, vector<64x128xf32>
    %c1_43 = arith.constant 1 : index
    %c0_44 = arith.constant 0 : index
    %78 = vector.load %arg16[%c1_43, %c0_44] : memref<80x128xf32, #tpu.memory_space<vmem>>, vector<64x128xf32>
    %79 = vector.broadcast %76 : vector<64x1xf32> to vector<64x128xf32>
    %80 = arith.mulf %78, %79 : vector<64x128xf32>
    %c8_45 = arith.constant 8 : index
    %c0_46 = arith.constant 0 : index
    %81 = vector.load %arg16[%c8_45, %c0_46] : memref<80x128xf32, #tpu.memory_space<vmem>>, vector<64x128xf32>
    %c9 = arith.constant 9 : index
    %c0_47 = arith.constant 0 : index
    %82 = vector.load %arg16[%c9, %c0_47] : memref<80x128xf32, #tpu.memory_space<vmem>>, vector<64x128xf32>
    %83 = vector.broadcast %76 : vector<64x1xf32> to vector<64x128xf32>
    %84 = arith.mulf %82, %83 : vector<64x128xf32>
    %85 = tpu.concatenate %77, %80, %81, %84 in 1 : vector<64x128xf32>, vector<64x128xf32>, vector<64x128xf32>, vector<64x128xf32> -> vector<64x512xf32>
    %86 = arith.truncf %85 : vector<64x512xf32> to vector<64x512xbf16>
    %c0_48 = arith.constant 0 : index
    %c0_49 = arith.constant 0 : index
    %87 = vector.load %arg7[%c0_48, %c0_49] : memref<512x256xbf16, #tpu.memory_space<vmem>>, vector<512x256xbf16>
    %cst_50 = arith.constant dense<0.000000e+00> : vector<64x256xf32>
    %88 = tpu.matmul %86, %87, %cst_50 {dimension_numbers = #tpu.dot_dimension_numbers<[1], [0], [0], [1], [0, 0, 1, 1], [], []>} : vector<64x512xbf16>, vector<512x256xbf16>, vector<64x256xf32> -> vector<64x256xf32>
    %c0_51 = arith.constant 0 : index
    %c0_52 = arith.constant 0 : index
    %c0_53 = arith.constant 0 : index
    %89 = vector.load %arg9[%c0_51, %c0_52, %c0_53] : memref<2x256x64xf32, #tpu.memory_space<vmem>>, vector<1x256x64xf32>
    %90 = vector.shape_cast %89 : vector<1x256x64xf32> to vector<256x64xf32>
    %91 = vector.extract_strided_slice %88 {offsets = [0, 0], sizes = [64, 128], strides = [1, 1]} : vector<64x256xf32> to vector<64x128xf32>
    %cst_54 = arith.constant dense<0.000000e+00> : vector<256x128xf32>
    %92 = tpu.matmul %90, %91, %cst_54 {dimension_numbers = #tpu.dot_dimension_numbers<[1], [0], [0], [1], [0, 0, 1, 1], [], []>} : vector<256x64xf32>, vector<64x128xf32>, vector<256x128xf32> -> vector<256x128xf32>
    %c1_55 = arith.constant 1 : index
    %c0_56 = arith.constant 0 : index
    %c0_57 = arith.constant 0 : index
    %93 = vector.load %arg9[%c1_55, %c0_56, %c0_57] : memref<2x256x64xf32, #tpu.memory_space<vmem>>, vector<1x256x64xf32>
    %94 = vector.shape_cast %93 : vector<1x256x64xf32> to vector<256x64xf32>
    %95 = vector.extract_strided_slice %88 {offsets = [0, 128], sizes = [64, 128], strides = [1, 1]} : vector<64x256xf32> to vector<64x128xf32>
    %cst_58 = arith.constant dense<0.000000e+00> : vector<256x128xf32>
    %96 = tpu.matmul %94, %95, %cst_58 {dimension_numbers = #tpu.dot_dimension_numbers<[1], [0], [0], [1], [0, 0, 1, 1], [], []>} : vector<256x64xf32>, vector<64x128xf32>, vector<256x128xf32> -> vector<256x128xf32>
    %97 = vector.extract_strided_slice %92 {offsets = [0, 0], sizes = [256, 64], strides = [1, 1]} : vector<256x128xf32> to vector<256x64xf32>
    %98 = vector.extract_strided_slice %96 {offsets = [0, 0], sizes = [256, 64], strides = [1, 1]} : vector<256x128xf32> to vector<256x64xf32>
    %99 = arith.addf %97, %98 : vector<256x64xf32>
    %100 = vector.extract_strided_slice %92 {offsets = [0, 64], sizes = [256, 64], strides = [1, 1]} : vector<256x128xf32> to vector<256x64xf32>
    %101 = vector.extract_strided_slice %96 {offsets = [0, 64], sizes = [256, 64], strides = [1, 1]} : vector<256x128xf32> to vector<256x64xf32>
    %102 = arith.addf %100, %101 : vector<256x64xf32>
    %c0_59 = arith.constant 0 : index
    %c0_60 = arith.constant 0 : index
    %103 = vector.load %arg8[%c0_59, %c0_60] : memref<1x64xf32, #tpu.memory_space<vmem>>, vector<1x64xf32>
    %104 = vector.extract_strided_slice %99 {offsets = [0, 0], sizes = [16, 64], strides = [1, 1]} : vector<256x64xf32> to vector<16x64xf32>
    %105 = vector.broadcast %103 : vector<1x64xf32> to vector<16x64xf32>
    %106 = arith.addf %104, %105 : vector<16x64xf32>
    %cst_61 = arith.constant 0.000000e+00 : f32
    %107 = vector.broadcast %cst_61 : f32 to vector<16x64xf32>
    %108 = arith.maximumf %106, %107 : vector<16x64xf32>
    %c0_62 = arith.constant 0 : index
    %c0_63 = arith.constant 0 : index
    %109 = vector.load %arg17[%c0_62, %c0_63] : memref<280x64xf32, #tpu.memory_space<vmem>>, vector<16x64xf32>
    tpu.vector_store %arg17[%c0_62, %c0_63], %108 {strides = array<i32>} : memref<280x64xf32, #tpu.memory_space<vmem>>, vector<16x64xf32>,
    %110 = vector.extract_strided_slice %99 {offsets = [16, 0], sizes = [240, 64], strides = [1, 1]} : vector<256x64xf32> to vector<240x64xf32>
    %111 = vector.extract_strided_slice %102 {offsets = [0, 0], sizes = [240, 64], strides = [1, 1]} : vector<256x64xf32> to vector<240x64xf32>
    %112 = arith.addf %110, %111 : vector<240x64xf32>
    %113 = vector.broadcast %103 : vector<1x64xf32> to vector<240x64xf32>
    %114 = arith.addf %112, %113 : vector<240x64xf32>
    %cst_64 = arith.constant 0.000000e+00 : f32
    %115 = vector.broadcast %cst_64 : f32 to vector<240x64xf32>
    %116 = arith.maximumf %114, %115 : vector<240x64xf32>
    %c16_65 = arith.constant 16 : index
    %c0_66 = arith.constant 0 : index
    %117 = vector.load %arg17[%c16_65, %c0_66] : memref<280x64xf32, #tpu.memory_space<vmem>>, vector<240x64xf32>
    tpu.vector_store %arg17[%c16_65, %c0_66], %116 {strides = array<i32>} : memref<280x64xf32, #tpu.memory_space<vmem>>, vector<240x64xf32>,
    %118 = tpu.iota {dimensions = array<i32: 0>} : vector<256x1xi32>
    %c15_i32 = arith.constant 15 : i32
    %119 = vector.broadcast %c15_i32 : i32 to vector<256x1xi32>
    %120 = arith.andi %118, %119 : vector<256x1xi32>
    %c15_i32_67 = arith.constant 15 : i32
    %121 = vector.broadcast %c15_i32_67 : i32 to vector<256x1xi32>
    %122 = arith.cmpi ne, %120, %121 : vector<256x1xi32>
    %123 = arith.extui %122 : vector<256x1xi1> to vector<256x1xi32>
    %124 = arith.sitofp %123 : vector<256x1xi32> to vector<256x1xf32>
    %c0_68 = arith.constant 0 : index
    %c0_69 = arith.constant 0 : index
    %125 = vector.load %arg17[%c0_68, %c0_69] : memref<280x64xf32, #tpu.memory_space<vmem>>, vector<256x64xf32>
    %c1_70 = arith.constant 1 : index
    %c0_71 = arith.constant 0 : index
    %126 = vector.load %arg17[%c1_70, %c0_71] : memref<280x64xf32, #tpu.memory_space<vmem>>, vector<256x64xf32>
    %127 = vector.broadcast %124 : vector<256x1xf32> to vector<256x64xf32>
    %128 = arith.mulf %126, %127 : vector<256x64xf32>
    %c16_72 = arith.constant 16 : index
    %c0_73 = arith.constant 0 : index
    %129 = vector.load %arg17[%c16_72, %c0_73] : memref<280x64xf32, #tpu.memory_space<vmem>>, vector<256x64xf32>
    %c17 = arith.constant 17 : index
    %c0_74 = arith.constant 0 : index
    %130 = vector.load %arg17[%c17, %c0_74] : memref<280x64xf32, #tpu.memory_space<vmem>>, vector<256x64xf32>
    %131 = vector.broadcast %124 : vector<256x1xf32> to vector<256x64xf32>
    %132 = arith.mulf %130, %131 : vector<256x64xf32>
    %133 = tpu.concatenate %125, %128, %129, %132 in 1 : vector<256x64xf32>, vector<256x64xf32>, vector<256x64xf32>, vector<256x64xf32> -> vector<256x256xf32>
    %134 = arith.truncf %133 : vector<256x256xf32> to vector<256x256xbf16>
    %c0_75 = arith.constant 0 : index
    %c0_76 = arith.constant 0 : index
    %135 = vector.load %arg10[%c0_75, %c0_76] : memref<256x128xbf16, #tpu.memory_space<vmem>>, vector<256x128xbf16>
    %cst_77 = arith.constant dense<0.000000e+00> : vector<256x128xf32>
    %136 = tpu.matmul %134, %135, %cst_77 {dimension_numbers = #tpu.dot_dimension_numbers<[1], [0], [0], [1], [0, 0, 1, 1], [], []>} : vector<256x256xbf16>, vector<256x128xbf16>, vector<256x128xf32> -> vector<256x128xf32>
    %c0_78 = arith.constant 0 : index
    %c0_79 = arith.constant 0 : index
    %137 = vector.load %arg11[%c0_78, %c0_79] : memref<1x128xf32, #tpu.memory_space<vmem>>, vector<1x128xf32>
    %138 = vector.broadcast %137 : vector<1x128xf32> to vector<256x128xf32>
    %139 = arith.addf %136, %138 : vector<256x128xf32>
    %cst_80 = arith.constant 0.000000e+00 : f32
    %140 = vector.broadcast %cst_80 : f32 to vector<256x128xf32>
    %141 = arith.maximumf %139, %140 : vector<256x128xf32>
    %142 = tpu.transpose %141, [1, 0] : vector<256x128xf32> -> vector<128x256xf32>
    %143 = tpu.iota {dimensions = array<i32: 1>} : vector<1x256xi32>
    %c15_i32_81 = arith.constant 15 : i32
    %144 = vector.broadcast %c15_i32_81 : i32 to vector<1x256xi32>
    %145 = arith.andi %143, %144 : vector<1x256xi32>
    %c15_i32_82 = arith.constant 15 : i32
    %146 = vector.broadcast %c15_i32_82 : i32 to vector<1x256xi32>
    %147 = arith.cmpi ne, %145, %146 : vector<1x256xi32>
    %148 = arith.extui %147 : vector<1x256xi1> to vector<1x256xi32>
    %149 = arith.sitofp %148 : vector<1x256xi32> to vector<1x256xf32>
    %c0_i32 = arith.constant 0 : i32
    %150 = vector.broadcast %c0_i32 : i32 to vector<1x256xi32>
    %151 = arith.cmpi ne, %145, %150 : vector<1x256xi32>
    %152 = arith.extui %151 : vector<1x256xi1> to vector<1x256xi32>
    %153 = arith.sitofp %152 : vector<1x256xi32> to vector<1x256xf32>
    %c240_i32 = arith.constant 240 : i32
    %154 = vector.broadcast %c240_i32 : i32 to vector<1x256xi32>
    %155 = arith.cmpi slt, %143, %154 : vector<1x256xi32>
    %156 = arith.extui %155 : vector<1x256xi1> to vector<1x256xi32>
    %157 = arith.sitofp %156 : vector<1x256xi32> to vector<1x256xf32>
    %c16_i32 = arith.constant 16 : i32
    %158 = vector.broadcast %c16_i32 : i32 to vector<1x256xi32>
    %159 = arith.cmpi sge, %143, %158 : vector<1x256xi32>
    %160 = arith.extui %159 : vector<1x256xi1> to vector<1x256xi32>
    %161 = arith.sitofp %160 : vector<1x256xi32> to vector<1x256xf32>
    %cst_83 = arith.constant 0.000000e+00 : f32
    %162 = vector.broadcast %cst_83 : f32 to vector<8x256xf32>
    %163 = vector.extract_strided_slice %142 {offsets = [0, 239], sizes = [128, 17], strides = [1, 1]} : vector<128x256xf32> to vector<128x17xf32>
    %164 = vector.extract_strided_slice %142 {offsets = [0, 0], sizes = [128, 239], strides = [1, 1]} : vector<128x256xf32> to vector<128x239xf32>
    %165 = tpu.concatenate %163, %164 in 1 : vector<128x17xf32>, vector<128x239xf32> -> vector<128x256xf32>
    %166 = vector.broadcast %153 : vector<1x256xf32> to vector<128x256xf32>
    %167 = arith.mulf %165, %166 : vector<128x256xf32>
    %168 = vector.broadcast %161 : vector<1x256xf32> to vector<128x256xf32>
    %169 = arith.mulf %167, %168 : vector<128x256xf32>
    %c0_84 = arith.constant 0 : index
    %c0_85 = arith.constant 0 : index
    %c0_86 = arith.constant 0 : index
    %170 = vector.load %arg12[%c0_84, %c0_85, %c0_86] : memref<9x8x128xf32, #tpu.memory_space<vmem>>, vector<1x8x128xf32>
    %171 = vector.shape_cast %170 : vector<1x8x128xf32> to vector<8x128xf32>
    %cst_87 = arith.constant dense<0.000000e+00> : vector<8x256xf32>
    %172 = tpu.matmul %171, %169, %cst_87 {dimension_numbers = #tpu.dot_dimension_numbers<[1], [0], [0], [1], [0, 0, 1, 1], [], []>} : vector<8x128xf32>, vector<128x256xf32>, vector<8x256xf32> -> vector<8x256xf32>
    %173 = arith.addf %162, %172 : vector<8x256xf32>
    %174 = vector.extract_strided_slice %142 {offsets = [0, 240], sizes = [128, 16], strides = [1, 1]} : vector<128x256xf32> to vector<128x16xf32>
    %175 = vector.extract_strided_slice %142 {offsets = [0, 0], sizes = [128, 240], strides = [1, 1]} : vector<128x256xf32> to vector<128x240xf32>
    %176 = tpu.concatenate %174, %175 in 1 : vector<128x16xf32>, vector<128x240xf32> -> vector<128x256xf32>
    %177 = vector.broadcast %161 : vector<1x256xf32> to vector<128x256xf32>
    %178 = arith.mulf %176, %177 : vector<128x256xf32>
    %c1_88 = arith.constant 1 : index
    %c0_89 = arith.constant 0 : index
    %c0_90 = arith.constant 0 : index
    %179 = vector.load %arg12[%c1_88, %c0_89, %c0_90] : memref<9x8x128xf32, #tpu.memory_space<vmem>>, vector<1x8x128xf32>
    %180 = vector.shape_cast %179 : vector<1x8x128xf32> to vector<8x128xf32>
    %cst_91 = arith.constant dense<0.000000e+00> : vector<8x256xf32>
    %181 = tpu.matmul %180, %178, %cst_91 {dimension_numbers = #tpu.dot_dimension_numbers<[1], [0], [0], [1], [0, 0, 1, 1], [], []>} : vector<8x128xf32>, vector<128x256xf32>, vector<8x256xf32> -> vector<8x256xf32>
    %182 = arith.addf %173, %181 : vector<8x256xf32>
    %183 = vector.extract_strided_slice %142 {offsets = [0, 241], sizes = [128, 15], strides = [1, 1]} : vector<128x256xf32> to vector<128x15xf32>
    %184 = vector.extract_strided_slice %142 {offsets = [0, 0], sizes = [128, 241], strides = [1, 1]} : vector<128x256xf32> to vector<128x241xf32>
    %185 = tpu.concatenate %183, %184 in 1 : vector<128x15xf32>, vector<128x241xf32> -> vector<128x256xf32>
    %186 = vector.broadcast %149 : vector<1x256xf32> to vector<128x256xf32>
    %187 = arith.mulf %185, %186 : vector<128x256xf32>
    %188 = vector.broadcast %161 : vector<1x256xf32> to vector<128x256xf32>
    %189 = arith.mulf %187, %188 : vector<128x256xf32>
    %c2 = arith.constant 2 : index
    %c0_92 = arith.constant 0 : index
    %c0_93 = arith.constant 0 : index
    %190 = vector.load %arg12[%c2, %c0_92, %c0_93] : memref<9x8x128xf32, #tpu.memory_space<vmem>>, vector<1x8x128xf32>
    %191 = vector.shape_cast %190 : vector<1x8x128xf32> to vector<8x128xf32>
    %cst_94 = arith.constant dense<0.000000e+00> : vector<8x256xf32>
    %192 = tpu.matmul %191, %189, %cst_94 {dimension_numbers = #tpu.dot_dimension_numbers<[1], [0], [0], [1], [0, 0, 1, 1], [], []>} : vector<8x128xf32>, vector<128x256xf32>, vector<8x256xf32> -> vector<8x256xf32>
    %193 = arith.addf %182, %192 : vector<8x256xf32>
    %194 = vector.extract_strided_slice %142 {offsets = [0, 255], sizes = [128, 1], strides = [1, 1]} : vector<128x256xf32> to vector<128x1xf32>
    %195 = vector.extract_strided_slice %142 {offsets = [0, 0], sizes = [128, 255], strides = [1, 1]} : vector<128x256xf32> to vector<128x255xf32>
    %196 = tpu.concatenate %194, %195 in 1 : vector<128x1xf32>, vector<128x255xf32> -> vector<128x256xf32>
    %197 = vector.broadcast %153 : vector<1x256xf32> to vector<128x256xf32>
    %198 = arith.mulf %196, %197 : vector<128x256xf32>
    %c3 = arith.constant 3 : index
    %c0_95 = arith.constant 0 : index
    %c0_96 = arith.constant 0 : index
    %199 = vector.load %arg12[%c3, %c0_95, %c0_96] : memref<9x8x128xf32, #tpu.memory_space<vmem>>, vector<1x8x128xf32>
    %200 = vector.shape_cast %199 : vector<1x8x128xf32> to vector<8x128xf32>
    %cst_97 = arith.constant dense<0.000000e+00> : vector<8x256xf32>
    %201 = tpu.matmul %200, %198, %cst_97 {dimension_numbers = #tpu.dot_dimension_numbers<[1], [0], [0], [1], [0, 0, 1, 1], [], []>} : vector<8x128xf32>, vector<128x256xf32>, vector<8x256xf32> -> vector<8x256xf32>
    %202 = arith.addf %193, %201 : vector<8x256xf32>
    %c4_98 = arith.constant 4 : index
    %c0_99 = arith.constant 0 : index
    %c0_100 = arith.constant 0 : index
    %203 = vector.load %arg12[%c4_98, %c0_99, %c0_100] : memref<9x8x128xf32, #tpu.memory_space<vmem>>, vector<1x8x128xf32>
    %204 = vector.shape_cast %203 : vector<1x8x128xf32> to vector<8x128xf32>
    %cst_101 = arith.constant dense<0.000000e+00> : vector<8x256xf32>
    %205 = tpu.matmul %204, %142, %cst_101 {dimension_numbers = #tpu.dot_dimension_numbers<[1], [0], [0], [1], [0, 0, 1, 1], [], []>} : vector<8x128xf32>, vector<128x256xf32>, vector<8x256xf32> -> vector<8x256xf32>
    %206 = arith.addf %202, %205 : vector<8x256xf32>
    %207 = vector.extract_strided_slice %142 {offsets = [0, 1], sizes = [128, 255], strides = [1, 1]} : vector<128x256xf32> to vector<128x255xf32>
    %208 = vector.extract_strided_slice %142 {offsets = [0, 0], sizes = [128, 1], strides = [1, 1]} : vector<128x256xf32> to vector<128x1xf32>
    %209 = tpu.concatenate %207, %208 in 1 : vector<128x255xf32>, vector<128x1xf32> -> vector<128x256xf32>
    %210 = vector.broadcast %149 : vector<1x256xf32> to vector<128x256xf32>
    %211 = arith.mulf %209, %210 : vector<128x256xf32>
    %c5_102 = arith.constant 5 : index
    %c0_103 = arith.constant 0 : index
    %c0_104 = arith.constant 0 : index
    %212 = vector.load %arg12[%c5_102, %c0_103, %c0_104] : memref<9x8x128xf32, #tpu.memory_space<vmem>>, vector<1x8x128xf32>
    %213 = vector.shape_cast %212 : vector<1x8x128xf32> to vector<8x128xf32>
    %cst_105 = arith.constant dense<0.000000e+00> : vector<8x256xf32>
    %214 = tpu.matmul %213, %211, %cst_105 {dimension_numbers = #tpu.dot_dimension_numbers<[1], [0], [0], [1], [0, 0, 1, 1], [], []>} : vector<8x128xf32>, vector<128x256xf32>, vector<8x256xf32> -> vector<8x256xf32>
    %215 = arith.addf %206, %214 : vector<8x256xf32>
    %216 = vector.extract_strided_slice %142 {offsets = [0, 15], sizes = [128, 241], strides = [1, 1]} : vector<128x256xf32> to vector<128x241xf32>
    %217 = vector.extract_strided_slice %142 {offsets = [0, 0], sizes = [128, 15], strides = [1, 1]} : vector<128x256xf32> to vector<128x15xf32>
    %218 = tpu.concatenate %216, %217 in 1 : vector<128x241xf32>, vector<128x15xf32> -> vector<128x256xf32>
    %219 = vector.broadcast %153 : vector<1x256xf32> to vector<128x256xf32>
    %220 = arith.mulf %218, %219 : vector<128x256xf32>
    %221 = vector.broadcast %157 : vector<1x256xf32> to vector<128x256xf32>
    %222 = arith.mulf %220, %221 : vector<128x256xf32>
    %c6 = arith.constant 6 : index
    %c0_106 = arith.constant 0 : index
    %c0_107 = arith.constant 0 : index
    %223 = vector.load %arg12[%c6, %c0_106, %c0_107] : memref<9x8x128xf32, #tpu.memory_space<vmem>>, vector<1x8x128xf32>
    %224 = vector.shape_cast %223 : vector<1x8x128xf32> to vector<8x128xf32>
    %cst_108 = arith.constant dense<0.000000e+00> : vector<8x256xf32>
    %225 = tpu.matmul %224, %222, %cst_108 {dimension_numbers = #tpu.dot_dimension_numbers<[1], [0], [0], [1], [0, 0, 1, 1], [], []>} : vector<8x128xf32>, vector<128x256xf32>, vector<8x256xf32> -> vector<8x256xf32>
    %226 = arith.addf %215, %225 : vector<8x256xf32>
    %227 = vector.extract_strided_slice %142 {offsets = [0, 16], sizes = [128, 240], strides = [1, 1]} : vector<128x256xf32> to vector<128x240xf32>
    %228 = vector.extract_strided_slice %142 {offsets = [0, 0], sizes = [128, 16], strides = [1, 1]} : vector<128x256xf32> to vector<128x16xf32>
    %229 = tpu.concatenate %227, %228 in 1 : vector<128x240xf32>, vector<128x16xf32> -> vector<128x256xf32>
    %230 = vector.broadcast %157 : vector<1x256xf32> to vector<128x256xf32>
    %231 = arith.mulf %229, %230 : vector<128x256xf32>
    %c7 = arith.constant 7 : index
    %c0_109 = arith.constant 0 : index
    %c0_110 = arith.constant 0 : index
    %232 = vector.load %arg12[%c7, %c0_109, %c0_110] : memref<9x8x128xf32, #tpu.memory_space<vmem>>, vector<1x8x128xf32>
    %233 = vector.shape_cast %232 : vector<1x8x128xf32> to vector<8x128xf32>
    %cst_111 = arith.constant dense<0.000000e+00> : vector<8x256xf32>
    %234 = tpu.matmul %233, %231, %cst_111 {dimension_numbers = #tpu.dot_dimension_numbers<[1], [0], [0], [1], [0, 0, 1, 1], [], []>} : vector<8x128xf32>, vector<128x256xf32>, vector<8x256xf32> -> vector<8x256xf32>
    %235 = arith.addf %226, %234 : vector<8x256xf32>
    %236 = vector.extract_strided_slice %142 {offsets = [0, 17], sizes = [128, 239], strides = [1, 1]} : vector<128x256xf32> to vector<128x239xf32>
    %237 = vector.extract_strided_slice %142 {offsets = [0, 0], sizes = [128, 17], strides = [1, 1]} : vector<128x256xf32> to vector<128x17xf32>
    %238 = tpu.concatenate %236, %237 in 1 : vector<128x239xf32>, vector<128x17xf32> -> vector<128x256xf32>
    %239 = vector.broadcast %149 : vector<1x256xf32> to vector<128x256xf32>
    %240 = arith.mulf %238, %239 : vector<128x256xf32>
    %241 = vector.broadcast %157 : vector<1x256xf32> to vector<128x256xf32>
    %242 = arith.mulf %240, %241 : vector<128x256xf32>
    %c8_112 = arith.constant 8 : index
    %c0_113 = arith.constant 0 : index
    %c0_114 = arith.constant 0 : index
    %243 = vector.load %arg12[%c8_112, %c0_113, %c0_114] : memref<9x8x128xf32, #tpu.memory_space<vmem>>, vector<1x8x128xf32>
    %244 = vector.shape_cast %243 : vector<1x8x128xf32> to vector<8x128xf32>
    %cst_115 = arith.constant dense<0.000000e+00> : vector<8x256xf32>
    %245 = tpu.matmul %244, %242, %cst_115 {dimension_numbers = #tpu.dot_dimension_numbers<[1], [0], [0], [1], [0, 0, 1, 1], [], []>} : vector<8x128xf32>, vector<128x256xf32>, vector<8x256xf32> -> vector<8x256xf32>
    %246 = arith.addf %235, %245 : vector<8x256xf32>
    %247 = vector.extract_strided_slice %246 {offsets = [0, 0], sizes = [4, 256], strides = [1, 1]} : vector<8x256xf32> to vector<4x256xf32>
    %c0_116 = arith.constant 0 : index
    %c0_117 = arith.constant 0 : index
    %248 = vector.load %arg13[%c0_116, %c0_117] : memref<1x1xf32, #tpu.memory_space<vmem>>, vector<1x1xf32>
    %249 = vector.broadcast %248 : vector<1x1xf32> to vector<4x256xf32>
    %250 = arith.addf %247, %249 : vector<4x256xf32>
    %251 = arith.negf %250 : vector<4x256xf32>
    %252 = math.exp %251 : vector<4x256xf32>
    %cst_118 = arith.constant 1.000000e+00 : f32
    %253 = vector.broadcast %cst_118 : f32 to vector<4x256xf32>
    %254 = arith.addf %253, %252 : vector<4x256xf32>
    %255 = arith.divf %253, %254 : vector<4x256xf32>
    %c0_119 = arith.constant 0 : index
    %c0_120 = arith.constant 0 : index
    %c0_121 = arith.constant 0 : index
    %256 = vector.load %arg14[%c0_119, %c0_120, %c0_121] : memref<1x4x256xf32, #tpu.memory_space<vmem>>, vector<1x4x256xf32>
    %257 = vector.shape_cast %256 : vector<1x4x256xf32> to vector<4x256xf32>
    %258 = vector.shape_cast %255 : vector<4x256xf32> to vector<1x4x256xf32>
    tpu.vector_store %arg14[%c0_119, %c0_120, %c0_121], %258 {strides = array<i32>} : memref<1x4x256xf32, #tpu.memory_space<vmem>>, vector<1x4x256xf32>,
    return
  }
  func.func @transform_0(%arg0: i32) -> (i32, i32) {
    %c0_i32 = arith.constant 0 : i32
    %c0_i32_0 = arith.constant 0 : i32
    %c0_i32_1 = arith.constant 0 : i32
    return %c0_i32, %c0_i32_0 : i32, i32
  }
  func.func @transform_1(%arg0: i32) -> (i32, i32, i32) {
    %c0_i32 = arith.constant 0 : i32
    %c0_i32_0 = arith.constant 0 : i32
    %c0_i32_1 = arith.constant 0 : i32
    %c0_i32_2 = arith.constant 0 : i32
    return %c0_i32, %c0_i32_0, %c0_i32_1 : i32, i32, i32
  }
  func.func @transform_2(%arg0: i32) -> (i32, i32) {
    %c0_i32 = arith.constant 0 : i32
    %c0_i32_0 = arith.constant 0 : i32
    %c0_i32_1 = arith.constant 0 : i32
    return %c0_i32, %c0_i32_0 : i32, i32
  }
  func.func @transform_3(%arg0: i32) -> (i32, i32) {
    %c0_i32 = arith.constant 0 : i32
    %c0_i32_0 = arith.constant 0 : i32
    %c0_i32_1 = arith.constant 0 : i32
    return %c0_i32, %c0_i32_0 : i32, i32
  }
  func.func @transform_4(%arg0: i32) -> (i32, i32) {
    %c0_i32 = arith.constant 0 : i32
    %c0_i32_0 = arith.constant 0 : i32
    %c0_i32_1 = arith.constant 0 : i32
    return %c0_i32, %c0_i32_0 : i32, i32
  }
  func.func @transform_5(%arg0: i32) -> (i32, i32, i32) {
    %c0_i32 = arith.constant 0 : i32
    %c0_i32_0 = arith.constant 0 : i32
    %c0_i32_1 = arith.constant 0 : i32
    %c0_i32_2 = arith.constant 0 : i32
    return %c0_i32, %c0_i32_0, %c0_i32_1 : i32, i32, i32
  }
  func.func @transform_6(%arg0: i32) -> (i32, i32) {
    %c0_i32 = arith.constant 0 : i32
    %c0_i32_0 = arith.constant 0 : i32
    %c0_i32_1 = arith.constant 0 : i32
    return %c0_i32, %c0_i32_0 : i32, i32
  }
  func.func @transform_7(%arg0: i32) -> (i32, i32) {
    %c0_i32 = arith.constant 0 : i32
    %c0_i32_0 = arith.constant 0 : i32
    %c0_i32_1 = arith.constant 0 : i32
    return %c0_i32, %c0_i32_0 : i32, i32
  }
  func.func @transform_8(%arg0: i32) -> (i32, i32, i32) {
    %c0_i32 = arith.constant 0 : i32
    %c0_i32_0 = arith.constant 0 : i32
    %c0_i32_1 = arith.constant 0 : i32
    %c0_i32_2 = arith.constant 0 : i32
    return %c0_i32, %c0_i32_0, %c0_i32_1 : i32, i32, i32
  }
  func.func @transform_9(%arg0: i32) -> (i32, i32) {
    %c0_i32 = arith.constant 0 : i32
    %c0_i32_0 = arith.constant 0 : i32
    %c0_i32_1 = arith.constant 0 : i32
    return %c0_i32, %c0_i32_0 : i32, i32
  }
  func.func @transform_10(%arg0: i32) -> (i32, i32) {
    %c0_i32 = arith.constant 0 : i32
    %c0_i32_0 = arith.constant 0 : i32
    %c0_i32_1 = arith.constant 0 : i32
    return %c0_i32, %c0_i32_0 : i32, i32
  }
  func.func @transform_11(%arg0: i32) -> (i32, i32, i32) {
    %c0_i32 = arith.constant 0 : i32
    %c0_i32_0 = arith.constant 0 : i32
    %c0_i32_1 = arith.constant 0 : i32
    %c0_i32_2 = arith.constant 0 : i32
    return %c0_i32, %c0_i32_0, %c0_i32_1 : i32, i32, i32
  }
  func.func @transform_12(%arg0: i32) -> (i32, i32) {
    %c0_i32 = arith.constant 0 : i32
    %c0_i32_0 = arith.constant 0 : i32
    %c0_i32_1 = arith.constant 0 : i32
    return %c0_i32, %c0_i32_0 : i32, i32
  }
  func.func @transform_13(%arg0: i32) -> (i32, i32, i32) {
    %c0_i32 = arith.constant 0 : i32
    %c0_i32_0 = arith.constant 0 : i32
    %c0_i32_1 = arith.constant 0 : i32
    return %arg0, %c0_i32, %c0_i32_0 : i32, i32, i32
  }
}

</mosaic_0001>

<llo_original>
// kernel: decoder_forward.1
$region0: #{decoder_forward.1}
  #allocation0 [shape = 'u32[]', space=smem, size = 0x4, offset = 0x4, fixed_abs, tag = 'smem constant byte address 0x4 - core index']
  #allocation1 [shape = 'u32[72,128]{1,0:T(1,128)}', space=vmem, size = 0x9000, scoped, tag = 'internal scratch']
  #allocation2 [shape = 'f32[24,128]{1,0:T(8,128)}', space=vmem, size = 0x3000, scoped, tag = 'scratch operand']
  #allocation3 [shape = 'f32[80,128]{1,0:T(8,128)}', space=vmem, size = 0xa000, scoped, tag = 'scratch operand']
  #allocation4 [shape = 'f32[280,64]{1,0:T(8,128)}', space=vmem, size = 0x23000, scoped, tag = 'scratch operand']
  #allocation5 [shape = 'f32[1,1]{1,0:T(1,128)S(1)}', space=vmem, size = 0x200, scoped, tag = 'scoped memory for decoder_forward.1']
  %s0 = inlined_call_operand.vmem [shape: f32[2,2], index: 0, kind: input, shape index: {}]
  %s1 = inlined_call_operand.vmem [shape: f32[2,16,128], index: 1, kind: input, shape index: {}]
  %s2 = inlined_call_operand.vmem [shape: f32[16,128], index: 2, kind: input, shape index: {}]
  %s3 = inlined_call_operand.hbm [shape: bf16[512,512], index: 3, kind: input, shape index: {}]
  %s4 = inlined_call_operand.vmem [shape: f32[1,128], index: 4, kind: input, shape index: {}]
  %s5 = inlined_call_operand.vmem [shape: f32[2,64,16], index: 5, kind: input, shape index: {}]
  %s6 = inlined_call_operand.vmem [shape: bf16[512,256], index: 6, kind: input, shape index: {}]
  %s7 = inlined_call_operand.vmem [shape: f32[1,64], index: 7, kind: input, shape index: {}]
  %s8 = inlined_call_operand.vmem [shape: f32[2,256,64], index: 8, kind: input, shape index: {}]
  %s9 = inlined_call_operand.vmem [shape: bf16[256,128], index: 9, kind: input, shape index: {}]
  %s10 = inlined_call_operand.vmem [shape: f32[1,128], index: 10, kind: input, shape index: {}]
  %s11 = inlined_call_operand.vmem [shape: f32[9,8,128], index: 11, kind: input, shape index: {}]
  %s12 = inlined_call_operand.<no memory space> [shape: f32[1,1], index: 12, kind: input, shape index: {}]
  %s13 = inlined_call_operand.vmem [shape: f32[2,4,256], index: 13, kind: output, shape index: {}]
  %s14 = sld [smem:[#allocation0]]
  $region93: #{decoder_forward.1} parent=0
    _
  %s16 = ssub.s32 1, %s14
  %s17 = scalar_select 0, %s16, %s14
  %v18 = vstv %s12
  %19 = vst [vmem:[#allocation5] sm:$0x1] %v18
  $region1: #{decoder_forward.1} parent=0
    #allocation6 [shape = 'u8[1024]{0}', space=smem, size = 0x400, scoped, tag = 'input window, operand 0, single buffered']
    #allocation7 [shape = 's32[2]{0}', space=sflag, size = 0x8, scoped, tag = 'scoped memory for decoder_forward.1']
    #allocation8 [shape = 's32[2]{0}', space=sflag, size = 0x8, scoped, tag = 'scoped memory for decoder_forward.1']
    #allocation9 [shape = 'u8[524288]{0}', space=vmem, size = 0x80000, scoped, tag = 'input window, operand 3, single buffered']
    %20 = vsyncpa [#allocation8], 0
    %21 = vsyncpa [#allocation7], 0
    loop: start=0, step=1, limit=4
    $region2: #{decoder_forward.1} parent=1 // loop_pre_header
      _
    $region3: #{decoder_forward.1} parent=1 // loop_header
      %s23 = sphi 0, %s27
      %p24 = scmp.ge.s32.totalorder %s23, 4
      %s31 = sphi 0, %s31
      %s33 = sphi 0, %s31
      %s34 = sphi 0, %s33
      %s48 = sphi 0, %s34
      %s52 = sphi 0, %s52
      %s54 = sphi 0, %s52
      %s55 = sphi 0, %s54
      %s69 = sphi 0, %s55
      %s73 = sphi 0, %s73
      %s75 = sphi 0, %s73
      %s76 = sphi 0, %s75
      %s90 = sphi 0, %s76
      %s94 = sphi 0, %s94
      %s96 = sphi 0, %s94
      %s97 = sphi 0, %s96
      %s111 = sphi 0, %s97
      %s115 = sphi 0, %s115
      %s117 = sphi 0, %s115
      %s118 = sphi 0, %s117
      %s132 = sphi 0, %s118
      %s136 = sphi 0, %s136
      %s138 = sphi 0, %s136
      %s139 = sphi 0, %s138
      %s153 = sphi 0, %s139
      %s157 = sphi 0, %s157
      %s159 = sphi 0, %s157
      %s160 = sphi 0, %s159
      %s174 = sphi 0, %s160
      %s178 = sphi 0, %s178
      %s180 = sphi 0, %s178
      %s181 = sphi 0, %s180
      %s195 = sphi 0, %s181
      %s199 = sphi 0, %s199
      %s201 = sphi 0, %s199
      %s202 = sphi 0, %s201
      %s216 = sphi 0, %s202
      %s220 = sphi 0, %s220
      %s222 = sphi 0, %s220
      %s223 = sphi 0, %s222
      %s237 = sphi 0, %s223
      %s241 = sphi 0, %s241
      %s243 = sphi 0, %s241
      %s244 = sphi 0, %s243
      %s258 = sphi 0, %s244
      %s262 = sphi 0, %s262
      %s264 = sphi 0, %s262
      %s265 = sphi 0, %s264
      %s279 = sphi 0, %s265
      %s283 = sphi 0, %s283
      %s285 = sphi 0, %s283
      %s286 = sphi 0, %s285
      %s300 = sphi 0, %s286
      %s306 = sphi 0, %s308
      %s309 = sphi 0, %s306
      %s310 = sphi 0, %s309
      %s326 = sphi 0, %s310
    $region4: #{decoder_forward.1} parent=1 // loop_header_branch
      %26 = sbr.rel (%p24) target = $region8
    $region5: #{decoder_forward.1} parent=1 // loop_body
      %s28 = ssub.s32 %s23, 1
      %s29 = ssub.s32 %s23, 2
      %s30 = sadd.s32 %s23, 1
      %s32 = sadd.s32 %s31, 1
      %p35 = scmp.eq.s32.totalorder %s23, 1
      %p36 = scmp.ne.s32.totalorder %s31, %s33
      %p37 = scmp.eq.s32.totalorder %s23, 0
      %p38 = por %p36, %p37
      %p39 = scmp.ne.s32.totalorder %s31, %s33
      %p40 = scmp.eq.s32.totalorder %s28, 1
      %p41 = por %p39, %p40
      %p42 = scmp.ne.s32.totalorder %s33, %s34
      %p43 = scmp.eq.s32.totalorder %s28, 0
      %p44 = por %p42, %p43
      %p45 = scmp.ne.s32.totalorder %s33, %s34
      %p46 = scmp.eq.s32.totalorder %s29, 1
      %p47 = por %p45, %p46
      %p49 = scmp.ne.s32.totalorder %s34, %s48
      %p50 = scmp.eq.s32.totalorder %s29, 0
      %p51 = por %p49, %p50
      %s53 = sadd.s32 %s52, 1
      %p56 = scmp.eq.s32.totalorder %s23, 1
      %p57 = scmp.ne.s32.totalorder %s52, %s54
      %p58 = scmp.eq.s32.totalorder %s23, 0
      %p59 = por %p57, %p58
      %p60 = scmp.ne.s32.totalorder %s52, %s54
      %p61 = scmp.eq.s32.totalorder %s28, 1
      %p62 = por %p60, %p61
      %p63 = scmp.ne.s32.totalorder %s54, %s55
      %p64 = scmp.eq.s32.totalorder %s28, 0
      %p65 = por %p63, %p64
      %p66 = scmp.ne.s32.totalorder %s54, %s55
      %p67 = scmp.eq.s32.totalorder %s29, 1
      %p68 = por %p66, %p67
      %p70 = scmp.ne.s32.totalorder %s55, %s69
      %p71 = scmp.eq.s32.totalorder %s29, 0
      %p72 = por %p70, %p71
      %s74 = sadd.s32 %s73, 1
      %p77 = scmp.eq.s32.totalorder %s23, 1
      %p78 = scmp.ne.s32.totalorder %s73, %s75
      %p79 = scmp.eq.s32.totalorder %s23, 0
      %p80 = por %p78, %p79
      %p81 = scmp.ne.s32.totalorder %s73, %s75
      %p82 = scmp.eq.s32.totalorder %s28, 1
      %p83 = por %p81, %p82
      %p84 = scmp.ne.s32.totalorder %s75, %s76
      %p85 = scmp.eq.s32.totalorder %s28, 0
      %p86 = por %p84, %p85
      %p87 = scmp.ne.s32.totalorder %s75, %s76
      %p88 = scmp.eq.s32.totalorder %s29, 1
      %p89 = por %p87, %p88
      %p91 = scmp.ne.s32.totalorder %s76, %s90
      %p92 = scmp.eq.s32.totalorder %s29, 0
      %p93 = por %p91, %p92
      %s95 = sadd.s32 %s94, 1
      %p98 = scmp.eq.s32.totalorder %s23, 1
      %p99 = scmp.ne.s32.totalorder %s94, %s96
      %p100 = scmp.eq.s32.totalorder %s23, 0
      %p101 = por %p99, %p100
      %p102 = scmp.ne.s32.totalorder %s94, %s96
      %p103 = scmp.eq.s32.totalorder %s28, 1
      %p104 = por %p102, %p103
      %p105 = scmp.ne.s32.totalorder %s96, %s97
      %p106 = scmp.eq.s32.totalorder %s28, 0
      %p107 = por %p105, %p106
      %p108 = scmp.ne.s32.totalorder %s96, %s97
      %p109 = scmp.eq.s32.totalorder %s29, 1
      %p110 = por %p108, %p109
      %p112 = scmp.ne.s32.totalorder %s97, %s111
      %p113 = scmp.eq.s32.totalorder %s29, 0
      %p114 = por %p112, %p113
      %s116 = sadd.s32 %s115, 1
      %p119 = scmp.eq.s32.totalorder %s23, 1
      %p120 = scmp.ne.s32.totalorder %s115, %s117
      %p121 = scmp.eq.s32.totalorder %s23, 0
      %p122 = por %p120, %p121
      %p123 = scmp.ne.s32.totalorder %s115, %s117
      %p124 = scmp.eq.s32.totalorder %s28, 1
      %p125 = por %p123, %p124
      %p126 = scmp.ne.s32.totalorder %s117, %s118
      %p127 = scmp.eq.s32.totalorder %s28, 0
      %p128 = por %p126, %p127
      %p129 = scmp.ne.s32.totalorder %s117, %s118
      %p130 = scmp.eq.s32.totalorder %s29, 1
      %p131 = por %p129, %p130
      %p133 = scmp.ne.s32.totalorder %s118, %s132
      %p134 = scmp.eq.s32.totalorder %s29, 0
      %p135 = por %p133, %p134
      %s137 = sadd.s32 %s136, 1
      %p140 = scmp.eq.s32.totalorder %s23, 1
      %p141 = scmp.ne.s32.totalorder %s136, %s138
      %p142 = scmp.eq.s32.totalorder %s23, 0
      %p143 = por %p141, %p142
      %p144 = scmp.ne.s32.totalorder %s136, %s138
      %p145 = scmp.eq.s32.totalorder %s28, 1
      %p146 = por %p144, %p145
      %p147 = scmp.ne.s32.totalorder %s138, %s139
      %p148 = scmp.eq.s32.totalorder %s28, 0
      %p149 = por %p147, %p148
      %p150 = scmp.ne.s32.totalorder %s138, %s139
      %p151 = scmp.eq.s32.totalorder %s29, 1
      %p152 = por %p150, %p151
      %p154 = scmp.ne.s32.totalorder %s139, %s153
      %p155 = scmp.eq.s32.totalorder %s29, 0
      %p156 = por %p154, %p155
      %s158 = sadd.s32 %s157, 1
      %p161 = scmp.eq.s32.totalorder %s23, 1
      %p162 = scmp.ne.s32.totalorder %s157, %s159
      %p163 = scmp.eq.s32.totalorder %s23, 0
      %p164 = por %p162, %p163
      %p165 = scmp.ne.s32.totalorder %s157, %s159
      %p166 = scmp.eq.s32.totalorder %s28, 1
      %p167 = por %p165, %p166
      %p168 = scmp.ne.s32.totalorder %s159, %s160
      %p169 = scmp.eq.s32.totalorder %s28, 0
      %p170 = por %p168, %p169
      %p171 = scmp.ne.s32.totalorder %s159, %s160
      %p172 = scmp.eq.s32.totalorder %s29, 1
      %p173 = por %p171, %p172
      %p175 = scmp.ne.s32.totalorder %s160, %s174
      %p176 = scmp.eq.s32.totalorder %s29, 0
      %p177 = por %p175, %p176
      %s179 = sadd.s32 %s178, 1
      %p182 = scmp.eq.s32.totalorder %s23, 1
      %p183 = scmp.ne.s32.totalorder %s178, %s180
      %p184 = scmp.eq.s32.totalorder %s23, 0
      %p185 = por %p183, %p184
      %p186 = scmp.ne.s32.totalorder %s178, %s180
      %p187 = scmp.eq.s32.totalorder %s28, 1
      %p188 = por %p186, %p187
      %p189 = scmp.ne.s32.totalorder %s180, %s181
      %p190 = scmp.eq.s32.totalorder %s28, 0
      %p191 = por %p189, %p190
      %p192 = scmp.ne.s32.totalorder %s180, %s181
      %p193 = scmp.eq.s32.totalorder %s29, 1
      %p194 = por %p192, %p193
      %p196 = scmp.ne.s32.totalorder %s181, %s195
      %p197 = scmp.eq.s32.totalorder %s29, 0
      %p198 = por %p196, %p197
      %s200 = sadd.s32 %s199, 1
      %p203 = scmp.eq.s32.totalorder %s23, 1
      %p204 = scmp.ne.s32.totalorder %s199, %s201
      %p205 = scmp.eq.s32.totalorder %s23, 0
      %p206 = por %p204, %p205
      %p207 = scmp.ne.s32.totalorder %s199, %s201
      %p208 = scmp.eq.s32.totalorder %s28, 1
      %p209 = por %p207, %p208
      %p210 = scmp.ne.s32.totalorder %s201, %s202
      %p211 = scmp.eq.s32.totalorder %s28, 0
      %p212 = por %p210, %p211
      %p213 = scmp.ne.s32.totalorder %s201, %s202
      %p214 = scmp.eq.s32.totalorder %s29, 1
      %p215 = por %p213, %p214
      %p217 = scmp.ne.s32.totalorder %s202, %s216
      %p218 = scmp.eq.s32.totalorder %s29, 0
      %p219 = por %p217, %p218
      %s221 = sadd.s32 %s220, 1
      %p224 = scmp.eq.s32.totalorder %s23, 1
      %p225 = scmp.ne.s32.totalorder %s220, %s222
      %p226 = scmp.eq.s32.totalorder %s23, 0
      %p227 = por %p225, %p226
      %p228 = scmp.ne.s32.totalorder %s220, %s222
      %p229 = scmp.eq.s32.totalorder %s28, 1
      %p230 = por %p228, %p229
      %p231 = scmp.ne.s32.totalorder %s222, %s223
      %p232 = scmp.eq.s32.totalorder %s28, 0
      %p233 = por %p231, %p232
      %p234 = scmp.ne.s32.totalorder %s222, %s223
      %p235 = scmp.eq.s32.totalorder %s29, 1
      %p236 = por %p234, %p235
      %p238 = scmp.ne.s32.totalorder %s223, %s237
      %p239 = scmp.eq.s32.totalorder %s29, 0
      %p240 = por %p238, %p239
      %s242 = sadd.s32 %s241, 1
      %p245 = scmp.eq.s32.totalorder %s23, 1
      %p246 = scmp.ne.s32.totalorder %s241, %s243
      %p247 = scmp.eq.s32.totalorder %s23, 0
      %p248 = por %p246, %p247
      %p249 = scmp.ne.s32.totalorder %s241, %s243
      %p250 = scmp.eq.s32.totalorder %s28, 1
      %p251 = por %p249, %p250
      %p252 = scmp.ne.s32.totalorder %s243, %s244
      %p253 = scmp.eq.s32.totalorder %s28, 0
      %p254 = por %p252, %p253
      %p255 = scmp.ne.s32.totalorder %s243, %s244
      %p256 = scmp.eq.s32.totalorder %s29, 1
      %p257 = por %p255, %p256
      %p259 = scmp.ne.s32.totalorder %s244, %s258
      %p260 = scmp.eq.s32.totalorder %s29, 0
      %p261 = por %p259, %p260
      %s263 = sadd.s32 %s262, 1
      %p266 = scmp.eq.s32.totalorder %s23, 1
      %p267 = scmp.ne.s32.totalorder %s262, %s264
      %p268 = scmp.eq.s32.totalorder %s23, 0
      %p269 = por %p267, %p268
      %p270 = scmp.ne.s32.totalorder %s262, %s264
      %p271 = scmp.eq.s32.totalorder %s28, 1
      %p272 = por %p270, %p271
      %p273 = scmp.ne.s32.totalorder %s264, %s265
      %p274 = scmp.eq.s32.totalorder %s28, 0
      %p275 = por %p273, %p274
      %p276 = scmp.ne.s32.totalorder %s264, %s265
      %p277 = scmp.eq.s32.totalorder %s29, 1
      %p278 = por %p276, %p277
      %p280 = scmp.ne.s32.totalorder %s265, %s279
      %p281 = scmp.eq.s32.totalorder %s29, 0
      %p282 = por %p280, %p281
      %s284 = sadd.s32 %s283, 1
      %p287 = scmp.eq.s32.totalorder %s23, 1
      %p288 = scmp.ne.s32.totalorder %s283, %s285
      %p289 = scmp.eq.s32.totalorder %s23, 0
      %p290 = por %p288, %p289
      %p291 = scmp.ne.s32.totalorder %s283, %s285
      %p292 = scmp.eq.s32.totalorder %s28, 1
      %p293 = por %p291, %p292
      %p294 = scmp.ne.s32.totalorder %s285, %s286
      %p295 = scmp.eq.s32.totalorder %s28, 0
      %p296 = por %p294, %p295
      %p297 = scmp.ne.s32.totalorder %s285, %s286
      %p298 = scmp.eq.s32.totalorder %s29, 1
      %p299 = por %p297, %p298
      %p301 = scmp.ne.s32.totalorder %s286, %s300
      %p302 = scmp.eq.s32.totalorder %s29, 0
      %p303 = por %p301, %p302
      %s304 = ssub.s32 %s23, %s30
      %p305 = scmp.eq.s32.totalorder %s304, 0
      %s307 = sadd.s32 %s306, 1
      %s308 = scalar_select %p305, %s306, %s307
      %p311 = pneg %p305
      %p312 = scmp.eq.s32.totalorder %s23, 1
      %p313 = por %p311, %p312
      %p314 = scmp.ne.s32.totalorder %s306, %s309
      %p315 = scmp.eq.s32.totalorder %s23, 0
      %p316 = por %p314, %p315
      %p317 = scmp.ne.s32.totalorder %s306, %s309
      %p318 = scmp.eq.s32.totalorder %s28, 1
      %p319 = por %p317, %p318
      %p320 = scmp.ne.s32.totalorder %s309, %s310
      %p321 = scmp.eq.s32.totalorder %s28, 0
      %p322 = por %p320, %p321
      %p323 = scmp.ne.s32.totalorder %s309, %s310
      %p324 = scmp.eq.s32.totalorder %s29, 1
      %p325 = por %p323, %p324
      %p327 = scmp.ne.s32.totalorder %s310, %s326
      %p328 = scmp.eq.s32.totalorder %s29, 0
      %p329 = por %p327, %p328
      %p330 = scmp.le.s32.totalorder 1, %s23
      %p331 = scmp.lt.s32.totalorder %s23, 3
      %p332 = pnand %p330, %p331
      %p333 = pneg %p332
      // Predicated region
      $region9: #{decoder_forward.1} parent=5 // pred_check
        _
      $region10: #{decoder_forward.1} parent=5 // pred_check_branch
        %335 = sbr.rel (%p332) target = $region12
      $region11: #{decoder_forward.1} parent=5 // pred_region
        %s336 = ssub.s32 %s23, 1
        // Predicated region
        $region13: #{decoder_forward.1} parent=11 // pred_check
          %p337 = pneg %p44
        $region14: #{decoder_forward.1} parent=11 // pred_check_branch
          %339 = sbr.rel (%p337) target = $region16
        $region15: #{decoder_forward.1} parent=11 // pred_region
          %341 = vsyncadd [#allocation8], 0
          %s343 = sshll.u32 %s0, 4
          %s344 = int_to_ptr.vmem [resolvable:$true] %s343
          %346 = dma.vmem_to_smem %s344, 32, [#allocation6], [#allocation8]
        $region16: #{decoder_forward.1} parent=11 // pred_fallthru
          _
        // Predicated region
        $region17: #{decoder_forward.1} parent=11 // pred_check
          %p347 = pneg %p65
        $region18: #{decoder_forward.1} parent=11 // pred_check_branch
          %349 = sbr.rel (%p347) target = $region20
        $region19: #{decoder_forward.1} parent=11 // pred_region
          _
        $region20: #{decoder_forward.1} parent=11 // pred_fallthru
          _
        // Predicated region
        $region21: #{decoder_forward.1} parent=11 // pred_check
          %p350 = pneg %p86
        $region22: #{decoder_forward.1} parent=11 // pred_check_branch
          %352 = sbr.rel (%p350) target = $region24
        $region23: #{decoder_forward.1} parent=11 // pred_region
          _
        $region24: #{decoder_forward.1} parent=11 // pred_fallthru
          _
        // Predicated region
        $region25: #{decoder_forward.1} parent=11 // pred_check
          %p353 = pneg %p107
        $region26: #{decoder_forward.1} parent=11 // pred_check_branch
          %355 = sbr.rel (%p353) target = $region28
        $region27: #{decoder_forward.1} parent=11 // pred_region
          %357 = vsyncadd [#allocation7], 0
          %s358 = sshll.u32 %s3, 4
          %s359 = int_to_ptr.hbm [resolvable:$true] %s358
          %s360 = sshll.u32 [#allocation9], 4
          %s361 = int_to_ptr.vmem [resolvable:$true] %s360
          %366 = dma.hbm_to_vmem [thread:$0]  %s359, 16384, %s361, [#allocation7], 256, 256, 16
        $region28: #{decoder_forward.1} parent=11 // pred_fallthru
          _
        // Predicated region
        $region29: #{decoder_forward.1} parent=11 // pred_check
          %p367 = pneg %p128
        $region30: #{decoder_forward.1} parent=11 // pred_check_branch
          %369 = sbr.rel (%p367) target = $region32
        $region31: #{decoder_forward.1} parent=11 // pred_region
          _
        $region32: #{decoder_forward.1} parent=11 // pred_fallthru
          _
        // Predicated region
        $region33: #{decoder_forward.1} parent=11 // pred_check
          %p370 = pneg %p149
        $region34: #{decoder_forward.1} parent=11 // pred_check_branch
          %372 = sbr.rel (%p370) target = $region36
        $region35: #{decoder_forward.1} parent=11 // pred_region
          _
        $region36: #{decoder_forward.1} parent=11 // pred_fallthru
          _
        // Predicated region
        $region37: #{decoder_forward.1} parent=11 // pred_check
          %p373 = pneg %p170
        $region38: #{decoder_forward.1} parent=11 // pred_check_branch
          %375 = sbr.rel (%p373) target = $region40
        $region39: #{decoder_forward.1} parent=11 // pred_region
          _
        $region40: #{decoder_forward.1} parent=11 // pred_fallthru
          _
        // Predicated region
        $region41: #{decoder_forward.1} parent=11 // pred_check
          %p376 = pneg %p191
        $region42: #{decoder_forward.1} parent=11 // pred_check_branch
          %378 = sbr.rel (%p376) target = $region44
        $region43: #{decoder_forward.1} parent=11 // pred_region
          _
        $region44: #{decoder_forward.1} parent=11 // pred_fallthru
          _
        // Predicated region
        $region45: #{decoder_forward.1} parent=11 // pred_check
          %p379 = pneg %p212
        $region46: #{decoder_forward.1} parent=11 // pred_check_branch
          %381 = sbr.rel (%p379) target = $region48
        $region47: #{decoder_forward.1} parent=11 // pred_region
          _
        $region48: #{decoder_forward.1} parent=11 // pred_fallthru
          _
        // Predicated region
        $region49: #{decoder_forward.1} parent=11 // pred_check
          %p382 = pneg %p233
        $region50: #{decoder_forward.1} parent=11 // pred_check_branch
          %384 = sbr.rel (%p382) target = $region52
        $region51: #{decoder_forward.1} parent=11 // pred_region
          _
        $region52: #{decoder_forward.1} parent=11 // pred_fallthru
          _
        // Predicated region
        $region53: #{decoder_forward.1} parent=11 // pred_check
          %p385 = pneg %p254
        $region54: #{decoder_forward.1} parent=11 // pred_check_branch
          %387 = sbr.rel (%p385) target = $region56
        $region55: #{decoder_forward.1} parent=11 // pred_region
          _
        $region56: #{decoder_forward.1} parent=11 // pred_fallthru
          _
        // Predicated region
        $region57: #{decoder_forward.1} parent=11 // pred_check
          %p388 = pneg %p275
        $region58: #{decoder_forward.1} parent=11 // pred_check_branch
          %390 = sbr.rel (%p388) target = $region60
        $region59: #{decoder_forward.1} parent=11 // pred_region
          _
        $region60: #{decoder_forward.1} parent=11 // pred_fallthru
          _
        // Predicated region
        $region61: #{decoder_forward.1} parent=11 // pred_check
          %p391 = pneg %p296
        $region62: #{decoder_forward.1} parent=11 // pred_check_branch
          %393 = sbr.rel (%p391) target = $region64
        $region63: #{decoder_forward.1} parent=11 // pred_region
          _
        $region64: #{decoder_forward.1} parent=11 // pred_fallthru
          _
      $region12: #{decoder_forward.1} parent=5 // pred_fallthru
        _
      %p394 = scmp.lt.s32.totalorder %s23, 2
      // Predicated region
      $region65: #{decoder_forward.1} parent=5 // pred_check
        %p395 = pneg %p394
      $region66: #{decoder_forward.1} parent=5 // pred_check_branch
        %397 = sbr.rel (%p395) target = $region68
      $region67: #{decoder_forward.1} parent=5 // pred_region
        _
      $region68: #{decoder_forward.1} parent=5 // pred_fallthru
        _
      %p398 = scmp.le.s32.totalorder 1, %s23
      %p399 = scmp.lt.s32.totalorder %s23, 3
      %p400 = pnand %p398, %p399
      %p401 = pneg %p400
      // Predicated region
      $region69: #{decoder_forward.1} parent=5 // pred_check
        _
      $region70: #{decoder_forward.1} parent=5 // pred_check_branch
        %403 = sbr.rel (%p400) target = $region72
      $region71: #{decoder_forward.1} parent=5 // pred_region
        %s404 = ssub.s32 %s23, 1
        // Predicated region
        $region73: #{decoder_forward.1} parent=71 // pred_check
          %p405 = pneg %p44
        $region74: #{decoder_forward.1} parent=71 // pred_check_branch
          %407 = sbr.rel (%p405) target = $region76
        $region75: #{decoder_forward.1} parent=71 // pred_region
          %409 = dma.done [#allocation8], 32
        $region76: #{decoder_forward.1} parent=71 // pred_fallthru
          _
        // Predicated region
        $region77: #{decoder_forward.1} parent=71 // pred_check
          %p410 = pneg %p107
        $region78: #{decoder_forward.1} parent=71 // pred_check_branch
          %412 = sbr.rel (%p410) target = $region80
        $region79: #{decoder_forward.1} parent=71 // pred_region
          %414 = dma.done [#allocation7], 16384
        $region80: #{decoder_forward.1} parent=71 // pred_fallthru
          _
        %415 = sfence
        %p416 = pneg %p44
        %p417 = pneg %p41
        %p418 = pneg %p65
        %p419 = pneg %p62
        %p420 = pneg %p86
        %p421 = pneg %p83
        %p422 = pneg %p107
        %p423 = pneg %p104
        %p424 = pneg %p128
        %p425 = pneg %p125
        %p426 = pneg %p149
        %p427 = pneg %p146
        %p428 = pneg %p170
        %p429 = pneg %p167
        %p430 = pneg %p191
        %p431 = pneg %p188
        %p432 = pneg %p212
        %p433 = pneg %p209
        %p434 = pneg %p233
        %p435 = pneg %p230
        %p436 = pneg %p254
        %p437 = pneg %p251
        %p438 = pneg %p275
        %p439 = pneg %p272
        %p440 = pneg %p296
        %p441 = pneg %p293
        %p442 = pneg %p322
        %p443 = pneg %p319
        %p444 = scmp.lt.s32.totalorder %s28, 1
        %s445 = scalar_select %p444, %s28, 1
        %s446 = smul.addr %s445, 2
        %s447 = smul.addr %s446, 4
        %s448 = scalar_lea.vmem %s13, %s447
        %p449 = scmp.lt.s32.totalorder %s28, 1
        %s450 = scalar_select %p449, %s28, 1
        %s451 = smul.addr %s450, 2
        %s452 = smul.addr %s451, 4
        %s453 = scalar_lea.vmem %s13, %s452
        %454 = vst [vmem:[#allocation2 + $0x10] sm:$0xff] 0.0
        %455 = vst [vmem:[#allocation3 + $0x40] sm:$0xff] 0.0
        %456 = vst [vmem:[#allocation3 + $0x48] sm:$0xff] 0.0
        %vm457 = vcmask 523264
        %458 = vst.msk [vmem:[#allocation4 + $0x100] sm:$0xff] %vm457, 0.0
        %459 = vst.msk [vmem:[#allocation4 + $0x108] sm:$0xff] %vm457, 0.0
        %460 = vst.msk [vmem:[#allocation4 + $0x110] sm:$0xff] %vm457, 0.0
        %s461 = smul.u32 %s28, 128
        %s462 = sld [smem:[#allocation6 + %s461]]
        %s463 = sadd.s32 %s461, 1
        %s464 = sld [smem:[#allocation6 + %s463]]
        %v465 = vld [vmem:[%s1] sm:$0xff]
        %v466 = vld [vmem:[%s1 + $0x8] sm:$0xff]
        %v467 = vstv %s462
        %v468 = vmul.f32 %v467, %v465
        %v469 = vmul.f32 %v467, %v466
        %s470 = scalar_lea.vmem %s1, 16
        %v471 = vld [vmem:[%s470] sm:$0xff]
        %v472 = vld [vmem:[%s470 + $0x8] sm:$0xff]
        %v473 = vstv %s464
        %v474 = vmul.f32 %v473, %v471
        %v475 = vmul.f32 %v473, %v472
        %v476 = vadd.f32 %v468, %v474
        %v477 = vadd.f32 %v469, %v475
        %v478 = vld [vmem:[%s2] sm:$0xff]
        %v479 = vld [vmem:[%s2 + $0x8] sm:$0xff]
        %v480 = vadd.f32 %v476, %v478
        %v481 = vadd.f32 %v477, %v479
        %482 = vst [vmem:[#allocation2] sm:$0xff] %v480
        %483 = vst [vmem:[#allocation2 + $0x8] sm:$0xff] %v481
        %v484 = vlaneseq
        %v485 = vshrl.u32 %v484, 7
        %v486 = vadd.s32 %v485, 8
        %v487 = vand.u32 %v485, 3
        %v488 = vand.u32 %v486, 3
        %vm489 = vcmp.ne.s32.totalorder %v487, 3
        %vm490 = vcmp.ne.s32.totalorder %v488, 3
        %v491 = vsel %vm489, 1, 0
        %v492 = vsel %vm490, 1, 0
        %v493 = vcvt.s32.f32 %v491
        %v494 = vcvt.s32.f32 %v492
        %v495 = vld [vmem:[#allocation2] sm:$0xff]
        %v496 = vld [vmem:[#allocation2 + $0x8] sm:$0xff]
        %v497 = vld [vmem:[#allocation2 + $0x1] sm:$0xff]
        %v498 = vld [vmem:[#allocation2 + $0x9] sm:$0xff]
        %v499 = vmul.f32 %v497, %v493
        %v500 = vmul.f32 %v498, %v494
        %v501 = vld [vmem:[#allocation2 + $0x4] sm:$0xff]
        %v502 = vld [vmem:[#allocation2 + $0xc] sm:$0xff]
        %v503 = vld [vmem:[#allocation2 + $0x5] sm:$0xff]
        %v504 = vld [vmem:[#allocation2 + $0xd] sm:$0xff]
        %v505 = vmul.f32 %v503, %v493
        %v506 = vmul.f32 %v504, %v494
        %v507 = vpack.c.bf16 %v496, %v495
        %v508 = vpack.c.bf16 %v500, %v499
        %v509 = vpack.c.bf16 %v502, %v501
        %v510 = vpack.c.bf16 %v506, %v505
        %v511 = vld [vmem:[#allocation9] sm:$0xff]
        %v512 = vld [vmem:[#allocation9 + $0x8] sm:$0xff]
        %v513 = vld [vmem:[#allocation9 + $0x10] sm:$0xff]
        %v514 = vld [vmem:[#allocation9 + $0x18] sm:$0xff]
        %v515 = vld [vmem:[#allocation9 + $0x20] sm:$0xff]
        %v516 = vld [vmem:[#allocation9 + $0x28] sm:$0xff]
        %v517 = vld [vmem:[#allocation9 + $0x30] sm:$0xff]
        %v518 = vld [vmem:[#allocation9 + $0x38] sm:$0xff]
        %v519 = vld [vmem:[#allocation9 + $0x40] sm:$0xff]
        %v520 = vld [vmem:[#allocation9 + $0x48] sm:$0xff]
        %v521 = vld [vmem:[#allocation9 + $0x50] sm:$0xff]
        %v522 = vld [vmem:[#allocation9 + $0x58] sm:$0xff]
        %v523 = vld [vmem:[#allocation9 + $0x60] sm:$0xff]
        %v524 = vld [vmem:[#allocation9 + $0x68] sm:$0xff]
        %v525 = vld [vmem:[#allocation9 + $0x70] sm:$0xff]
        %v526 = vld [vmem:[#allocation9 + $0x78] sm:$0xff]
        %v527 = vld [vmem:[#allocation9 + $0x80] sm:$0xff]
        %v528 = vld [vmem:[#allocation9 + $0x88] sm:$0xff]
        %v529 = vld [vmem:[#allocation9 + $0x90] sm:$0xff]
        %v530 = vld [vmem:[#allocation9 + $0x98] sm:$0xff]
        %v531 = vld [vmem:[#allocation9 + $0xa0] sm:$0xff]
        %v532 = vld [vmem:[#allocation9 + $0xa8] sm:$0xff]
        %v533 = vld [vmem:[#allocation9 + $0xb0] sm:$0xff]
        %v534 = vld [vmem:[#allocation9 + $0xb8] sm:$0xff]
        %v535 = vld [vmem:[#allocation9 + $0xc0] sm:$0xff]
        %v536 = vld [vmem:[#allocation9 + $0xc8] sm:$0xff]
        %v537 = vld [vmem:[#allocation9 + $0xd0] sm:$0xff]
        %v538 = vld [vmem:[#allocation9 + $0xd8] sm:$0xff]
        %v539 = vld [vmem:[#allocation9 + $0xe0] sm:$0xff]
        %v540 = vld [vmem:[#allocation9 + $0xe8] sm:$0xff]
        %v541 = vld [vmem:[#allocation9 + $0xf0] sm:$0xff]
        %v542 = vld [vmem:[#allocation9 + $0xf8] sm:$0xff]
        %v543 = vld [vmem:[#allocation9 + $0x100] sm:$0xff]
        %v544 = vld [vmem:[#allocation9 + $0x108] sm:$0xff]
        %v545 = vld [vmem:[#allocation9 + $0x110] sm:$0xff]
        %v546 = vld [vmem:[#allocation9 + $0x118] sm:$0xff]
        %v547 = vld [vmem:[#allocation9 + $0x120] sm:$0xff]
        %v548 = vld [vmem:[#allocation9 + $0x128] sm:$0xff]
        %v549 = vld [vmem:[#allocation9 + $0x130] sm:$0xff]
        %v550 = vld [vmem:[#allocation9 + $0x138] sm:$0xff]
        %v551 = vld [vmem:[#allocation9 + $0x140] sm:$0xff]
        %v552 = vld [vmem:[#allocation9 + $0x148] sm:$0xff]
        %v553 = vld [vmem:[#allocation9 + $0x150] sm:$0xff]
        %v554 = vld [vmem:[#allocation9 + $0x158] sm:$0xff]
        %v555 = vld [vmem:[#allocation9 + $0x160] sm:$0xff]
        %v556 = vld [vmem:[#allocation9 + $0x168] sm:$0xff]
        %v557 = vld [vmem:[#allocation9 + $0x170] sm:$0xff]
        %v558 = vld [vmem:[#allocation9 + $0x178] sm:$0xff]
        %v559 = vld [vmem:[#allocation9 + $0x180] sm:$0xff]
        %v560 = vld [vmem:[#allocation9 + $0x188] sm:$0xff]
        %v561 = vld [vmem:[#allocation9 + $0x190] sm:$0xff]
        %v562 = vld [vmem:[#allocation9 + $0x198] sm:$0xff]
        %v563 = vld [vmem:[#allocation9 + $0x1a0] sm:$0xff]
        %v564 = vld [vmem:[#allocation9 + $0x1a8] sm:$0xff]
        %v565 = vld [vmem:[#allocation9 + $0x1b0] sm:$0xff]
        %v566 = vld [vmem:[#allocation9 + $0x1b8] sm:$0xff]
        %v567 = vld [vmem:[#allocation9 + $0x1c0] sm:$0xff]
        %v568 = vld [vmem:[#allocation9 + $0x1c8] sm:$0xff]
        %v569 = vld [vmem:[#allocation9 + $0x1d0] sm:$0xff]
        %v570 = vld [vmem:[#allocation9 + $0x1d8] sm:$0xff]
        %v571 = vld [vmem:[#allocation9 + $0x1e0] sm:$0xff]
        %v572 = vld [vmem:[#allocation9 + $0x1e8] sm:$0xff]
        %v573 = vld [vmem:[#allocation9 + $0x1f0] sm:$0xff]
        %v574 = vld [vmem:[#allocation9 + $0x1f8] sm:$0xff]
        %v575 = vld [vmem:[#allocation9 + $0x200] sm:$0xff]
        %v576 = vld [vmem:[#allocation9 + $0x208] sm:$0xff]
        %v577 = vld [vmem:[#allocation9 + $0x210] sm:$0xff]
        %v578 = vld [vmem:[#allocation9 + $0x218] sm:$0xff]
        %v579 = vld [vmem:[#allocation9 + $0x220] sm:$0xff]
        %v580 = vld [vmem:[#allocation9 + $0x228] sm:$0xff]
        %v581 = vld [vmem:[#allocation9 + $0x230] sm:$0xff]
        %v582 = vld [vmem:[#allocation9 + $0x238] sm:$0xff]
        %v583 = vld [vmem:[#allocation9 + $0x240] sm:$0xff]
        %v584 = vld [vmem:[#allocation9 + $0x248] sm:$0xff]
        %v585 = vld [vmem:[#allocation9 + $0x250] sm:$0xff]
        %v586 = vld [vmem:[#allocation9 + $0x258] sm:$0xff]
        %v587 = vld [vmem:[#allocation9 + $0x260] sm:$0xff]
        %v588 = vld [vmem:[#allocation9 + $0x268] sm:$0xff]
        %v589 = vld [vmem:[#allocation9 + $0x270] sm:$0xff]
        %v590 = vld [vmem:[#allocation9 + $0x278] sm:$0xff]
        %v591 = vld [vmem:[#allocation9 + $0x280] sm:$0xff]
        %v592 = vld [vmem:[#allocation9 + $0x288] sm:$0xff]
        %v593 = vld [vmem:[#allocation9 + $0x290] sm:$0xff]
        %v594 = vld [vmem:[#allocation9 + $0x298] sm:$0xff]
        %v595 = vld [vmem:[#allocation9 + $0x2a0] sm:$0xff]
        %v596 = vld [vmem:[#allocation9 + $0x2a8] sm:$0xff]
        %v597 = vld [vmem:[#allocation9 + $0x2b0] sm:$0xff]
        %v598 = vld [vmem:[#allocation9 + $0x2b8] sm:$0xff]
        %v599 = vld [vmem:[#allocation9 + $0x2c0] sm:$0xff]
        %v600 = vld [vmem:[#allocation9 + $0x2c8] sm:$0xff]
        %v601 = vld [vmem:[#allocation9 + $0x2d0] sm:$0xff]
        %v602 = vld [vmem:[#allocation9 + $0x2d8] sm:$0xff]
        %v603 = vld [vmem:[#allocation9 + $0x2e0] sm:$0xff]
        %v604 = vld [vmem:[#allocation9 + $0x2e8] sm:$0xff]
        %v605 = vld [vmem:[#allocation9 + $0x2f0] sm:$0xff]
        %v606 = vld [vmem:[#allocation9 + $0x2f8] sm:$0xff]
        %v607 = vld [vmem:[#allocation9 + $0x300] sm:$0xff]
        %v608 = vld [vmem:[#allocation9 + $0x308] sm:$0xff]
        %v609 = vld [vmem:[#allocation9 + $0x310] sm:$0xff]
        %v610 = vld [vmem:[#allocation9 + $0x318] sm:$0xff]
        %v611 = vld [vmem:[#allocation9 + $0x320] sm:$0xff]
        %v612 = vld [vmem:[#allocation9 + $0x328] sm:$0xff]
        %v613 = vld [vmem:[#allocation9 + $0x330] sm:$0xff]
        %v614 = vld [vmem:[#allocation9 + $0x338] sm:$0xff]
        %v615 = vld [vmem:[#allocation9 + $0x340] sm:$0xff]
        %v616 = vld [vmem:[#allocation9 + $0x348] sm:$0xff]
        %v617 = vld [vmem:[#allocation9 + $0x350] sm:$0xff]
        %v618 = vld [vmem:[#allocation9 + $0x358] sm:$0xff]
        %v619 = vld [vmem:[#allocation9 + $0x360] sm:$0xff]
        %v620 = vld [vmem:[#allocation9 + $0x368] sm:$0xff]
        %v621 = vld [vmem:[#allocation9 + $0x370] sm:$0xff]
        %v622 = vld [vmem:[#allocation9 + $0x378] sm:$0xff]
        %v623 = vld [vmem:[#allocation9 + $0x380] sm:$0xff]
        %v624 = vld [vmem:[#allocation9 + $0x388] sm:$0xff]
        %v625 = vld [vmem:[#allocation9 + $0x390] sm:$0xff]
        %v626 = vld [vmem:[#allocation9 + $0x398] sm:$0xff]
        %v627 = vld [vmem:[#allocation9 + $0x3a0] sm:$0xff]
        %v628 = vld [vmem:[#allocation9 + $0x3a8] sm:$0xff]
        %v629 = vld [vmem:[#allocation9 + $0x3b0] sm:$0xff]
        %v630 = vld [vmem:[#allocation9 + $0x3b8] sm:$0xff]
        %v631 = vld [vmem:[#allocation9 + $0x3c0] sm:$0xff]
        %v632 = vld [vmem:[#allocation9 + $0x3c8] sm:$0xff]
        %v633 = vld [vmem:[#allocation9 + $0x3d0] sm:$0xff]
        %v634 = vld [vmem:[#allocation9 + $0x3d8] sm:$0xff]
        %v635 = vld [vmem:[#allocation9 + $0x3e0] sm:$0xff]
        %v636 = vld [vmem:[#allocation9 + $0x3e8] sm:$0xff]
        %v637 = vld [vmem:[#allocation9 + $0x3f0] sm:$0xff]
        %v638 = vld [vmem:[#allocation9 + $0x3f8] sm:$0xff]
        %v767 = vunpack.c.l.b16 %v511
        %v768 = vunpack.c.h.b16 %v511
        %v769 = vunpack.c.l.b16 %v512
        %v770 = vunpack.c.h.b16 %v512
        %v771 = vunpack.c.l.b16 %v513
        %v772 = vunpack.c.h.b16 %v513
        %v773 = vunpack.c.l.b16 %v514
        %v774 = vunpack.c.h.b16 %v514
        %v775 = vunpack.c.l.b16 %v515
        %v776 = vunpack.c.h.b16 %v515
        %v777 = vunpack.c.l.b16 %v516
        %v778 = vunpack.c.h.b16 %v516
        %v779 = vunpack.c.l.b16 %v517
        %v780 = vunpack.c.h.b16 %v517
        %v781 = vunpack.c.l.b16 %v518
        %v782 = vunpack.c.h.b16 %v518
        %v783 = vunpack.c.l.b16 %v519
        %v784 = vunpack.c.h.b16 %v519
        %v785 = vunpack.c.l.b16 %v520
        %v786 = vunpack.c.h.b16 %v520
        %v787 = vunpack.c.l.b16 %v521
        %v788 = vunpack.c.h.b16 %v521
        %v789 = vunpack.c.l.b16 %v522
        %v790 = vunpack.c.h.b16 %v522
        %v791 = vunpack.c.l.b16 %v523
        %v792 = vunpack.c.h.b16 %v523
        %v793 = vunpack.c.l.b16 %v524
        %v794 = vunpack.c.h.b16 %v524
        %v795 = vunpack.c.l.b16 %v525
        %v796 = vunpack.c.h.b16 %v525
        %v797 = vunpack.c.l.b16 %v526
        %v798 = vunpack.c.h.b16 %v526
        %v799 = vunpack.c.l.b16 %v527
        %v800 = vunpack.c.h.b16 %v527
        %v801 = vunpack.c.l.b16 %v528
        %v802 = vunpack.c.h.b16 %v528
        %v803 = vunpack.c.l.b16 %v529
        %v804 = vunpack.c.h.b16 %v529
        %v805 = vunpack.c.l.b16 %v530
        %v806 = vunpack.c.h.b16 %v530
        %v807 = vunpack.c.l.b16 %v531
        %v808 = vunpack.c.h.b16 %v531
        %v809 = vunpack.c.l.b16 %v532
        %v810 = vunpack.c.h.b16 %v532
        %v811 = vunpack.c.l.b16 %v533
        %v812 = vunpack.c.h.b16 %v533
        %v813 = vunpack.c.l.b16 %v534
        %v814 = vunpack.c.h.b16 %v534
        %v815 = vunpack.c.l.b16 %v535
        %v816 = vunpack.c.h.b16 %v535
        %v817 = vunpack.c.l.b16 %v536
        %v818 = vunpack.c.h.b16 %v536
        %v819 = vunpack.c.l.b16 %v537
        %v820 = vunpack.c.h.b16 %v537
        %v821 = vunpack.c.l.b16 %v538
        %v822 = vunpack.c.h.b16 %v538
        %v823 = vunpack.c.l.b16 %v539
        %v824 = vunpack.c.h.b16 %v539
        %v825 = vunpack.c.l.b16 %v540
        %v826 = vunpack.c.h.b16 %v540
        %v827 = vunpack.c.l.b16 %v541
        %v828 = vunpack.c.h.b16 %v541
        %v829 = vunpack.c.l.b16 %v542
        %v830 = vunpack.c.h.b16 %v542
        %v831 = vunpack.c.l.b16 %v543
        %v832 = vunpack.c.h.b16 %v543
        %v833 = vunpack.c.l.b16 %v544
        %v834 = vunpack.c.h.b16 %v544
        %v835 = vunpack.c.l.b16 %v545
        %v836 = vunpack.c.h.b16 %v545
        %v837 = vunpack.c.l.b16 %v546
        %v838 = vunpack.c.h.b16 %v546
        %v839 = vunpack.c.l.b16 %v547
        %v840 = vunpack.c.h.b16 %v547
        %v841 = vunpack.c.l.b16 %v548
        %v842 = vunpack.c.h.b16 %v548
        %v843 = vunpack.c.l.b16 %v549
        %v844 = vunpack.c.h.b16 %v549
        %v845 = vunpack.c.l.b16 %v550
        %v846 = vunpack.c.h.b16 %v550
        %v847 = vunpack.c.l.b16 %v551
        %v848 = vunpack.c.h.b16 %v551
        %v849 = vunpack.c.l.b16 %v552
        %v850 = vunpack.c.h.b16 %v552
        %v851 = vunpack.c.l.b16 %v553
        %v852 = vunpack.c.h.b16 %v553
        %v853 = vunpack.c.l.b16 %v554
        %v854 = vunpack.c.h.b16 %v554
        %v855 = vunpack.c.l.b16 %v555
        %v856 = vunpack.c.h.b16 %v555
        %v857 = vunpack.c.l.b16 %v556
        %v858 = vunpack.c.h.b16 %v556
        %v859 = vunpack.c.l.b16 %v557
        %v860 = vunpack.c.h.b16 %v557
        %v861 = vunpack.c.l.b16 %v558
        %v862 = vunpack.c.h.b16 %v558
        %v863 = vunpack.c.l.b16 %v559
        %v864 = vunpack.c.h.b16 %v559
        %v865 = vunpack.c.l.b16 %v560
        %v866 = vunpack.c.h.b16 %v560
        %v867 = vunpack.c.l.b16 %v561
        %v868 = vunpack.c.h.b16 %v561
        %v869 = vunpack.c.l.b16 %v562
        %v870 = vunpack.c.h.b16 %v562
        %v871 = vunpack.c.l.b16 %v563
        %v872 = vunpack.c.h.b16 %v563
        %v873 = vunpack.c.l.b16 %v564
        %v874 = vunpack.c.h.b16 %v564
        %v875 = vunpack.c.l.b16 %v565
        %v876 = vunpack.c.h.b16 %v565
        %v877 = vunpack.c.l.b16 %v566
        %v878 = vunpack.c.h.b16 %v566
        %v879 = vunpack.c.l.b16 %v567
        %v880 = vunpack.c.h.b16 %v567
        %v881 = vunpack.c.l.b16 %v568
        %v882 = vunpack.c.h.b16 %v568
        %v883 = vunpack.c.l.b16 %v569
        %v884 = vunpack.c.h.b16 %v569
        %v885 = vunpack.c.l.b16 %v570
        %v886 = vunpack.c.h.b16 %v570
        %v887 = vunpack.c.l.b16 %v571
        %v888 = vunpack.c.h.b16 %v571
        %v889 = vunpack.c.l.b16 %v572
        %v890 = vunpack.c.h.b16 %v572
        %v891 = vunpack.c.l.b16 %v573
        %v892 = vunpack.c.h.b16 %v573
        %v893 = vunpack.c.l.b16 %v574
        %v894 = vunpack.c.h.b16 %v574
        %v895 = vunpack.c.l.b16 %v575
        %v896 = vunpack.c.h.b16 %v575
        %v897 = vunpack.c.l.b16 %v576
        %v898 = vunpack.c.h.b16 %v576
        %v899 = vunpack.c.l.b16 %v577
        %v900 = vunpack.c.h.b16 %v577
        %v901 = vunpack.c.l.b16 %v578
        %v902 = vunpack.c.h.b16 %v578
        %v903 = vunpack.c.l.b16 %v579
        %v904 = vunpack.c.h.b16 %v579
        %v905 = vunpack.c.l.b16 %v580
        %v906 = vunpack.c.h.b16 %v580
        %v907 = vunpack.c.l.b16 %v581
        %v908 = vunpack.c.h.b16 %v581
        %v909 = vunpack.c.l.b16 %v582
        %v910 = vunpack.c.h.b16 %v582
        %v911 = vunpack.c.l.b16 %v583
        %v912 = vunpack.c.h.b16 %v583
        %v913 = vunpack.c.l.b16 %v584
        %v914 = vunpack.c.h.b16 %v584
        %v915 = vunpack.c.l.b16 %v585
        %v916 = vunpack.c.h.b16 %v585
        %v917 = vunpack.c.l.b16 %v586
        %v918 = vunpack.c.h.b16 %v586
        %v919 = vunpack.c.l.b16 %v587
        %v920 = vunpack.c.h.b16 %v587
        %v921 = vunpack.c.l.b16 %v588
        %v922 = vunpack.c.h.b16 %v588
        %v923 = vunpack.c.l.b16 %v589
        %v924 = vunpack.c.h.b16 %v589
        %v925 = vunpack.c.l.b16 %v590
        %v926 = vunpack.c.h.b16 %v590
        %v927 = vunpack.c.l.b16 %v591
        %v928 = vunpack.c.h.b16 %v591
        %v929 = vunpack.c.l.b16 %v592
        %v930 = vunpack.c.h.b16 %v592
        %v931 = vunpack.c.l.b16 %v593
        %v932 = vunpack.c.h.b16 %v593
        %v933 = vunpack.c.l.b16 %v594
        %v934 = vunpack.c.h.b16 %v594
        %v935 = vunpack.c.l.b16 %v595
        %v936 = vunpack.c.h.b16 %v595
        %v937 = vunpack.c.l.b16 %v596
        %v938 = vunpack.c.h.b16 %v596
        %v939 = vunpack.c.l.b16 %v597
        %v940 = vunpack.c.h.b16 %v597
        %v941 = vunpack.c.l.b16 %v598
        %v942 = vunpack.c.h.b16 %v598
        %v943 = vunpack.c.l.b16 %v599
        %v944 = vunpack.c.h.b16 %v599
        %v945 = vunpack.c.l.b16 %v600
        %v946 = vunpack.c.h.b16 %v600
        %v947 = vunpack.c.l.b16 %v601
        %v948 = vunpack.c.h.b16 %v601
        %v949 = vunpack.c.l.b16 %v602
        %v950 = vunpack.c.h.b16 %v602
        %v951 = vunpack.c.l.b16 %v603
        %v952 = vunpack.c.h.b16 %v603
        %v953 = vunpack.c.l.b16 %v604
        %v954 = vunpack.c.h.b16 %v604
        %v955 = vunpack.c.l.b16 %v605
        %v956 = vunpack.c.h.b16 %v605
        %v957 = vunpack.c.l.b16 %v606
        %v958 = vunpack.c.h.b16 %v606
        %v959 = vunpack.c.l.b16 %v607
        %v960 = vunpack.c.h.b16 %v607
        %v961 = vunpack.c.l.b16 %v608
        %v962 = vunpack.c.h.b16 %v608
        %v963 = vunpack.c.l.b16 %v609
        %v964 = vunpack.c.h.b16 %v609
        %v965 = vunpack.c.l.b16 %v610
        %v966 = vunpack.c.h.b16 %v610
        %v967 = vunpack.c.l.b16 %v611
        %v968 = vunpack.c.h.b16 %v611
        %v969 = vunpack.c.l.b16 %v612
        %v970 = vunpack.c.h.b16 %v612
        %v971 = vunpack.c.l.b16 %v613
        %v972 = vunpack.c.h.b16 %v613
        %v973 = vunpack.c.l.b16 %v614
        %v974 = vunpack.c.h.b16 %v614
        %v975 = vunpack.c.l.b16 %v615
        %v976 = vunpack.c.h.b16 %v615
        %v977 = vunpack.c.l.b16 %v616
        %v978 = vunpack.c.h.b16 %v616
        %v979 = vunpack.c.l.b16 %v617
        %v980 = vunpack.c.h.b16 %v617
        %v981 = vunpack.c.l.b16 %v618
        %v982 = vunpack.c.h.b16 %v618
        %v983 = vunpack.c.l.b16 %v619
        %v984 = vunpack.c.h.b16 %v619
        %v985 = vunpack.c.l.b16 %v620
        %v986 = vunpack.c.h.b16 %v620
        %v987 = vunpack.c.l.b16 %v621
        %v988 = vunpack.c.h.b16 %v621
        %v989 = vunpack.c.l.b16 %v622
        %v990 = vunpack.c.h.b16 %v622
        %v991 = vunpack.c.l.b16 %v623
        %v992 = vunpack.c.h.b16 %v623
        %v993 = vunpack.c.l.b16 %v624
        %v994 = vunpack.c.h.b16 %v624
        %v995 = vunpack.c.l.b16 %v625
        %v996 = vunpack.c.h.b16 %v625
        %v997 = vunpack.c.l.b16 %v626
        %v998 = vunpack.c.h.b16 %v626
        %v999 = vunpack.c.l.b16 %v627
        %v1000 = vunpack.c.h.b16 %v627
        %v1001 = vunpack.c.l.b16 %v628
        %v1002 = vunpack.c.h.b16 %v628
        %v1003 = vunpack.c.l.b16 %v629
        %v1004 = vunpack.c.h.b16 %v629
        %v1005 = vunpack.c.l.b16 %v630
        %v1006 = vunpack.c.h.b16 %v630
        %v1007 = vunpack.c.l.b16 %v631
        %v1008 = vunpack.c.h.b16 %v631
        %v1009 = vunpack.c.l.b16 %v632
        %v1010 = vunpack.c.h.b16 %v632
        %v1011 = vunpack.c.l.b16 %v633
        %v1012 = vunpack.c.h.b16 %v633
        %v1013 = vunpack.c.l.b16 %v634
        %v1014 = vunpack.c.h.b16 %v634
        %v1015 = vunpack.c.l.b16 %v635
        %v1016 = vunpack.c.h.b16 %v635
        %v1017 = vunpack.c.l.b16 %v636
        %v1018 = vunpack.c.h.b16 %v636
        %v1019 = vunpack.c.l.b16 %v637
        %v1020 = vunpack.c.h.b16 %v637
        %v1021 = vunpack.c.l.b16 %v638
        %v1022 = vunpack.c.h.b16 %v638
        %v1023 = vpack.c.b16 %v771, %v767
        %v1024 = vpack.c.b16 %v772, %v768
        %v1025 = vpack.c.b16 %v773, %v769
        %v1026 = vpack.c.b16 %v774, %v770
        %v1027 = vpack.c.b16 %v779, %v775
        %v1028 = vpack.c.b16 %v780, %v776
        %v1029 = vpack.c.b16 %v781, %v777
        %v1030 = vpack.c.b16 %v782, %v778
        %v1031 = vpack.c.b16 %v787, %v783
        %v1032 = vpack.c.b16 %v788, %v784
        %v1033 = vpack.c.b16 %v789, %v785
        %v1034 = vpack.c.b16 %v790, %v786
        %v1035 = vpack.c.b16 %v795, %v791
        %v1036 = vpack.c.b16 %v796, %v792
        %v1037 = vpack.c.b16 %v797, %v793
        %v1038 = vpack.c.b16 %v798, %v794
        %v1039 = vpack.c.b16 %v803, %v799
        %v1040 = vpack.c.b16 %v804, %v800
        %v1041 = vpack.c.b16 %v805, %v801
        %v1042 = vpack.c.b16 %v806, %v802
        %v1043 = vpack.c.b16 %v811, %v807
        %v1044 = vpack.c.b16 %v812, %v808
        %v1045 = vpack.c.b16 %v813, %v809
        %v1046 = vpack.c.b16 %v814, %v810
        %v1047 = vpack.c.b16 %v819, %v815
        %v1048 = vpack.c.b16 %v820, %v816
        %v1049 = vpack.c.b16 %v821, %v817
        %v1050 = vpack.c.b16 %v822, %v818
        %v1051 = vpack.c.b16 %v827, %v823
        %v1052 = vpack.c.b16 %v828, %v824
        %v1053 = vpack.c.b16 %v829, %v825
        %v1054 = vpack.c.b16 %v830, %v826
        %v1055 = vpack.c.b16 %v835, %v831
        %v1056 = vpack.c.b16 %v836, %v832
        %v1057 = vpack.c.b16 %v837, %v833
        %v1058 = vpack.c.b16 %v838, %v834
        %v1059 = vpack.c.b16 %v843, %v839
        %v1060 = vpack.c.b16 %v844, %v840
        %v1061 = vpack.c.b16 %v845, %v841
        %v1062 = vpack.c.b16 %v846, %v842
        %v1063 = vpack.c.b16 %v851, %v847
        %v1064 = vpack.c.b16 %v852, %v848
        %v1065 = vpack.c.b16 %v853, %v849
        %v1066 = vpack.c.b16 %v854, %v850
        %v1067 = vpack.c.b16 %v859, %v855
        %v1068 = vpack.c.b16 %v860, %v856
        %v1069 = vpack.c.b16 %v861, %v857
        %v1070 = vpack.c.b16 %v862, %v858
        %v1071 = vpack.c.b16 %v867, %v863
        %v1072 = vpack.c.b16 %v868, %v864
        %v1073 = vpack.c.b16 %v869, %v865
        %v1074 = vpack.c.b16 %v870, %v866
        %v1075 = vpack.c.b16 %v875, %v871
        %v1076 = vpack.c.b16 %v876, %v872
        %v1077 = vpack.c.b16 %v877, %v873
        %v1078 = vpack.c.b16 %v878, %v874
        %v1079 = vpack.c.b16 %v883, %v879
        %v1080 = vpack.c.b16 %v884, %v880
        %v1081 = vpack.c.b16 %v885, %v881
        %v1082 = vpack.c.b16 %v886, %v882
        %v1083 = vpack.c.b16 %v891, %v887
        %v1084 = vpack.c.b16 %v892, %v888
        %v1085 = vpack.c.b16 %v893, %v889
        %v1086 = vpack.c.b16 %v894, %v890
        %v1087 = vpack.c.b16 %v899, %v895
        %v1088 = vpack.c.b16 %v900, %v896
        %v1089 = vpack.c.b16 %v901, %v897
        %v1090 = vpack.c.b16 %v902, %v898
        %v1091 = vpack.c.b16 %v907, %v903
        %v1092 = vpack.c.b16 %v908, %v904
        %v1093 = vpack.c.b16 %v909, %v905
        %v1094 = vpack.c.b16 %v910, %v906
        %v1095 = vpack.c.b16 %v915, %v911
        %v1096 = vpack.c.b16 %v916, %v912
        %v1097 = vpack.c.b16 %v917, %v913
        %v1098 = vpack.c.b16 %v918, %v914
        %v1099 = vpack.c.b16 %v923, %v919
        %v1100 = vpack.c.b16 %v924, %v920
        %v1101 = vpack.c.b16 %v925, %v921
        %v1102 = vpack.c.b16 %v926, %v922
        %v1103 = vpack.c.b16 %v931, %v927
        %v1104 = vpack.c.b16 %v932, %v928
        %v1105 = vpack.c.b16 %v933, %v929
        %v1106 = vpack.c.b16 %v934, %v930
        %v1107 = vpack.c.b16 %v939, %v935
        %v1108 = vpack.c.b16 %v940, %v936
        %v1109 = vpack.c.b16 %v941, %v937
        %v1110 = vpack.c.b16 %v942, %v938
        %v1111 = vpack.c.b16 %v947, %v943
        %v1112 = vpack.c.b16 %v948, %v944
        %v1113 = vpack.c.b16 %v949, %v945
        %v1114 = vpack.c.b16 %v950, %v946
        %v1115 = vpack.c.b16 %v955, %v951
        %v1116 = vpack.c.b16 %v956, %v952
        %v1117 = vpack.c.b16 %v957, %v953
        %v1118 = vpack.c.b16 %v958, %v954
        %v1119 = vpack.c.b16 %v963, %v959
        %v1120 = vpack.c.b16 %v964, %v960
        %v1121 = vpack.c.b16 %v965, %v961
        %v1122 = vpack.c.b16 %v966, %v962
        %v1123 = vpack.c.b16 %v971, %v967
        %v1124 = vpack.c.b16 %v972, %v968
        %v1125 = vpack.c.b16 %v973, %v969
        %v1126 = vpack.c.b16 %v974, %v970
        %v1127 = vpack.c.b16 %v979, %v975
        %v1128 = vpack.c.b16 %v980, %v976
        %v1129 = vpack.c.b16 %v981, %v977
        %v1130 = vpack.c.b16 %v982, %v978
        %v1131 = vpack.c.b16 %v987, %v983
        %v1132 = vpack.c.b16 %v988, %v984
        %v1133 = vpack.c.b16 %v989, %v985
        %v1134 = vpack.c.b16 %v990, %v986
        %v1135 = vpack.c.b16 %v995, %v991
        %v1136 = vpack.c.b16 %v996, %v992
        %v1137 = vpack.c.b16 %v997, %v993
        %v1138 = vpack.c.b16 %v998, %v994
        %v1139 = vpack.c.b16 %v1003, %v999
        %v1140 = vpack.c.b16 %v1004, %v1000
        %v1141 = vpack.c.b16 %v1005, %v1001
        %v1142 = vpack.c.b16 %v1006, %v1002
        %v1143 = vpack.c.b16 %v1011, %v1007
        %v1144 = vpack.c.b16 %v1012, %v1008
        %v1145 = vpack.c.b16 %v1013, %v1009
        %v1146 = vpack.c.b16 %v1014, %v1010
        %v1147 = vpack.c.b16 %v1019, %v1015
        %v1148 = vpack.c.b16 %v1020, %v1016
        %v1149 = vpack.c.b16 %v1021, %v1017
        %v1150 = vpack.c.b16 %v1022, %v1018
        %1279 = vmatpush.bf16.msra.mxu0 %v1051
        %1280 = vmatpush.bf16.msra.mxu0 %v1047
        %1281 = vmatpush.bf16.msra.mxu0 %v1043
        %1282 = vmatpush.bf16.msra.mxu0 %v1039
        %1283 = vmatpush.bf16.msra.mxu0 %v1035
        %1284 = vmatpush.bf16.msra.mxu0 %v1031
        %1285 = vmatpush.bf16.msra.mxu0 %v1027
        %1286 = vmatpush.bf16.msra.mxu0 %v1023
        %1287 = vmatmul.bf16.gmra.mxu0 %v507
        %v1288 = vpop.f32.mrf.mxu0
        %v1289 = vadd.f32 0.0, %v1288
        %v1290 = vpop.f32.mrf.mxu0
        %v1291 = vadd.f32 0.0, %v1290
        %1292 = vdwg.mxu0
        %1293 = vmatpush.bf16.msra.mxu0 %v1083
        %1294 = vmatpush.bf16.msra.mxu0 %v1079
        %1295 = vmatpush.bf16.msra.mxu0 %v1075
        %1296 = vmatpush.bf16.msra.mxu0 %v1071
        %1297 = vmatpush.bf16.msra.mxu0 %v1067
        %1298 = vmatpush.bf16.msra.mxu0 %v1063
        %1299 = vmatpush.bf16.msra.mxu0 %v1059
        %1300 = vmatpush.bf16.msra.mxu0 %v1055
        %1301 = vmatmul.bf16.gmra.mxu0 %v508
        %v1302 = vpop.f32.mrf.mxu0
        %v1303 = vadd.f32 %v1289, %v1302
        %v1304 = vpop.f32.mrf.mxu0
        %v1305 = vadd.f32 %v1291, %v1304
        %1306 = vdwg.mxu0
        %1307 = vmatpush.bf16.msra.mxu0 %v1115
        %1308 = vmatpush.bf16.msra.mxu0 %v1111
        %1309 = vmatpush.bf16.msra.mxu0 %v1107
        %1310 = vmatpush.bf16.msra.mxu0 %v1103
        %1311 = vmatpush.bf16.msra.mxu0 %v1099
        %1312 = vmatpush.bf16.msra.mxu0 %v1095
        %1313 = vmatpush.bf16.msra.mxu0 %v1091
        %1314 = vmatpush.bf16.msra.mxu0 %v1087
        %1315 = vmatmul.bf16.gmra.mxu0 %v509
        %v1316 = vpop.f32.mrf.mxu0
        %v1317 = vadd.f32 %v1303, %v1316
        %v1318 = vpop.f32.mrf.mxu0
        %v1319 = vadd.f32 %v1305, %v1318
        %1320 = vdwg.mxu0
        %1321 = vmatpush.bf16.msra.mxu0 %v1147
        %1322 = vmatpush.bf16.msra.mxu0 %v1143
        %1323 = vmatpush.bf16.msra.mxu0 %v1139
        %1324 = vmatpush.bf16.msra.mxu0 %v1135
        %1325 = vmatpush.bf16.msra.mxu0 %v1131
        %1326 = vmatpush.bf16.msra.mxu0 %v1127
        %1327 = vmatpush.bf16.msra.mxu0 %v1123
        %1328 = vmatpush.bf16.msra.mxu0 %v1119
        %1329 = vmatmul.bf16.gmra.mxu0 %v510
        %v1330 = vpop.f32.mrf.mxu0
        %v1331 = vadd.f32 %v1317, %v1330
        %v1332 = vpop.f32.mrf.mxu0
        %v1333 = vadd.f32 %v1319, %v1332
        %1334 = vdwg.mxu0
        %1335 = vmatpush.bf16.msra.mxu0 %v1052
        %1336 = vmatpush.bf16.msra.mxu0 %v1048
        %1337 = vmatpush.bf16.msra.mxu0 %v1044
        %1338 = vmatpush.bf16.msra.mxu0 %v1040
        %1339 = vmatpush.bf16.msra.mxu0 %v1036
        %1340 = vmatpush.bf16.msra.mxu0 %v1032
        %1341 = vmatpush.bf16.msra.mxu0 %v1028
        %1342 = vmatpush.bf16.msra.mxu0 %v1024
        %1343 = vmatmul.bf16.gmra.mxu0 %v507
        %v1344 = vpop.f32.mrf.mxu0
        %v1345 = vadd.f32 0.0, %v1344
        %v1346 = vpop.f32.mrf.mxu0
        %v1347 = vadd.f32 0.0, %v1346
        %1348 = vdwg.mxu0
        %1349 = vmatpush.bf16.msra.mxu0 %v1084
        %1350 = vmatpush.bf16.msra.mxu0 %v1080
        %1351 = vmatpush.bf16.msra.mxu0 %v1076
        %1352 = vmatpush.bf16.msra.mxu0 %v1072
        %1353 = vmatpush.bf16.msra.mxu0 %v1068
        %1354 = vmatpush.bf16.msra.mxu0 %v1064
        %1355 = vmatpush.bf16.msra.mxu0 %v1060
        %1356 = vmatpush.bf16.msra.mxu0 %v1056
        %1357 = vmatmul.bf16.gmra.mxu0 %v508
        %v1358 = vpop.f32.mrf.mxu0
        %v1359 = vadd.f32 %v1345, %v1358
        %v1360 = vpop.f32.mrf.mxu0
        %v1361 = vadd.f32 %v1347, %v1360
        %1362 = vdwg.mxu0
        %1363 = vmatpush.bf16.msra.mxu0 %v1116
        %1364 = vmatpush.bf16.msra.mxu0 %v1112
        %1365 = vmatpush.bf16.msra.mxu0 %v1108
        %1366 = vmatpush.bf16.msra.mxu0 %v1104
        %1367 = vmatpush.bf16.msra.mxu0 %v1100
        %1368 = vmatpush.bf16.msra.mxu0 %v1096
        %1369 = vmatpush.bf16.msra.mxu0 %v1092
        %1370 = vmatpush.bf16.msra.mxu0 %v1088
        %1371 = vmatmul.bf16.gmra.mxu0 %v509
        %v1372 = vpop.f32.mrf.mxu0
        %v1373 = vadd.f32 %v1359, %v1372
        %v1374 = vpop.f32.mrf.mxu0
        %v1375 = vadd.f32 %v1361, %v1374
        %1376 = vdwg.mxu0
        %1377 = vmatpush.bf16.msra.mxu0 %v1148
        %1378 = vmatpush.bf16.msra.mxu0 %v1144
        %1379 = vmatpush.bf16.msra.mxu0 %v1140
        %1380 = vmatpush.bf16.msra.mxu0 %v1136
        %1381 = vmatpush.bf16.msra.mxu0 %v1132
        %1382 = vmatpush.bf16.msra.mxu0 %v1128
        %1383 = vmatpush.bf16.msra.mxu0 %v1124
        %1384 = vmatpush.bf16.msra.mxu0 %v1120
        %1385 = vmatmul.bf16.gmra.mxu0 %v510
        %v1386 = vpop.f32.mrf.mxu0
        %v1387 = vadd.f32 %v1373, %v1386
        %v1388 = vpop.f32.mrf.mxu0
        %v1389 = vadd.f32 %v1375, %v1388
        %1390 = vdwg.mxu0
        %1391 = vmatpush.bf16.msra.mxu0 %v1053
        %1392 = vmatpush.bf16.msra.mxu0 %v1049
        %1393 = vmatpush.bf16.msra.mxu0 %v1045
        %1394 = vmatpush.bf16.msra.mxu0 %v1041
        %1395 = vmatpush.bf16.msra.mxu0 %v1037
        %1396 = vmatpush.bf16.msra.mxu0 %v1033
        %1397 = vmatpush.bf16.msra.mxu0 %v1029
        %1398 = vmatpush.bf16.msra.mxu0 %v1025
        %1399 = vmatmul.bf16.gmra.mxu0 %v507
        %v1400 = vpop.f32.mrf.mxu0
        %v1401 = vadd.f32 0.0, %v1400
        %v1402 = vpop.f32.mrf.mxu0
        %v1403 = vadd.f32 0.0, %v1402
        %1404 = vdwg.mxu0
        %1405 = vmatpush.bf16.msra.mxu0 %v1085
        %1406 = vmatpush.bf16.msra.mxu0 %v1081
        %1407 = vmatpush.bf16.msra.mxu0 %v1077
        %1408 = vmatpush.bf16.msra.mxu0 %v1073
        %1409 = vmatpush.bf16.msra.mxu0 %v1069
        %1410 = vmatpush.bf16.msra.mxu0 %v1065
        %1411 = vmatpush.bf16.msra.mxu0 %v1061
        %1412 = vmatpush.bf16.msra.mxu0 %v1057
        %1413 = vmatmul.bf16.gmra.mxu0 %v508
        %v1414 = vpop.f32.mrf.mxu0
        %v1415 = vadd.f32 %v1401, %v1414
        %v1416 = vpop.f32.mrf.mxu0
        %v1417 = vadd.f32 %v1403, %v1416
        %1418 = vdwg.mxu0
        %1419 = vmatpush.bf16.msra.mxu0 %v1117
        %1420 = vmatpush.bf16.msra.mxu0 %v1113
        %1421 = vmatpush.bf16.msra.mxu0 %v1109
        %1422 = vmatpush.bf16.msra.mxu0 %v1105
        %1423 = vmatpush.bf16.msra.mxu0 %v1101
        %1424 = vmatpush.bf16.msra.mxu0 %v1097
        %1425 = vmatpush.bf16.msra.mxu0 %v1093
        %1426 = vmatpush.bf16.msra.mxu0 %v1089
        %1427 = vmatmul.bf16.gmra.mxu0 %v509
        %v1428 = vpop.f32.mrf.mxu0
        %v1429 = vadd.f32 %v1415, %v1428
        %v1430 = vpop.f32.mrf.mxu0
        %v1431 = vadd.f32 %v1417, %v1430
        %1432 = vdwg.mxu0
        %1433 = vmatpush.bf16.msra.mxu0 %v1149
        %1434 = vmatpush.bf16.msra.mxu0 %v1145
        %1435 = vmatpush.bf16.msra.mxu0 %v1141
        %1436 = vmatpush.bf16.msra.mxu0 %v1137
        %1437 = vmatpush.bf16.msra.mxu0 %v1133
        %1438 = vmatpush.bf16.msra.mxu0 %v1129
        %1439 = vmatpush.bf16.msra.mxu0 %v1125
        %1440 = vmatpush.bf16.msra.mxu0 %v1121
        %1441 = vmatmul.bf16.gmra.mxu0 %v510
        %v1442 = vpop.f32.mrf.mxu0
        %v1443 = vadd.f32 %v1429, %v1442
        %v1444 = vpop.f32.mrf.mxu0
        %v1445 = vadd.f32 %v1431, %v1444
        %1446 = vdwg.mxu0
        %1447 = vmatpush.bf16.msra.mxu0 %v1054
        %1448 = vmatpush.bf16.msra.mxu0 %v1050
        %1449 = vmatpush.bf16.msra.mxu0 %v1046
        %1450 = vmatpush.bf16.msra.mxu0 %v1042
        %1451 = vmatpush.bf16.msra.mxu0 %v1038
        %1452 = vmatpush.bf16.msra.mxu0 %v1034
        %1453 = vmatpush.bf16.msra.mxu0 %v1030
        %1454 = vmatpush.bf16.msra.mxu0 %v1026
        %1455 = vmatmul.bf16.gmra.mxu0 %v507
        %v1456 = vpop.f32.mrf.mxu0
        %v1457 = vadd.f32 0.0, %v1456
        %v1458 = vpop.f32.mrf.mxu0
        %v1459 = vadd.f32 0.0, %v1458
        %1460 = vdwg.mxu0
        %1461 = vmatpush.bf16.msra.mxu0 %v1086
        %1462 = vmatpush.bf16.msra.mxu0 %v1082
        %1463 = vmatpush.bf16.msra.mxu0 %v1078
        %1464 = vmatpush.bf16.msra.mxu0 %v1074
        %1465 = vmatpush.bf16.msra.mxu0 %v1070
        %1466 = vmatpush.bf16.msra.mxu0 %v1066
        %1467 = vmatpush.bf16.msra.mxu0 %v1062
        %1468 = vmatpush.bf16.msra.mxu0 %v1058
        %1469 = vmatmul.bf16.gmra.mxu0 %v508
        %v1470 = vpop.f32.mrf.mxu0
        %v1471 = vadd.f32 %v1457, %v1470
        %v1472 = vpop.f32.mrf.mxu0
        %v1473 = vadd.f32 %v1459, %v1472
        %1474 = vdwg.mxu0
        %1475 = vmatpush.bf16.msra.mxu0 %v1118
        %1476 = vmatpush.bf16.msra.mxu0 %v1114
        %1477 = vmatpush.bf16.msra.mxu0 %v1110
        %1478 = vmatpush.bf16.msra.mxu0 %v1106
        %1479 = vmatpush.bf16.msra.mxu0 %v1102
        %1480 = vmatpush.bf16.msra.mxu0 %v1098
        %1481 = vmatpush.bf16.msra.mxu0 %v1094
        %1482 = vmatpush.bf16.msra.mxu0 %v1090
        %1483 = vmatmul.bf16.gmra.mxu0 %v509
        %v1484 = vpop.f32.mrf.mxu0
        %v1485 = vadd.f32 %v1471, %v1484
        %v1486 = vpop.f32.mrf.mxu0
        %v1487 = vadd.f32 %v1473, %v1486
        %1488 = vdwg.mxu0
        %1489 = vmatpush.bf16.msra.mxu0 %v1150
        %1490 = vmatpush.bf16.msra.mxu0 %v1146
        %1491 = vmatpush.bf16.msra.mxu0 %v1142
        %1492 = vmatpush.bf16.msra.mxu0 %v1138
        %1493 = vmatpush.bf16.msra.mxu0 %v1134
        %1494 = vmatpush.bf16.msra.mxu0 %v1130
        %1495 = vmatpush.bf16.msra.mxu0 %v1126
        %1496 = vmatpush.bf16.msra.mxu0 %v1122
        %1497 = vmatmul.bf16.gmra.mxu0 %v510
        %v1498 = vpop.f32.mrf.mxu0
        %v1499 = vadd.f32 %v1485, %v1498
        %v1500 = vpop.f32.mrf.mxu0
        %v1501 = vadd.f32 %v1487, %v1500
        %1502 = vdwg.mxu0
        %v1503 = vld [vmem:[%s5] sm:$0xff]
        %v1504 = vld [vmem:[%s5 + $0x8] sm:$0xff]
        %v1505 = vld [vmem:[%s5 + $0x10] sm:$0xff]
        %v1506 = vld [vmem:[%s5 + $0x18] sm:$0xff]
        %v1507 = vld [vmem:[%s5 + $0x20] sm:$0xff]
        %v1508 = vld [vmem:[%s5 + $0x28] sm:$0xff]
        %v1509 = vld [vmem:[%s5 + $0x30] sm:$0xff]
        %v1510 = vld [vmem:[%s5 + $0x38] sm:$0xff]
        %vm1511 = vcmask 130048
        %v1513 = vsel %vm1511, %v1503, 0
        %v1516 = vsel %vm1511, %v1504, 0
        %v1519 = vsel %vm1511, %v1505, 0
        %v1522 = vsel %vm1511, %v1506, 0
        %v1525 = vsel %vm1511, %v1507, 0
        %v1528 = vsel %vm1511, %v1508, 0
        %v1531 = vsel %vm1511, %v1509, 0
        %v1534 = vsel %vm1511, %v1510, 0
        %1536 = vmatpush.msra.mxu0 0.0
        %1537 = vmatpush.msra.mxu0 0.0
        %1538 = vmatpush.msra.mxu0 0.0
        %1539 = vmatpush.msra.mxu0 0.0
        %1540 = vmatpush.msra.mxu0 0.0
        %1541 = vmatpush.msra.mxu0 0.0
        %1542 = vmatpush.msra.mxu0 0.0
        %1543 = vmatpush.msra.mxu0 0.0
        %1544 = vmatpush.msra.mxu0 0.0
        %1545 = vmatpush.msra.mxu0 0.0
        %1546 = vmatpush.msra.mxu0 0.0
        %1547 = vmatpush.msra.mxu0 0.0
        %1548 = vmatpush.msra.mxu0 0.0
        %1549 = vmatpush.msra.mxu0 0.0
        %1550 = vmatpush.msra.mxu0 %v1333
        %1551 = vmatpush.msra.mxu0 %v1331
        %1552 = vmatmul.f32.gmra.mxu0 %v1513
        %v1553 = vpop.f32.mrf.mxu0
        %v1554 = vadd.f32 0.0, %v1553
        %1555 = vmatmul.f32.gmra.mxu0 %v1516
        %v1556 = vpop.f32.mrf.mxu0
        %v1557 = vadd.f32 0.0, %v1556
        %1558 = vmatmul.f32.gmra.mxu0 %v1519
        %v1559 = vpop.f32.mrf.mxu0
        %v1560 = vadd.f32 0.0, %v1559
        %1561 = vmatmul.f32.gmra.mxu0 %v1522
        %v1562 = vpop.f32.mrf.mxu0
        %v1563 = vadd.f32 0.0, %v1562
        %1564 = vmatmul.f32.gmra.mxu0 %v1525
        %v1565 = vpop.f32.mrf.mxu0
        %v1566 = vadd.f32 0.0, %v1565
        %1567 = vmatmul.f32.gmra.mxu0 %v1528
        %v1568 = vpop.f32.mrf.mxu0
        %v1569 = vadd.f32 0.0, %v1568
        %1570 = vmatmul.f32.gmra.mxu0 %v1531
        %v1571 = vpop.f32.mrf.mxu0
        %v1572 = vadd.f32 0.0, %v1571
        %1573 = vmatmul.f32.gmra.mxu0 %v1534
        %v1574 = vpop.f32.mrf.mxu0
        %v1575 = vadd.f32 0.0, %v1574
        %1576 = vdwg.mxu0
        %1577 = vmatpush.msra.mxu0 0.0
        %1578 = vmatpush.msra.mxu0 0.0
        %1579 = vmatpush.msra.mxu0 0.0
        %1580 = vmatpush.msra.mxu0 0.0
        %1581 = vmatpush.msra.mxu0 0.0
        %1582 = vmatpush.msra.mxu0 0.0
        %1583 = vmatpush.msra.mxu0 0.0
        %1584 = vmatpush.msra.mxu0 0.0
        %1585 = vmatpush.msra.mxu0 0.0
        %1586 = vmatpush.msra.mxu0 0.0
        %1587 = vmatpush.msra.mxu0 0.0
        %1588 = vmatpush.msra.mxu0 0.0
        %1589 = vmatpush.msra.mxu0 0.0
        %1590 = vmatpush.msra.mxu0 0.0
        %1591 = vmatpush.msra.mxu0 %v1389
        %1592 = vmatpush.msra.mxu0 %v1387
        %1593 = vmatmul.f32.gmra.mxu0 %v1513
        %v1594 = vpop.f32.mrf.mxu0
        %v1595 = vadd.f32 0.0, %v1594
        %1596 = vmatmul.f32.gmra.mxu0 %v1516
        %v1597 = vpop.f32.mrf.mxu0
        %v1598 = vadd.f32 0.0, %v1597
        %1599 = vmatmul.f32.gmra.mxu0 %v1519
        %v1600 = vpop.f32.mrf.mxu0
        %v1601 = vadd.f32 0.0, %v1600
        %1602 = vmatmul.f32.gmra.mxu0 %v1522
        %v1603 = vpop.f32.mrf.mxu0
        %v1604 = vadd.f32 0.0, %v1603
        %1605 = vmatmul.f32.gmra.mxu0 %v1525
        %v1606 = vpop.f32.mrf.mxu0
        %v1607 = vadd.f32 0.0, %v1606
        %1608 = vmatmul.f32.gmra.mxu0 %v1528
        %v1609 = vpop.f32.mrf.mxu0
        %v1610 = vadd.f32 0.0, %v1609
        %1611 = vmatmul.f32.gmra.mxu0 %v1531
        %v1612 = vpop.f32.mrf.mxu0
        %v1613 = vadd.f32 0.0, %v1612
        %1614 = vmatmul.f32.gmra.mxu0 %v1534
        %v1615 = vpop.f32.mrf.mxu0
        %1616 = vdwg.mxu0
        %s1617 = scalar_lea.vmem %s5, 64
        %v1618 = vld [vmem:[%s1617] sm:$0xff]
        %v1619 = vld [vmem:[%s1617 + $0x8] sm:$0xff]
        %v1620 = vld [vmem:[%s1617 + $0x10] sm:$0xff]
        %v1621 = vld [vmem:[%s1617 + $0x18] sm:$0xff]
        %v1622 = vld [vmem:[%s1617 + $0x20] sm:$0xff]
        %v1623 = vld [vmem:[%s1617 + $0x28] sm:$0xff]
        %v1624 = vld [vmem:[%s1617 + $0x30] sm:$0xff]
        %v1625 = vld [vmem:[%s1617 + $0x38] sm:$0xff]
        %v1627 = vsel %vm1511, %v1618, 0
        %v1630 = vsel %vm1511, %v1619, 0
        %v1633 = vsel %vm1511, %v1620, 0
        %v1636 = vsel %vm1511, %v1621, 0
        %v1639 = vsel %vm1511, %v1622, 0
        %v1642 = vsel %vm1511, %v1623, 0
        %v1645 = vsel %vm1511, %v1624, 0
        %v1648 = vsel %vm1511, %v1625, 0
        %1650 = vmatpush.msra.mxu0 0.0
        %1651 = vmatpush.msra.mxu0 0.0
        %1652 = vmatpush.msra.mxu0 0.0
        %1653 = vmatpush.msra.mxu0 0.0
        %1654 = vmatpush.msra.mxu0 0.0
        %1655 = vmatpush.msra.mxu0 0.0
        %1656 = vmatpush.msra.mxu0 0.0
        %1657 = vmatpush.msra.mxu0 0.0
        %1658 = vmatpush.msra.mxu0 0.0
        %1659 = vmatpush.msra.mxu0 0.0
        %1660 = vmatpush.msra.mxu0 0.0
        %1661 = vmatpush.msra.mxu0 0.0
        %1662 = vmatpush.msra.mxu0 0.0
        %1663 = vmatpush.msra.mxu0 0.0
        %1664 = vmatpush.msra.mxu0 %v1445
        %1665 = vmatpush.msra.mxu0 %v1443
        %1666 = vmatmul.f32.gmra.mxu0 %v1627
        %v1667 = vpop.f32.mrf.mxu0
        %v1668 = vadd.f32 0.0, %v1667
        %1669 = vmatmul.f32.gmra.mxu0 %v1630
        %v1670 = vpop.f32.mrf.mxu0
        %v1671 = vadd.f32 0.0, %v1670
        %1672 = vmatmul.f32.gmra.mxu0 %v1633
        %v1673 = vpop.f32.mrf.mxu0
        %v1674 = vadd.f32 0.0, %v1673
        %1675 = vmatmul.f32.gmra.mxu0 %v1636
        %v1676 = vpop.f32.mrf.mxu0
        %v1677 = vadd.f32 0.0, %v1676
        %1678 = vmatmul.f32.gmra.mxu0 %v1639
        %v1679 = vpop.f32.mrf.mxu0
        %v1680 = vadd.f32 0.0, %v1679
        %1681 = vmatmul.f32.gmra.mxu0 %v1642
        %v1682 = vpop.f32.mrf.mxu0
        %v1683 = vadd.f32 0.0, %v1682
        %1684 = vmatmul.f32.gmra.mxu0 %v1645
        %v1685 = vpop.f32.mrf.mxu0
        %v1686 = vadd.f32 0.0, %v1685
        %1687 = vmatmul.f32.gmra.mxu0 %v1648
        %v1688 = vpop.f32.mrf.mxu0
        %v1689 = vadd.f32 0.0, %v1688
        %1690 = vdwg.mxu0
        %1691 = vmatpush.msra.mxu0 0.0
        %1692 = vmatpush.msra.mxu0 0.0
        %1693 = vmatpush.msra.mxu0 0.0
        %1694 = vmatpush.msra.mxu0 0.0
        %1695 = vmatpush.msra.mxu0 0.0
        %1696 = vmatpush.msra.mxu0 0.0
        %1697 = vmatpush.msra.mxu0 0.0
        %1698 = vmatpush.msra.mxu0 0.0
        %1699 = vmatpush.msra.mxu0 0.0
        %1700 = vmatpush.msra.mxu0 0.0
        %1701 = vmatpush.msra.mxu0 0.0
        %1702 = vmatpush.msra.mxu0 0.0
        %1703 = vmatpush.msra.mxu0 0.0
        %1704 = vmatpush.msra.mxu0 0.0
        %1705 = vmatpush.msra.mxu0 %v1501
        %1706 = vmatpush.msra.mxu0 %v1499
        %1707 = vmatmul.f32.gmra.mxu0 %v1627
        %v1708 = vpop.f32.mrf.mxu0
        %v1709 = vadd.f32 0.0, %v1708
        %1710 = vmatmul.f32.gmra.mxu0 %v1630
        %v1711 = vpop.f32.mrf.mxu0
        %v1712 = vadd.f32 0.0, %v1711
        %1713 = vmatmul.f32.gmra.mxu0 %v1633
        %v1714 = vpop.f32.mrf.mxu0
        %v1715 = vadd.f32 0.0, %v1714
        %1716 = vmatmul.f32.gmra.mxu0 %v1636
        %v1717 = vpop.f32.mrf.mxu0
        %v1718 = vadd.f32 0.0, %v1717
        %1719 = vmatmul.f32.gmra.mxu0 %v1639
        %v1720 = vpop.f32.mrf.mxu0
        %v1721 = vadd.f32 0.0, %v1720
        %1722 = vmatmul.f32.gmra.mxu0 %v1642
        %v1723 = vpop.f32.mrf.mxu0
        %v1724 = vadd.f32 0.0, %v1723
        %1725 = vmatmul.f32.gmra.mxu0 %v1645
        %v1726 = vpop.f32.mrf.mxu0
        %v1727 = vadd.f32 0.0, %v1726
        %1728 = vmatmul.f32.gmra.mxu0 %v1648
        %v1729 = vpop.f32.mrf.mxu0
        %1730 = vdwg.mxu0
        %v1731 = vadd.f32 %v1554, %v1668
        %v1732 = vadd.f32 %v1557, %v1671
        %v1733 = vadd.f32 %v1560, %v1674
        %v1734 = vadd.f32 %v1563, %v1677
        %v1735 = vadd.f32 %v1566, %v1680
        %v1736 = vadd.f32 %v1569, %v1683
        %v1737 = vadd.f32 %v1572, %v1686
        %v1738 = vadd.f32 %v1575, %v1689
        %v1739 = vadd.f32 %v1595, %v1709
        %v1740 = vadd.f32 %v1598, %v1712
        %v1741 = vadd.f32 %v1601, %v1715
        %v1742 = vadd.f32 %v1604, %v1718
        %v1743 = vadd.f32 %v1607, %v1721
        %v1744 = vadd.f32 %v1610, %v1724
        %v1745 = vadd.f32 %v1613, %v1727
        %v1746 = vld [vmem:[%s4] sm:$0x1]
        %v1748 = vperm.slane %v1746, 0
        %v1750 = vadd.f32 %v1731, %v1748
        %v1751 = vmax.f32 %v1750, 0.0
        %1752 = vst [vmem:[#allocation3] sm:$0xff] %v1751
        %v1753 = vadd.f32 %v1732, %v1739
        %v1754 = vadd.f32 %v1733, %v1740
        %v1755 = vadd.f32 %v1734, %v1741
        %v1756 = vadd.f32 %v1735, %v1742
        %v1757 = vadd.f32 %v1736, %v1743
        %v1758 = vadd.f32 %v1737, %v1744
        %v1759 = vadd.f32 %v1738, %v1745
        %v1760 = vadd.f32 %v1753, %v1748
        %v1761 = vadd.f32 %v1754, %v1748
        %v1762 = vadd.f32 %v1755, %v1748
        %v1763 = vadd.f32 %v1756, %v1748
        %v1764 = vadd.f32 %v1757, %v1748
        %v1765 = vadd.f32 %v1758, %v1748
        %v1766 = vadd.f32 %v1759, %v1748
        %v1767 = vmax.f32 %v1760, 0.0
        %v1768 = vmax.f32 %v1761, 0.0
        %v1769 = vmax.f32 %v1762, 0.0
        %v1770 = vmax.f32 %v1763, 0.0
        %v1771 = vmax.f32 %v1764, 0.0
        %v1772 = vmax.f32 %v1765, 0.0
        %v1773 = vmax.f32 %v1766, 0.0
        %1774 = vst [vmem:[#allocation3 + $0x8] sm:$0xff] %v1767
        %1775 = vst [vmem:[#allocation3 + $0x10] sm:$0xff] %v1768
        %1776 = vst [vmem:[#allocation3 + $0x18] sm:$0xff] %v1769
        %1777 = vst [vmem:[#allocation3 + $0x20] sm:$0xff] %v1770
        %1778 = vst [vmem:[#allocation3 + $0x28] sm:$0xff] %v1771
        %1779 = vst [vmem:[#allocation3 + $0x30] sm:$0xff] %v1772
        %1780 = vst [vmem:[#allocation3 + $0x38] sm:$0xff] %v1773
        %v1781 = vadd.s32 %v485, 16
        %v1782 = vadd.s32 %v485, 24
        %v1783 = vadd.s32 %v485, 32
        %v1784 = vadd.s32 %v485, 40
        %v1785 = vadd.s32 %v485, 48
        %v1786 = vadd.s32 %v485, 56
        %v1787 = vand.u32 %v485, 7
        %v1788 = vand.u32 %v486, 7
        %v1789 = vand.u32 %v1781, 7
        %v1790 = vand.u32 %v1782, 7
        %v1791 = vand.u32 %v1783, 7
        %v1792 = vand.u32 %v1784, 7
        %v1793 = vand.u32 %v1785, 7
        %v1794 = vand.u32 %v1786, 7
        %vm1795 = vcmp.ne.s32.totalorder %v1787, 7
        %vm1796 = vcmp.ne.s32.totalorder %v1788, 7
        %vm1797 = vcmp.ne.s32.totalorder %v1789, 7
        %vm1798 = vcmp.ne.s32.totalorder %v1790, 7
        %vm1799 = vcmp.ne.s32.totalorder %v1791, 7
        %vm1800 = vcmp.ne.s32.totalorder %v1792, 7
        %vm1801 = vcmp.ne.s32.totalorder %v1793, 7
        %vm1802 = vcmp.ne.s32.totalorder %v1794, 7
        %v1803 = vsel %vm1795, 1, 0
        %v1804 = vsel %vm1796, 1, 0
        %v1805 = vsel %vm1797, 1, 0
        %v1806 = vsel %vm1798, 1, 0
        %v1807 = vsel %vm1799, 1, 0
        %v1808 = vsel %vm1800, 1, 0
        %v1809 = vsel %vm1801, 1, 0
        %v1810 = vsel %vm1802, 1, 0
        %v1811 = vcvt.s32.f32 %v1803
        %v1812 = vcvt.s32.f32 %v1804
        %v1813 = vcvt.s32.f32 %v1805
        %v1814 = vcvt.s32.f32 %v1806
        %v1815 = vcvt.s32.f32 %v1807
        %v1816 = vcvt.s32.f32 %v1808
        %v1817 = vcvt.s32.f32 %v1809
        %v1818 = vcvt.s32.f32 %v1810
        %v1819 = vld [vmem:[#allocation3] sm:$0xff]
        %v1820 = vld [vmem:[#allocation3 + $0x8] sm:$0xff]
        %v1821 = vld [vmem:[#allocation3 + $0x10] sm:$0xff]
        %v1822 = vld [vmem:[#allocation3 + $0x18] sm:$0xff]
        %v1823 = vld [vmem:[#allocation3 + $0x20] sm:$0xff]
        %v1824 = vld [vmem:[#allocation3 + $0x28] sm:$0xff]
        %v1825 = vld [vmem:[#allocation3 + $0x30] sm:$0xff]
        %v1826 = vld [vmem:[#allocation3 + $0x38] sm:$0xff]
        %v1827 = vld [vmem:[#allocation3 + $0x1] sm:$0xff]
        %v1828 = vld [vmem:[#allocation3 + $0x9] sm:$0xff]
        %v1829 = vld [vmem:[#allocation3 + $0x11] sm:$0xff]
        %v1830 = vld [vmem:[#allocation3 + $0x19] sm:$0xff]
        %v1831 = vld [vmem:[#allocation3 + $0x21] sm:$0xff]
        %v1832 = vld [vmem:[#allocation3 + $0x29] sm:$0xff]
        %v1833 = vld [vmem:[#allocation3 + $0x31] sm:$0xff]
        %v1834 = vld [vmem:[#allocation3 + $0x39] sm:$0xff]
        %v1835 = vmul.f32 %v1827, %v1811
        %v1836 = vmul.f32 %v1828, %v1812
        %v1837 = vmul.f32 %v1829, %v1813
        %v1838 = vmul.f32 %v1830, %v1814
        %v1839 = vmul.f32 %v1831, %v1815
        %v1840 = vmul.f32 %v1832, %v1816
        %v1841 = vmul.f32 %v1833, %v1817
        %v1842 = vmul.f32 %v1834, %v1818
        %v1843 = vld [vmem:[#allocation3 + $0x40] sm:$0xff]
        %v1844 = vld [vmem:[#allocation3 + $0x41] sm:$0xff]
        %v1845 = vmul.f32 %v1828, %v1811
        %v1846 = vmul.f32 %v1829, %v1812
        %v1847 = vmul.f32 %v1830, %v1813
        %v1848 = vmul.f32 %v1831, %v1814
        %v1849 = vmul.f32 %v1832, %v1815
        %v1850 = vmul.f32 %v1833, %v1816
        %v1851 = vmul.f32 %v1834, %v1817
        %v1852 = vmul.f32 %v1844, %v1818
        %v1853 = vpack.c.bf16 %v1820, %v1819
        %v1854 = vpack.c.bf16 %v1836, %v1835
        %v1855 = vpack.c.bf16 %v1821, %v1820
        %v1856 = vpack.c.bf16 %v1846, %v1845
        %v1857 = vpack.c.bf16 %v1822, %v1821
        %v1858 = vpack.c.bf16 %v1838, %v1837
        %v1859 = vpack.c.bf16 %v1823, %v1822
        %v1860 = vpack.c.bf16 %v1848, %v1847
        %v1861 = vpack.c.bf16 %v1824, %v1823
        %v1862 = vpack.c.bf16 %v1840, %v1839
        %v1863 = vpack.c.bf16 %v1825, %v1824
        %v1864 = vpack.c.bf16 %v1850, %v1849
        %v1865 = vpack.c.bf16 %v1826, %v1825
        %v1866 = vpack.c.bf16 %v1842, %v1841
        %v1867 = vpack.c.bf16 %v1843, %v1826
        %v1868 = vpack.c.bf16 %v1852, %v1851
        %v1869 = vld [vmem:[%s6] sm:$0xff]
        %v1870 = vld [vmem:[%s6 + $0x8] sm:$0xff]
        %v1871 = vld [vmem:[%s6 + $0x10] sm:$0xff]
        %v1872 = vld [vmem:[%s6 + $0x18] sm:$0xff]
        %v1873 = vld [vmem:[%s6 + $0x20] sm:$0xff]
        %v1874 = vld [vmem:[%s6 + $0x28] sm:$0xff]
        %v1875 = vld [vmem:[%s6 + $0x30] sm:$0xff]
        %v1876 = vld [vmem:[%s6 + $0x38] sm:$0xff]
        %v1877 = vld [vmem:[%s6 + $0x40] sm:$0xff]
        %v1878 = vld [vmem:[%s6 + $0x48] sm:$0xff]
        %v1879 = vld [vmem:[%s6 + $0x50] sm:$0xff]
        %v1880 = vld [vmem:[%s6 + $0x58] sm:$0xff]
        %v1881 = vld [vmem:[%s6 + $0x60] sm:$0xff]
        %v1882 = vld [vmem:[%s6 + $0x68] sm:$0xff]
        %v1883 = vld [vmem:[%s6 + $0x70] sm:$0xff]
        %v1884 = vld [vmem:[%s6 + $0x78] sm:$0xff]
        %v1885 = vld [vmem:[%s6 + $0x80] sm:$0xff]
        %v1886 = vld [vmem:[%s6 + $0x88] sm:$0xff]
        %v1887 = vld [vmem:[%s6 + $0x90] sm:$0xff]
        %v1888 = vld [vmem:[%s6 + $0x98] sm:$0xff]
        %v1889 = vld [vmem:[%s6 + $0xa0] sm:$0xff]
        %v1890 = vld [vmem:[%s6 + $0xa8] sm:$0xff]
        %v1891 = vld [vmem:[%s6 + $0xb0] sm:$0xff]
        %v1892 = vld [vmem:[%s6 + $0xb8] sm:$0xff]
        %v1893 = vld [vmem:[%s6 + $0xc0] sm:$0xff]
        %v1894 = vld [vmem:[%s6 + $0xc8] sm:$0xff]
        %v1895 = vld [vmem:[%s6 + $0xd0] sm:$0xff]
        %v1896 = vld [vmem:[%s6 + $0xd8] sm:$0xff]
        %v1897 = vld [vmem:[%s6 + $0xe0] sm:$0xff]
        %v1898 = vld [vmem:[%s6 + $0xe8] sm:$0xff]
        %v1899 = vld [vmem:[%s6 + $0xf0] sm:$0xff]
        %v1900 = vld [vmem:[%s6 + $0xf8] sm:$0xff]
        %v1901 = vld [vmem:[%s6 + $0x100] sm:$0xff]
        %v1902 = vld [vmem:[%s6 + $0x108] sm:$0xff]
        %v1903 = vld [vmem:[%s6 + $0x110] sm:$0xff]
        %v1904 = vld [vmem:[%s6 + $0x118] sm:$0xff]
        %v1905 = vld [vmem:[%s6 + $0x120] sm:$0xff]
        %v1906 = vld [vmem:[%s6 + $0x128] sm:$0xff]
        %v1907 = vld [vmem:[%s6 + $0x130] sm:$0xff]
        %v1908 = vld [vmem:[%s6 + $0x138] sm:$0xff]
        %v1909 = vld [vmem:[%s6 + $0x140] sm:$0xff]
        %v1910 = vld [vmem:[%s6 + $0x148] sm:$0xff]
        %v1911 = vld [vmem:[%s6 + $0x150] sm:$0xff]
        %v1912 = vld [vmem:[%s6 + $0x158] sm:$0xff]
        %v1913 = vld [vmem:[%s6 + $0x160] sm:$0xff]
        %v1914 = vld [vmem:[%s6 + $0x168] sm:$0xff]
        %v1915 = vld [vmem:[%s6 + $0x170] sm:$0xff]
        %v1916 = vld [vmem:[%s6 + $0x178] sm:$0xff]
        %v1917 = vld [vmem:[%s6 + $0x180] sm:$0xff]
        %v1918 = vld [vmem:[%s6 + $0x188] sm:$0xff]
        %v1919 = vld [vmem:[%s6 + $0x190] sm:$0xff]
        %v1920 = vld [vmem:[%s6 + $0x198] sm:$0xff]
        %v1921 = vld [vmem:[%s6 + $0x1a0] sm:$0xff]
        %v1922 = vld [vmem:[%s6 + $0x1a8] sm:$0xff]
        %v1923 = vld [vmem:[%s6 + $0x1b0] sm:$0xff]
        %v1924 = vld [vmem:[%s6 + $0x1b8] sm:$0xff]
        %v1925 = vld [vmem:[%s6 + $0x1c0] sm:$0xff]
        %v1926 = vld [vmem:[%s6 + $0x1c8] sm:$0xff]
        %v1927 = vld [vmem:[%s6 + $0x1d0] sm:$0xff]
        %v1928 = vld [vmem:[%s6 + $0x1d8] sm:$0xff]
        %v1929 = vld [vmem:[%s6 + $0x1e0] sm:$0xff]
        %v1930 = vld [vmem:[%s6 + $0x1e8] sm:$0xff]
        %v1931 = vld [vmem:[%s6 + $0x1f0] sm:$0xff]
        %v1932 = vld [vmem:[%s6 + $0x1f8] sm:$0xff]
        %v1997 = vunpack.c.l.b16 %v1869
        %v1998 = vunpack.c.h.b16 %v1869
        %v1999 = vunpack.c.l.b16 %v1870
        %v2000 = vunpack.c.h.b16 %v1870
        %v2001 = vunpack.c.l.b16 %v1871
        %v2002 = vunpack.c.h.b16 %v1871
        %v2003 = vunpack.c.l.b16 %v1872
        %v2004 = vunpack.c.h.b16 %v1872
        %v2005 = vunpack.c.l.b16 %v1873
        %v2006 = vunpack.c.h.b16 %v1873
        %v2007 = vunpack.c.l.b16 %v1874
        %v2008 = vunpack.c.h.b16 %v1874
        %v2009 = vunpack.c.l.b16 %v1875
        %v2010 = vunpack.c.h.b16 %v1875
        %v2011 = vunpack.c.l.b16 %v1876
        %v2012 = vunpack.c.h.b16 %v1876
        %v2013 = vunpack.c.l.b16 %v1877
        %v2014 = vunpack.c.h.b16 %v1877
        %v2015 = vunpack.c.l.b16 %v1878
        %v2016 = vunpack.c.h.b16 %v1878
        %v2017 = vunpack.c.l.b16 %v1879
        %v2018 = vunpack.c.h.b16 %v1879
        %v2019 = vunpack.c.l.b16 %v1880
        %v2020 = vunpack.c.h.b16 %v1880
        %v2021 = vunpack.c.l.b16 %v1881
        %v2022 = vunpack.c.h.b16 %v1881
        %v2023 = vunpack.c.l.b16 %v1882
        %v2024 = vunpack.c.h.b16 %v1882
        %v2025 = vunpack.c.l.b16 %v1883
        %v2026 = vunpack.c.h.b16 %v1883
        %v2027 = vunpack.c.l.b16 %v1884
        %v2028 = vunpack.c.h.b16 %v1884
        %v2029 = vunpack.c.l.b16 %v1885
        %v2030 = vunpack.c.h.b16 %v1885
        %v2031 = vunpack.c.l.b16 %v1886
        %v2032 = vunpack.c.h.b16 %v1886
        %v2033 = vunpack.c.l.b16 %v1887
        %v2034 = vunpack.c.h.b16 %v1887
        %v2035 = vunpack.c.l.b16 %v1888
        %v2036 = vunpack.c.h.b16 %v1888
        %v2037 = vunpack.c.l.b16 %v1889
        %v2038 = vunpack.c.h.b16 %v1889
        %v2039 = vunpack.c.l.b16 %v1890
        %v2040 = vunpack.c.h.b16 %v1890
        %v2041 = vunpack.c.l.b16 %v1891
        %v2042 = vunpack.c.h.b16 %v1891
        %v2043 = vunpack.c.l.b16 %v1892
        %v2044 = vunpack.c.h.b16 %v1892
        %v2045 = vunpack.c.l.b16 %v1893
        %v2046 = vunpack.c.h.b16 %v1893
        %v2047 = vunpack.c.l.b16 %v1894
        %v2048 = vunpack.c.h.b16 %v1894
        %v2049 = vunpack.c.l.b16 %v1895
        %v2050 = vunpack.c.h.b16 %v1895
        %v2051 = vunpack.c.l.b16 %v1896
        %v2052 = vunpack.c.h.b16 %v1896
        %v2053 = vunpack.c.l.b16 %v1897
        %v2054 = vunpack.c.h.b16 %v1897
        %v2055 = vunpack.c.l.b16 %v1898
        %v2056 = vunpack.c.h.b16 %v1898
        %v2057 = vunpack.c.l.b16 %v1899
        %v2058 = vunpack.c.h.b16 %v1899
        %v2059 = vunpack.c.l.b16 %v1900
        %v2060 = vunpack.c.h.b16 %v1900
        %v2061 = vunpack.c.l.b16 %v1901
        %v2062 = vunpack.c.h.b16 %v1901
        %v2063 = vunpack.c.l.b16 %v1902
        %v2064 = vunpack.c.h.b16 %v1902
        %v2065 = vunpack.c.l.b16 %v1903
        %v2066 = vunpack.c.h.b16 %v1903
        %v2067 = vunpack.c.l.b16 %v1904
        %v2068 = vunpack.c.h.b16 %v1904
        %v2069 = vunpack.c.l.b16 %v1905
        %v2070 = vunpack.c.h.b16 %v1905
        %v2071 = vunpack.c.l.b16 %v1906
        %v2072 = vunpack.c.h.b16 %v1906
        %v2073 = vunpack.c.l.b16 %v1907
        %v2074 = vunpack.c.h.b16 %v1907
        %v2075 = vunpack.c.l.b16 %v1908
        %v2076 = vunpack.c.h.b16 %v1908
        %v2077 = vunpack.c.l.b16 %v1909
        %v2078 = vunpack.c.h.b16 %v1909
        %v2079 = vunpack.c.l.b16 %v1910
        %v2080 = vunpack.c.h.b16 %v1910
        %v2081 = vunpack.c.l.b16 %v1911
        %v2082 = vunpack.c.h.b16 %v1911
        %v2083 = vunpack.c.l.b16 %v1912
        %v2084 = vunpack.c.h.b16 %v1912
        %v2085 = vunpack.c.l.b16 %v1913
        %v2086 = vunpack.c.h.b16 %v1913
        %v2087 = vunpack.c.l.b16 %v1914
        %v2088 = vunpack.c.h.b16 %v1914
        %v2089 = vunpack.c.l.b16 %v1915
        %v2090 = vunpack.c.h.b16 %v1915
        %v2091 = vunpack.c.l.b16 %v1916
        %v2092 = vunpack.c.h.b16 %v1916
        %v2093 = vunpack.c.l.b16 %v1917
        %v2094 = vunpack.c.h.b16 %v1917
        %v2095 = vunpack.c.l.b16 %v1918
        %v2096 = vunpack.c.h.b16 %v1918
        %v2097 = vunpack.c.l.b16 %v1919
        %v2098 = vunpack.c.h.b16 %v1919
        %v2099 = vunpack.c.l.b16 %v1920
        %v2100 = vunpack.c.h.b16 %v1920
        %v2101 = vunpack.c.l.b16 %v1921
        %v2102 = vunpack.c.h.b16 %v1921
        %v2103 = vunpack.c.l.b16 %v1922
        %v2104 = vunpack.c.h.b16 %v1922
        %v2105 = vunpack.c.l.b16 %v1923
        %v2106 = vunpack.c.h.b16 %v1923
        %v2107 = vunpack.c.l.b16 %v1924
        %v2108 = vunpack.c.h.b16 %v1924
        %v2109 = vunpack.c.l.b16 %v1925
        %v2110 = vunpack.c.h.b16 %v1925
        %v2111 = vunpack.c.l.b16 %v1926
        %v2112 = vunpack.c.h.b16 %v1926
        %v2113 = vunpack.c.l.b16 %v1927
        %v2114 = vunpack.c.h.b16 %v1927
        %v2115 = vunpack.c.l.b16 %v1928
        %v2116 = vunpack.c.h.b16 %v1928
        %v2117 = vunpack.c.l.b16 %v1929
        %v2118 = vunpack.c.h.b16 %v1929
        %v2119 = vunpack.c.l.b16 %v1930
        %v2120 = vunpack.c.h.b16 %v1930
        %v2121 = vunpack.c.l.b16 %v1931
        %v2122 = vunpack.c.h.b16 %v1931
        %v2123 = vunpack.c.l.b16 %v1932
        %v2124 = vunpack.c.h.b16 %v1932
        %v2125 = vpack.c.b16 %v1999, %v1997
        %v2126 = vpack.c.b16 %v2000, %v1998
        %v2127 = vpack.c.b16 %v2003, %v2001
        %v2128 = vpack.c.b16 %v2004, %v2002
        %v2129 = vpack.c.b16 %v2007, %v2005
        %v2130 = vpack.c.b16 %v2008, %v2006
        %v2131 = vpack.c.b16 %v2011, %v2009
        %v2132 = vpack.c.b16 %v2012, %v2010
        %v2133 = vpack.c.b16 %v2015, %v2013
        %v2134 = vpack.c.b16 %v2016, %v2014
        %v2135 = vpack.c.b16 %v2019, %v2017
        %v2136 = vpack.c.b16 %v2020, %v2018
        %v2137 = vpack.c.b16 %v2023, %v2021
        %v2138 = vpack.c.b16 %v2024, %v2022
        %v2139 = vpack.c.b16 %v2027, %v2025
        %v2140 = vpack.c.b16 %v2028, %v2026
        %v2141 = vpack.c.b16 %v2031, %v2029
        %v2142 = vpack.c.b16 %v2032, %v2030
        %v2143 = vpack.c.b16 %v2035, %v2033
        %v2144 = vpack.c.b16 %v2036, %v2034
        %v2145 = vpack.c.b16 %v2039, %v2037
        %v2146 = vpack.c.b16 %v2040, %v2038
        %v2147 = vpack.c.b16 %v2043, %v2041
        %v2148 = vpack.c.b16 %v2044, %v2042
        %v2149 = vpack.c.b16 %v2047, %v2045
        %v2150 = vpack.c.b16 %v2048, %v2046
        %v2151 = vpack.c.b16 %v2051, %v2049
        %v2152 = vpack.c.b16 %v2052, %v2050
        %v2153 = vpack.c.b16 %v2055, %v2053
        %v2154 = vpack.c.b16 %v2056, %v2054
        %v2155 = vpack.c.b16 %v2059, %v2057
        %v2156 = vpack.c.b16 %v2060, %v2058
        %v2157 = vpack.c.b16 %v2063, %v2061
        %v2158 = vpack.c.b16 %v2064, %v2062
        %v2159 = vpack.c.b16 %v2067, %v2065
        %v2160 = vpack.c.b16 %v2068, %v2066
        %v2161 = vpack.c.b16 %v2071, %v2069
        %v2162 = vpack.c.b16 %v2072, %v2070
        %v2163 = vpack.c.b16 %v2075, %v2073
        %v2164 = vpack.c.b16 %v2076, %v2074
        %v2165 = vpack.c.b16 %v2079, %v2077
        %v2166 = vpack.c.b16 %v2080, %v2078
        %v2167 = vpack.c.b16 %v2083, %v2081
        %v2168 = vpack.c.b16 %v2084, %v2082
        %v2169 = vpack.c.b16 %v2087, %v2085
        %v2170 = vpack.c.b16 %v2088, %v2086
        %v2171 = vpack.c.b16 %v2091, %v2089
        %v2172 = vpack.c.b16 %v2092, %v2090
        %v2173 = vpack.c.b16 %v2095, %v2093
        %v2174 = vpack.c.b16 %v2096, %v2094
        %v2175 = vpack.c.b16 %v2099, %v2097
        %v2176 = vpack.c.b16 %v2100, %v2098
        %v2177 = vpack.c.b16 %v2103, %v2101
        %v2178 = vpack.c.b16 %v2104, %v2102
        %v2179 = vpack.c.b16 %v2107, %v2105
        %v2180 = vpack.c.b16 %v2108, %v2106
        %v2181 = vpack.c.b16 %v2111, %v2109
        %v2182 = vpack.c.b16 %v2112, %v2110
        %v2183 = vpack.c.b16 %v2115, %v2113
        %v2184 = vpack.c.b16 %v2116, %v2114
        %v2185 = vpack.c.b16 %v2119, %v2117
        %v2186 = vpack.c.b16 %v2120, %v2118
        %v2187 = vpack.c.b16 %v2123, %v2121
        %v2188 = vpack.c.b16 %v2124, %v2122
        %2253 = vmatpush.bf16.msra.mxu0 %v2139
        %2254 = vmatpush.bf16.msra.mxu0 %v2137
        %2255 = vmatpush.bf16.msra.mxu0 %v2135
        %2256 = vmatpush.bf16.msra.mxu0 %v2133
        %2257 = vmatpush.bf16.msra.mxu0 %v2131
        %2258 = vmatpush.bf16.msra.mxu0 %v2129
        %2259 = vmatpush.bf16.msra.mxu0 %v2127
        %2260 = vmatpush.bf16.msra.mxu0 %v2125
        %2261 = vmatmul.bf16.gmra.mxu0 %v1853
        %v2262 = vpop.f32.mrf.mxu0
        %v2263 = vadd.f32 0.0, %v2262
        %v2264 = vpop.f32.mrf.mxu0
        %v2265 = vadd.f32 0.0, %v2264
        %2266 = vmatmul.bf16.gmra.mxu0 %v1857
        %v2267 = vpop.f32.mrf.mxu0
        %v2268 = vadd.f32 0.0, %v2267
        %v2269 = vpop.f32.mrf.mxu0
        %v2270 = vadd.f32 0.0, %v2269
        %2271 = vmatmul.bf16.gmra.mxu0 %v1861
        %v2272 = vpop.f32.mrf.mxu0
        %v2273 = vadd.f32 0.0, %v2272
        %v2274 = vpop.f32.mrf.mxu0
        %v2275 = vadd.f32 0.0, %v2274
        %2276 = vmatmul.bf16.gmra.mxu0 %v1865
        %v2277 = vpop.f32.mrf.mxu0
        %v2278 = vadd.f32 0.0, %v2277
        %v2279 = vpop.f32.mrf.mxu0
        %v2280 = vadd.f32 0.0, %v2279
        %2281 = vdwg.mxu0
        %2282 = vmatpush.bf16.msra.mxu0 %v2155
        %2283 = vmatpush.bf16.msra.mxu0 %v2153
        %2284 = vmatpush.bf16.msra.mxu0 %v2151
        %2285 = vmatpush.bf16.msra.mxu0 %v2149
        %2286 = vmatpush.bf16.msra.mxu0 %v2147
        %2287 = vmatpush.bf16.msra.mxu0 %v2145
        %2288 = vmatpush.bf16.msra.mxu0 %v2143
        %2289 = vmatpush.bf16.msra.mxu0 %v2141
        %2290 = vmatmul.bf16.gmra.mxu0 %v1854
        %v2291 = vpop.f32.mrf.mxu0
        %v2292 = vadd.f32 %v2263, %v2291
        %v2293 = vpop.f32.mrf.mxu0
        %v2294 = vadd.f32 %v2265, %v2293
        %2295 = vmatmul.bf16.gmra.mxu0 %v1858
        %v2296 = vpop.f32.mrf.mxu0
        %v2297 = vadd.f32 %v2268, %v2296
        %v2298 = vpop.f32.mrf.mxu0
        %v2299 = vadd.f32 %v2270, %v2298
        %2300 = vmatmul.bf16.gmra.mxu0 %v1862
        %v2301 = vpop.f32.mrf.mxu0
        %v2302 = vadd.f32 %v2273, %v2301
        %v2303 = vpop.f32.mrf.mxu0
        %v2304 = vadd.f32 %v2275, %v2303
        %2305 = vmatmul.bf16.gmra.mxu0 %v1866
        %v2306 = vpop.f32.mrf.mxu0
        %v2307 = vadd.f32 %v2278, %v2306
        %v2308 = vpop.f32.mrf.mxu0
        %v2309 = vadd.f32 %v2280, %v2308
        %2310 = vdwg.mxu0
        %2311 = vmatpush.bf16.msra.mxu0 %v2171
        %2312 = vmatpush.bf16.msra.mxu0 %v2169
        %2313 = vmatpush.bf16.msra.mxu0 %v2167
        %2314 = vmatpush.bf16.msra.mxu0 %v2165
        %2315 = vmatpush.bf16.msra.mxu0 %v2163
        %2316 = vmatpush.bf16.msra.mxu0 %v2161
        %2317 = vmatpush.bf16.msra.mxu0 %v2159
        %2318 = vmatpush.bf16.msra.mxu0 %v2157
        %2319 = vmatmul.bf16.gmra.mxu0 %v1855
        %v2320 = vpop.f32.mrf.mxu0
        %v2321 = vadd.f32 %v2292, %v2320
        %v2322 = vpop.f32.mrf.mxu0
        %v2323 = vadd.f32 %v2294, %v2322
        %2324 = vmatmul.bf16.gmra.mxu0 %v1859
        %v2325 = vpop.f32.mrf.mxu0
        %v2326 = vadd.f32 %v2297, %v2325
        %v2327 = vpop.f32.mrf.mxu0
        %v2328 = vadd.f32 %v2299, %v2327
        %2329 = vmatmul.bf16.gmra.mxu0 %v1863
        %v2330 = vpop.f32.mrf.mxu0
        %v2331 = vadd.f32 %v2302, %v2330
        %v2332 = vpop.f32.mrf.mxu0
        %v2333 = vadd.f32 %v2304, %v2332
        %2334 = vmatmul.bf16.gmra.mxu0 %v1867
        %v2335 = vpop.f32.mrf.mxu0
        %v2336 = vadd.f32 %v2307, %v2335
        %v2337 = vpop.f32.mrf.mxu0
        %v2338 = vadd.f32 %v2309, %v2337
        %2339 = vdwg.mxu0
        %2340 = vmatpush.bf16.msra.mxu0 %v2187
        %2341 = vmatpush.bf16.msra.mxu0 %v2185
        %2342 = vmatpush.bf16.msra.mxu0 %v2183
        %2343 = vmatpush.bf16.msra.mxu0 %v2181
        %2344 = vmatpush.bf16.msra.mxu0 %v2179
        %2345 = vmatpush.bf16.msra.mxu0 %v2177
        %2346 = vmatpush.bf16.msra.mxu0 %v2175
        %2347 = vmatpush.bf16.msra.mxu0 %v2173
        %2348 = vmatmul.bf16.gmra.mxu0 %v1856
        %v2349 = vpop.f32.mrf.mxu0
        %v2350 = vadd.f32 %v2321, %v2349
        %v2351 = vpop.f32.mrf.mxu0
        %v2352 = vadd.f32 %v2323, %v2351
        %2353 = vmatmul.bf16.gmra.mxu0 %v1860
        %v2354 = vpop.f32.mrf.mxu0
        %v2355 = vadd.f32 %v2326, %v2354
        %v2356 = vpop.f32.mrf.mxu0
        %v2357 = vadd.f32 %v2328, %v2356
        %2358 = vmatmul.bf16.gmra.mxu0 %v1864
        %v2359 = vpop.f32.mrf.mxu0
        %v2360 = vadd.f32 %v2331, %v2359
        %v2361 = vpop.f32.mrf.mxu0
        %v2362 = vadd.f32 %v2333, %v2361
        %2363 = vmatmul.bf16.gmra.mxu0 %v1868
        %v2364 = vpop.f32.mrf.mxu0
        %v2365 = vadd.f32 %v2336, %v2364
        %v2366 = vpop.f32.mrf.mxu0
        %v2367 = vadd.f32 %v2338, %v2366
        %2368 = vdwg.mxu0
        %2369 = vmatpush.bf16.msra.mxu0 %v2140
        %2370 = vmatpush.bf16.msra.mxu0 %v2138
        %2371 = vmatpush.bf16.msra.mxu0 %v2136
        %2372 = vmatpush.bf16.msra.mxu0 %v2134
        %2373 = vmatpush.bf16.msra.mxu0 %v2132
        %2374 = vmatpush.bf16.msra.mxu0 %v2130
        %2375 = vmatpush.bf16.msra.mxu0 %v2128
        %2376 = vmatpush.bf16.msra.mxu0 %v2126
        %2377 = vmatmul.bf16.gmra.mxu0 %v1853
        %v2378 = vpop.f32.mrf.mxu0
        %v2379 = vadd.f32 0.0, %v2378
        %v2380 = vpop.f32.mrf.mxu0
        %v2381 = vadd.f32 0.0, %v2380
        %2382 = vmatmul.bf16.gmra.mxu0 %v1857
        %v2383 = vpop.f32.mrf.mxu0
        %v2384 = vadd.f32 0.0, %v2383
        %v2385 = vpop.f32.mrf.mxu0
        %v2386 = vadd.f32 0.0, %v2385
        %2387 = vmatmul.bf16.gmra.mxu0 %v1861
        %v2388 = vpop.f32.mrf.mxu0
        %v2389 = vadd.f32 0.0, %v2388
        %v2390 = vpop.f32.mrf.mxu0
        %v2391 = vadd.f32 0.0, %v2390
        %2392 = vmatmul.bf16.gmra.mxu0 %v1865
        %v2393 = vpop.f32.mrf.mxu0
        %v2394 = vadd.f32 0.0, %v2393
        %v2395 = vpop.f32.mrf.mxu0
        %v2396 = vadd.f32 0.0, %v2395
        %2397 = vdwg.mxu0
        %2398 = vmatpush.bf16.msra.mxu0 %v2156
        %2399 = vmatpush.bf16.msra.mxu0 %v2154
        %2400 = vmatpush.bf16.msra.mxu0 %v2152
        %2401 = vmatpush.bf16.msra.mxu0 %v2150
        %2402 = vmatpush.bf16.msra.mxu0 %v2148
        %2403 = vmatpush.bf16.msra.mxu0 %v2146
        %2404 = vmatpush.bf16.msra.mxu0 %v2144
        %2405 = vmatpush.bf16.msra.mxu0 %v2142
        %2406 = vmatmul.bf16.gmra.mxu0 %v1854
        %v2407 = vpop.f32.mrf.mxu0
        %v2408 = vadd.f32 %v2379, %v2407
        %v2409 = vpop.f32.mrf.mxu0
        %v2410 = vadd.f32 %v2381, %v2409
        %2411 = vmatmul.bf16.gmra.mxu0 %v1858
        %v2412 = vpop.f32.mrf.mxu0
        %v2413 = vadd.f32 %v2384, %v2412
        %v2414 = vpop.f32.mrf.mxu0
        %v2415 = vadd.f32 %v2386, %v2414
        %2416 = vmatmul.bf16.gmra.mxu0 %v1862
        %v2417 = vpop.f32.mrf.mxu0
        %v2418 = vadd.f32 %v2389, %v2417
        %v2419 = vpop.f32.mrf.mxu0
        %v2420 = vadd.f32 %v2391, %v2419
        %2421 = vmatmul.bf16.gmra.mxu0 %v1866
        %v2422 = vpop.f32.mrf.mxu0
        %v2423 = vadd.f32 %v2394, %v2422
        %v2424 = vpop.f32.mrf.mxu0
        %v2425 = vadd.f32 %v2396, %v2424
        %2426 = vdwg.mxu0
        %2427 = vmatpush.bf16.msra.mxu0 %v2172
        %2428 = vmatpush.bf16.msra.mxu0 %v2170
        %2429 = vmatpush.bf16.msra.mxu0 %v2168
        %2430 = vmatpush.bf16.msra.mxu0 %v2166
        %2431 = vmatpush.bf16.msra.mxu0 %v2164
        %2432 = vmatpush.bf16.msra.mxu0 %v2162
        %2433 = vmatpush.bf16.msra.mxu0 %v2160
        %2434 = vmatpush.bf16.msra.mxu0 %v2158
        %2435 = vmatmul.bf16.gmra.mxu0 %v1855
        %v2436 = vpop.f32.mrf.mxu0
        %v2437 = vadd.f32 %v2408, %v2436
        %v2438 = vpop.f32.mrf.mxu0
        %v2439 = vadd.f32 %v2410, %v2438
        %2440 = vmatmul.bf16.gmra.mxu0 %v1859
        %v2441 = vpop.f32.mrf.mxu0
        %v2442 = vadd.f32 %v2413, %v2441
        %v2443 = vpop.f32.mrf.mxu0
        %v2444 = vadd.f32 %v2415, %v2443
        %2445 = vmatmul.bf16.gmra.mxu0 %v1863
        %v2446 = vpop.f32.mrf.mxu0
        %v2447 = vadd.f32 %v2418, %v2446
        %v2448 = vpop.f32.mrf.mxu0
        %v2449 = vadd.f32 %v2420, %v2448
        %2450 = vmatmul.bf16.gmra.mxu0 %v1867
        %v2451 = vpop.f32.mrf.mxu0
        %v2452 = vadd.f32 %v2423, %v2451
        %v2453 = vpop.f32.mrf.mxu0
        %v2454 = vadd.f32 %v2425, %v2453
        %2455 = vdwg.mxu0
        %2456 = vmatpush.bf16.msra.mxu0 %v2188
        %2457 = vmatpush.bf16.msra.mxu0 %v2186
        %2458 = vmatpush.bf16.msra.mxu0 %v2184
        %2459 = vmatpush.bf16.msra.mxu0 %v2182
        %2460 = vmatpush.bf16.msra.mxu0 %v2180
        %2461 = vmatpush.bf16.msra.mxu0 %v2178
        %2462 = vmatpush.bf16.msra.mxu0 %v2176
        %2463 = vmatpush.bf16.msra.mxu0 %v2174
        %2464 = vmatmul.bf16.gmra.mxu0 %v1856
        %v2465 = vpop.f32.mrf.mxu0
        %v2466 = vadd.f32 %v2437, %v2465
        %v2467 = vpop.f32.mrf.mxu0
        %v2468 = vadd.f32 %v2439, %v2467
        %2469 = vmatmul.bf16.gmra.mxu0 %v1860
        %v2470 = vpop.f32.mrf.mxu0
        %v2471 = vadd.f32 %v2442, %v2470
        %v2472 = vpop.f32.mrf.mxu0
        %v2473 = vadd.f32 %v2444, %v2472
        %2474 = vmatmul.bf16.gmra.mxu0 %v1864
        %v2475 = vpop.f32.mrf.mxu0
        %v2476 = vadd.f32 %v2447, %v2475
        %v2477 = vpop.f32.mrf.mxu0
        %v2478 = vadd.f32 %v2449, %v2477
        %2479 = vmatmul.bf16.gmra.mxu0 %v1868
        %v2480 = vpop.f32.mrf.mxu0
        %v2481 = vadd.f32 %v2452, %v2480
        %v2482 = vpop.f32.mrf.mxu0
        %v2483 = vadd.f32 %v2454, %v2482
        %2484 = vdwg.mxu0
        %v2485 = vld [vmem:[%s8] sm:$0xff]
        %v2486 = vld [vmem:[%s8 + $0x8] sm:$0xff]
        %v2487 = vld [vmem:[%s8 + $0x10] sm:$0xff]
        %v2488 = vld [vmem:[%s8 + $0x18] sm:$0xff]
        %v2489 = vld [vmem:[%s8 + $0x20] sm:$0xff]
        %v2490 = vld [vmem:[%s8 + $0x28] sm:$0xff]
        %v2491 = vld [vmem:[%s8 + $0x30] sm:$0xff]
        %v2492 = vld [vmem:[%s8 + $0x38] sm:$0xff]
        %v2493 = vld [vmem:[%s8 + $0x40] sm:$0xff]
        %v2494 = vld [vmem:[%s8 + $0x48] sm:$0xff]
        %v2495 = vld [vmem:[%s8 + $0x50] sm:$0xff]
        %v2496 = vld [vmem:[%s8 + $0x58] sm:$0xff]
        %v2497 = vld [vmem:[%s8 + $0x60] sm:$0xff]
        %v2498 = vld [vmem:[%s8 + $0x68] sm:$0xff]
        %v2499 = vld [vmem:[%s8 + $0x70] sm:$0xff]
        %v2500 = vld [vmem:[%s8 + $0x78] sm:$0xff]
        %v2501 = vld [vmem:[%s8 + $0x80] sm:$0xff]
        %v2502 = vld [vmem:[%s8 + $0x88] sm:$0xff]
        %v2503 = vld [vmem:[%s8 + $0x90] sm:$0xff]
        %v2504 = vld [vmem:[%s8 + $0x98] sm:$0xff]
        %v2505 = vld [vmem:[%s8 + $0xa0] sm:$0xff]
        %v2506 = vld [vmem:[%s8 + $0xa8] sm:$0xff]
        %v2507 = vld [vmem:[%s8 + $0xb0] sm:$0xff]
        %v2508 = vld [vmem:[%s8 + $0xb8] sm:$0xff]
        %v2509 = vld [vmem:[%s8 + $0xc0] sm:$0xff]
        %v2510 = vld [vmem:[%s8 + $0xc8] sm:$0xff]
        %v2511 = vld [vmem:[%s8 + $0xd0] sm:$0xff]
        %v2512 = vld [vmem:[%s8 + $0xd8] sm:$0xff]
        %v2513 = vld [vmem:[%s8 + $0xe0] sm:$0xff]
        %v2514 = vld [vmem:[%s8 + $0xe8] sm:$0xff]
        %v2515 = vld [vmem:[%s8 + $0xf0] sm:$0xff]
        %v2516 = vld [vmem:[%s8 + $0xf8] sm:$0xff]
        %v2518 = vsel %vm457, %v2485, 0
        %v2521 = vsel %vm457, %v2486, 0
        %v2524 = vsel %vm457, %v2487, 0
        %v2527 = vsel %vm457, %v2488, 0
        %v2530 = vsel %vm457, %v2489, 0
        %v2533 = vsel %vm457, %v2490, 0
        %v2536 = vsel %vm457, %v2491, 0
        %v2539 = vsel %vm457, %v2492, 0
        %v2542 = vsel %vm457, %v2493, 0
        %v2545 = vsel %vm457, %v2494, 0
        %v2548 = vsel %vm457, %v2495, 0
        %v2551 = vsel %vm457, %v2496, 0
        %v2554 = vsel %vm457, %v2497, 0
        %v2557 = vsel %vm457, %v2498, 0
        %v2560 = vsel %vm457, %v2499, 0
        %v2563 = vsel %vm457, %v2500, 0
        %v2566 = vsel %vm457, %v2501, 0
        %v2569 = vsel %vm457, %v2502, 0
        %v2572 = vsel %vm457, %v2503, 0
        %v2575 = vsel %vm457, %v2504, 0
        %v2578 = vsel %vm457, %v2505, 0
        %v2581 = vsel %vm457, %v2506, 0
        %v2584 = vsel %vm457, %v2507, 0
        %v2587 = vsel %vm457, %v2508, 0
        %v2590 = vsel %vm457, %v2509, 0
        %v2593 = vsel %vm457, %v2510, 0
        %v2596 = vsel %vm457, %v2511, 0
        %v2599 = vsel %vm457, %v2512, 0
        %v2602 = vsel %vm457, %v2513, 0
        %v2605 = vsel %vm457, %v2514, 0
        %v2608 = vsel %vm457, %v2515, 0
        %v2611 = vsel %vm457, %v2516, 0
        %2613 = vmatpush.msra.mxu0 0.0
        %2614 = vmatpush.msra.mxu0 0.0
        %2615 = vmatpush.msra.mxu0 0.0
        %2616 = vmatpush.msra.mxu0 0.0
        %2617 = vmatpush.msra.mxu0 0.0
        %2618 = vmatpush.msra.mxu0 0.0
        %2619 = vmatpush.msra.mxu0 0.0
        %2620 = vmatpush.msra.mxu0 0.0
        %2621 = vmatpush.msra.mxu0 %v2367
        %2622 = vmatpush.msra.mxu0 %v2365
        %2623 = vmatpush.msra.mxu0 %v2362
        %2624 = vmatpush.msra.mxu0 %v2360
        %2625 = vmatpush.msra.mxu0 %v2357
        %2626 = vmatpush.msra.mxu0 %v2355
        %2627 = vmatpush.msra.mxu0 %v2352
        %2628 = vmatpush.msra.mxu0 %v2350
        %2629 = vmatmul.f32.gmra.mxu0 %v2518
        %v2630 = vpop.f32.mrf.mxu0
        %v2631 = vadd.f32 0.0, %v2630
        %2632 = vmatmul.f32.gmra.mxu0 %v2521
        %v2633 = vpop.f32.mrf.mxu0
        %v2634 = vadd.f32 0.0, %v2633
        %2635 = vmatmul.f32.gmra.mxu0 %v2524
        %v2636 = vpop.f32.mrf.mxu0
        %v2637 = vadd.f32 0.0, %v2636
        %2638 = vmatmul.f32.gmra.mxu0 %v2527
        %v2639 = vpop.f32.mrf.mxu0
        %v2640 = vadd.f32 0.0, %v2639
        %2641 = vmatmul.f32.gmra.mxu0 %v2530
        %v2642 = vpop.f32.mrf.mxu0
        %v2643 = vadd.f32 0.0, %v2642
        %2644 = vmatmul.f32.gmra.mxu0 %v2533
        %v2645 = vpop.f32.mrf.mxu0
        %v2646 = vadd.f32 0.0, %v2645
        %2647 = vmatmul.f32.gmra.mxu0 %v2536
        %v2648 = vpop.f32.mrf.mxu0
        %v2649 = vadd.f32 0.0, %v2648
        %2650 = vmatmul.f32.gmra.mxu0 %v2539
        %v2651 = vpop.f32.mrf.mxu0
        %v2652 = vadd.f32 0.0, %v2651
        %2653 = vmatmul.f32.gmra.mxu0 %v2542
        %v2654 = vpop.f32.mrf.mxu0
        %v2655 = vadd.f32 0.0, %v2654
        %2656 = vmatmul.f32.gmra.mxu0 %v2545
        %v2657 = vpop.f32.mrf.mxu0
        %v2658 = vadd.f32 0.0, %v2657
        %2659 = vmatmul.f32.gmra.mxu0 %v2548
        %v2660 = vpop.f32.mrf.mxu0
        %v2661 = vadd.f32 0.0, %v2660
        %2662 = vmatmul.f32.gmra.mxu0 %v2551
        %v2663 = vpop.f32.mrf.mxu0
        %v2664 = vadd.f32 0.0, %v2663
        %2665 = vmatmul.f32.gmra.mxu0 %v2554
        %v2666 = vpop.f32.mrf.mxu0
        %v2667 = vadd.f32 0.0, %v2666
        %2668 = vmatmul.f32.gmra.mxu0 %v2557
        %v2669 = vpop.f32.mrf.mxu0
        %v2670 = vadd.f32 0.0, %v2669
        %2671 = vmatmul.f32.gmra.mxu0 %v2560
        %v2672 = vpop.f32.mrf.mxu0
        %v2673 = vadd.f32 0.0, %v2672
        %2674 = vmatmul.f32.gmra.mxu0 %v2563
        %v2675 = vpop.f32.mrf.mxu0
        %v2676 = vadd.f32 0.0, %v2675
        %2677 = vmatmul.f32.gmra.mxu0 %v2566
        %v2678 = vpop.f32.mrf.mxu0
        %v2679 = vadd.f32 0.0, %v2678
        %2680 = vmatmul.f32.gmra.mxu0 %v2569
        %v2681 = vpop.f32.mrf.mxu0
        %v2682 = vadd.f32 0.0, %v2681
        %2683 = vmatmul.f32.gmra.mxu0 %v2572
        %v2684 = vpop.f32.mrf.mxu0
        %v2685 = vadd.f32 0.0, %v2684
        %2686 = vmatmul.f32.gmra.mxu0 %v2575
        %v2687 = vpop.f32.mrf.mxu0
        %v2688 = vadd.f32 0.0, %v2687
        %2689 = vmatmul.f32.gmra.mxu0 %v2578
        %v2690 = vpop.f32.mrf.mxu0
        %v2691 = vadd.f32 0.0, %v2690
        %2692 = vmatmul.f32.gmra.mxu0 %v2581
        %v2693 = vpop.f32.mrf.mxu0
        %v2694 = vadd.f32 0.0, %v2693
        %2695 = vmatmul.f32.gmra.mxu0 %v2584
        %v2696 = vpop.f32.mrf.mxu0
        %v2697 = vadd.f32 0.0, %v2696
        %2698 = vmatmul.f32.gmra.mxu0 %v2587
        %v2699 = vpop.f32.mrf.mxu0
        %v2700 = vadd.f32 0.0, %v2699
        %2701 = vmatmul.f32.gmra.mxu0 %v2590
        %v2702 = vpop.f32.mrf.mxu0
        %v2703 = vadd.f32 0.0, %v2702
        %2704 = vmatmul.f32.gmra.mxu0 %v2593
        %v2705 = vpop.f32.mrf.mxu0
        %v2706 = vadd.f32 0.0, %v2705
        %2707 = vmatmul.f32.gmra.mxu0 %v2596
        %v2708 = vpop.f32.mrf.mxu0
        %v2709 = vadd.f32 0.0, %v2708
        %2710 = vmatmul.f32.gmra.mxu0 %v2599
        %v2711 = vpop.f32.mrf.mxu0
        %v2712 = vadd.f32 0.0, %v2711
        %2713 = vmatmul.f32.gmra.mxu0 %v2602
        %v2714 = vpop.f32.mrf.mxu0
        %v2715 = vadd.f32 0.0, %v2714
        %2716 = vmatmul.f32.gmra.mxu0 %v2605
        %v2717 = vpop.f32.mrf.mxu0
        %v2718 = vadd.f32 0.0, %v2717
        %2719 = vmatmul.f32.gmra.mxu0 %v2608
        %v2720 = vpop.f32.mrf.mxu0
        %v2721 = vadd.f32 0.0, %v2720
        %2722 = vmatmul.f32.gmra.mxu0 %v2611
        %v2723 = vpop.f32.mrf.mxu0
        %v2724 = vadd.f32 0.0, %v2723
        %2725 = vdwg.mxu0
        %s2726 = scalar_lea.vmem %s8, 256
        %v2727 = vld [vmem:[%s2726] sm:$0xff]
        %v2728 = vld [vmem:[%s2726 + $0x8] sm:$0xff]
        %v2729 = vld [vmem:[%s2726 + $0x10] sm:$0xff]
        %v2730 = vld [vmem:[%s2726 + $0x18] sm:$0xff]
        %v2731 = vld [vmem:[%s2726 + $0x20] sm:$0xff]
        %v2732 = vld [vmem:[%s2726 + $0x28] sm:$0xff]
        %v2733 = vld [vmem:[%s2726 + $0x30] sm:$0xff]
        %v2734 = vld [vmem:[%s2726 + $0x38] sm:$0xff]
        %v2735 = vld [vmem:[%s2726 + $0x40] sm:$0xff]
        %v2736 = vld [vmem:[%s2726 + $0x48] sm:$0xff]
        %v2737 = vld [vmem:[%s2726 + $0x50] sm:$0xff]
        %v2738 = vld [vmem:[%s2726 + $0x58] sm:$0xff]
        %v2739 = vld [vmem:[%s2726 + $0x60] sm:$0xff]
        %v2740 = vld [vmem:[%s2726 + $0x68] sm:$0xff]
        %v2741 = vld [vmem:[%s2726 + $0x70] sm:$0xff]
        %v2742 = vld [vmem:[%s2726 + $0x78] sm:$0xff]
        %v2743 = vld [vmem:[%s2726 + $0x80] sm:$0xff]
        %v2744 = vld [vmem:[%s2726 + $0x88] sm:$0xff]
        %v2745 = vld [vmem:[%s2726 + $0x90] sm:$0xff]
        %v2746 = vld [vmem:[%s2726 + $0x98] sm:$0xff]
        %v2747 = vld [vmem:[%s2726 + $0xa0] sm:$0xff]
        %v2748 = vld [vmem:[%s2726 + $0xa8] sm:$0xff]
        %v2749 = vld [vmem:[%s2726 + $0xb0] sm:$0xff]
        %v2750 = vld [vmem:[%s2726 + $0xb8] sm:$0xff]
        %v2751 = vld [vmem:[%s2726 + $0xc0] sm:$0xff]
        %v2752 = vld [vmem:[%s2726 + $0xc8] sm:$0xff]
        %v2753 = vld [vmem:[%s2726 + $0xd0] sm:$0xff]
        %v2754 = vld [vmem:[%s2726 + $0xd8] sm:$0xff]
        %v2755 = vld [vmem:[%s2726 + $0xe0] sm:$0xff]
        %v2756 = vld [vmem:[%s2726 + $0xe8] sm:$0xff]
        %v2757 = vld [vmem:[%s2726 + $0xf0] sm:$0xff]
        %v2758 = vld [vmem:[%s2726 + $0xf8] sm:$0xff]
        %v2760 = vsel %vm457, %v2727, 0
        %v2763 = vsel %vm457, %v2728, 0
        %v2766 = vsel %vm457, %v2729, 0
        %v2769 = vsel %vm457, %v2730, 0
        %v2772 = vsel %vm457, %v2731, 0
        %v2775 = vsel %vm457, %v2732, 0
        %v2778 = vsel %vm457, %v2733, 0
        %v2781 = vsel %vm457, %v2734, 0
        %v2784 = vsel %vm457, %v2735, 0
        %v2787 = vsel %vm457, %v2736, 0
        %v2790 = vsel %vm457, %v2737, 0
        %v2793 = vsel %vm457, %v2738, 0
        %v2796 = vsel %vm457, %v2739, 0
        %v2799 = vsel %vm457, %v2740, 0
        %v2802 = vsel %vm457, %v2741, 0
        %v2805 = vsel %vm457, %v2742, 0
        %v2808 = vsel %vm457, %v2743, 0
        %v2811 = vsel %vm457, %v2744, 0
        %v2814 = vsel %vm457, %v2745, 0
        %v2817 = vsel %vm457, %v2746, 0
        %v2820 = vsel %vm457, %v2747, 0
        %v2823 = vsel %vm457, %v2748, 0
        %v2826 = vsel %vm457, %v2749, 0
        %v2829 = vsel %vm457, %v2750, 0
        %v2832 = vsel %vm457, %v2751, 0
        %v2835 = vsel %vm457, %v2752, 0
        %v2838 = vsel %vm457, %v2753, 0
        %v2841 = vsel %vm457, %v2754, 0
        %v2844 = vsel %vm457, %v2755, 0
        %v2847 = vsel %vm457, %v2756, 0
        %v2850 = vsel %vm457, %v2757, 0
        %v2853 = vsel %vm457, %v2758, 0
        %2855 = vmatpush.msra.mxu0 0.0
        %2856 = vmatpush.msra.mxu0 0.0
        %2857 = vmatpush.msra.mxu0 0.0
        %2858 = vmatpush.msra.mxu0 0.0
        %2859 = vmatpush.msra.mxu0 0.0
        %2860 = vmatpush.msra.mxu0 0.0
        %2861 = vmatpush.msra.mxu0 0.0
        %2862 = vmatpush.msra.mxu0 0.0
        %2863 = vmatpush.msra.mxu0 %v2483
        %2864 = vmatpush.msra.mxu0 %v2481
        %2865 = vmatpush.msra.mxu0 %v2478
        %2866 = vmatpush.msra.mxu0 %v2476
        %2867 = vmatpush.msra.mxu0 %v2473
        %2868 = vmatpush.msra.mxu0 %v2471
        %2869 = vmatpush.msra.mxu0 %v2468
        %2870 = vmatpush.msra.mxu0 %v2466
        %2871 = vmatmul.f32.gmra.mxu0 %v2760
        %v2872 = vpop.f32.mrf.mxu0
        %v2873 = vadd.f32 0.0, %v2872
        %2874 = vmatmul.f32.gmra.mxu0 %v2763
        %v2875 = vpop.f32.mrf.mxu0
        %v2876 = vadd.f32 0.0, %v2875
        %2877 = vmatmul.f32.gmra.mxu0 %v2766
        %v2878 = vpop.f32.mrf.mxu0
        %v2879 = vadd.f32 0.0, %v2878
        %2880 = vmatmul.f32.gmra.mxu0 %v2769
        %v2881 = vpop.f32.mrf.mxu0
        %v2882 = vadd.f32 0.0, %v2881
        %2883 = vmatmul.f32.gmra.mxu0 %v2772
        %v2884 = vpop.f32.mrf.mxu0
        %v2885 = vadd.f32 0.0, %v2884
        %2886 = vmatmul.f32.gmra.mxu0 %v2775
        %v2887 = vpop.f32.mrf.mxu0
        %v2888 = vadd.f32 0.0, %v2887
        %2889 = vmatmul.f32.gmra.mxu0 %v2778
        %v2890 = vpop.f32.mrf.mxu0
        %v2891 = vadd.f32 0.0, %v2890
        %2892 = vmatmul.f32.gmra.mxu0 %v2781
        %v2893 = vpop.f32.mrf.mxu0
        %v2894 = vadd.f32 0.0, %v2893
        %2895 = vmatmul.f32.gmra.mxu0 %v2784
        %v2896 = vpop.f32.mrf.mxu0
        %v2897 = vadd.f32 0.0, %v2896
        %2898 = vmatmul.f32.gmra.mxu0 %v2787
        %v2899 = vpop.f32.mrf.mxu0
        %v2900 = vadd.f32 0.0, %v2899
        %2901 = vmatmul.f32.gmra.mxu0 %v2790
        %v2902 = vpop.f32.mrf.mxu0
        %v2903 = vadd.f32 0.0, %v2902
        %2904 = vmatmul.f32.gmra.mxu0 %v2793
        %v2905 = vpop.f32.mrf.mxu0
        %v2906 = vadd.f32 0.0, %v2905
        %2907 = vmatmul.f32.gmra.mxu0 %v2796
        %v2908 = vpop.f32.mrf.mxu0
        %v2909 = vadd.f32 0.0, %v2908
        %2910 = vmatmul.f32.gmra.mxu0 %v2799
        %v2911 = vpop.f32.mrf.mxu0
        %v2912 = vadd.f32 0.0, %v2911
        %2913 = vmatmul.f32.gmra.mxu0 %v2802
        %v2914 = vpop.f32.mrf.mxu0
        %v2915 = vadd.f32 0.0, %v2914
        %2916 = vmatmul.f32.gmra.mxu0 %v2805
        %v2917 = vpop.f32.mrf.mxu0
        %v2918 = vadd.f32 0.0, %v2917
        %2919 = vmatmul.f32.gmra.mxu0 %v2808
        %v2920 = vpop.f32.mrf.mxu0
        %v2921 = vadd.f32 0.0, %v2920
        %2922 = vmatmul.f32.gmra.mxu0 %v2811
        %v2923 = vpop.f32.mrf.mxu0
        %v2924 = vadd.f32 0.0, %v2923
        %2925 = vmatmul.f32.gmra.mxu0 %v2814
        %v2926 = vpop.f32.mrf.mxu0
        %v2927 = vadd.f32 0.0, %v2926
        %2928 = vmatmul.f32.gmra.mxu0 %v2817
        %v2929 = vpop.f32.mrf.mxu0
        %v2930 = vadd.f32 0.0, %v2929
        %2931 = vmatmul.f32.gmra.mxu0 %v2820
        %v2932 = vpop.f32.mrf.mxu0
        %v2933 = vadd.f32 0.0, %v2932
        %2934 = vmatmul.f32.gmra.mxu0 %v2823
        %v2935 = vpop.f32.mrf.mxu0
        %v2936 = vadd.f32 0.0, %v2935
        %2937 = vmatmul.f32.gmra.mxu0 %v2826
        %v2938 = vpop.f32.mrf.mxu0
        %v2939 = vadd.f32 0.0, %v2938
        %2940 = vmatmul.f32.gmra.mxu0 %v2829
        %v2941 = vpop.f32.mrf.mxu0
        %v2942 = vadd.f32 0.0, %v2941
        %2943 = vmatmul.f32.gmra.mxu0 %v2832
        %v2944 = vpop.f32.mrf.mxu0
        %v2945 = vadd.f32 0.0, %v2944
        %2946 = vmatmul.f32.gmra.mxu0 %v2835
        %v2947 = vpop.f32.mrf.mxu0
        %v2948 = vadd.f32 0.0, %v2947
        %2949 = vmatmul.f32.gmra.mxu0 %v2838
        %v2950 = vpop.f32.mrf.mxu0
        %v2951 = vadd.f32 0.0, %v2950
        %2952 = vmatmul.f32.gmra.mxu0 %v2841
        %v2953 = vpop.f32.mrf.mxu0
        %v2954 = vadd.f32 0.0, %v2953
        %2955 = vmatmul.f32.gmra.mxu0 %v2844
        %v2956 = vpop.f32.mrf.mxu0
        %v2957 = vadd.f32 0.0, %v2956
        %2958 = vmatmul.f32.gmra.mxu0 %v2847
        %v2959 = vpop.f32.mrf.mxu0
        %v2960 = vadd.f32 0.0, %v2959
        %2961 = vmatmul.f32.gmra.mxu0 %v2850
        %v2962 = vpop.f32.mrf.mxu0
        %v2963 = vadd.f32 0.0, %v2962
        %2964 = vmatmul.f32.gmra.mxu0 %v2853
        %v2965 = vpop.f32.mrf.mxu0
        %v2966 = vadd.f32 0.0, %v2965
        %2967 = vdwg.mxu0
        %v2968 = vadd.f32 %v2631, %v2873
        %v2969 = vadd.f32 %v2634, %v2876
        %v2970 = vadd.f32 %v2637, %v2879
        %v2971 = vadd.f32 %v2640, %v2882
        %v2972 = vadd.f32 %v2643, %v2885
        %v2973 = vadd.f32 %v2646, %v2888
        %v2974 = vadd.f32 %v2649, %v2891
        %v2975 = vadd.f32 %v2652, %v2894
        %v2976 = vadd.f32 %v2655, %v2897
        %v2977 = vadd.f32 %v2658, %v2900
        %v2978 = vadd.f32 %v2661, %v2903
        %v2979 = vadd.f32 %v2664, %v2906
        %v2980 = vadd.f32 %v2667, %v2909
        %v2981 = vadd.f32 %v2670, %v2912
        %v2982 = vadd.f32 %v2673, %v2915
        %v2983 = vadd.f32 %v2676, %v2918
        %v2984 = vadd.f32 %v2679, %v2921
        %v2985 = vadd.f32 %v2682, %v2924
        %v2986 = vadd.f32 %v2685, %v2927
        %v2987 = vadd.f32 %v2688, %v2930
        %v2988 = vadd.f32 %v2691, %v2933
        %v2989 = vadd.f32 %v2694, %v2936
        %v2990 = vadd.f32 %v2697, %v2939
        %v2991 = vadd.f32 %v2700, %v2942
        %v2992 = vadd.f32 %v2703, %v2945
        %v2993 = vadd.f32 %v2706, %v2948
        %v2994 = vadd.f32 %v2709, %v2951
        %v2995 = vadd.f32 %v2712, %v2954
        %v2996 = vadd.f32 %v2715, %v2957
        %v2997 = vadd.f32 %v2718, %v2960
        %v2998 = vadd.f32 %v2721, %v2963
        %v2999 = vadd.f32 %v2724, %v2966
        %v3000 = vld [vmem:[%s7] sm:$0x1]
        %v3002 = vperm.slane %v3000, 0
        %v3004 = vadd.f32 %v2968, %v3002
        %v3005 = vadd.f32 %v2969, %v3002
        %v3006 = vmax.f32 %v3004, 0.0
        %v3007 = vmax.f32 %v3005, 0.0
        %3008 = vst.msk [vmem:[#allocation4] sm:$0xff] %vm457, %v3006
        %3009 = vst.msk [vmem:[#allocation4 + $0x8] sm:$0xff] %vm457, %v3007
        %3040 = vrot.lane.b32.xlu0 %v2968, 64
        %v3041 = vpop.permute.xlu0 %3040
        %3042 = vrot.lane.b32.xlu0 %v2969, 64
        %v3043 = vpop.permute.xlu0 %3042
        %3044 = vrot.lane.b32.xlu0 %v2970, 64
        %v3045 = vpop.permute.xlu0 %3044
        %3046 = vrot.lane.b32.xlu0 %v2971, 64
        %v3047 = vpop.permute.xlu0 %3046
        %3048 = vrot.lane.b32.xlu0 %v2972, 64
        %v3049 = vpop.permute.xlu0 %3048
        %3050 = vrot.lane.b32.xlu0 %v2973, 64
        %v3051 = vpop.permute.xlu0 %3050
        %3052 = vrot.lane.b32.xlu0 %v2974, 64
        %v3053 = vpop.permute.xlu0 %3052
        %3054 = vrot.lane.b32.xlu0 %v2975, 64
        %v3055 = vpop.permute.xlu0 %3054
        %3056 = vrot.lane.b32.xlu0 %v2976, 64
        %v3057 = vpop.permute.xlu0 %3056
        %3058 = vrot.lane.b32.xlu0 %v2977, 64
        %v3059 = vpop.permute.xlu0 %3058
        %3060 = vrot.lane.b32.xlu0 %v2978, 64
        %v3061 = vpop.permute.xlu0 %3060
        %3062 = vrot.lane.b32.xlu0 %v2979, 64
        %v3063 = vpop.permute.xlu0 %3062
        %3064 = vrot.lane.b32.xlu0 %v2980, 64
        %v3065 = vpop.permute.xlu0 %3064
        %3066 = vrot.lane.b32.xlu0 %v2981, 64
        %v3067 = vpop.permute.xlu0 %3066
        %3068 = vrot.lane.b32.xlu0 %v2982, 64
        %v3069 = vpop.permute.xlu0 %3068
        %3070 = vrot.lane.b32.xlu0 %v2983, 64
        %v3071 = vpop.permute.xlu0 %3070
        %3072 = vrot.lane.b32.xlu0 %v2984, 64
        %v3073 = vpop.permute.xlu0 %3072
        %3074 = vrot.lane.b32.xlu0 %v2985, 64
        %v3075 = vpop.permute.xlu0 %3074
        %3076 = vrot.lane.b32.xlu0 %v2986, 64
        %v3077 = vpop.permute.xlu0 %3076
        %3078 = vrot.lane.b32.xlu0 %v2987, 64
        %v3079 = vpop.permute.xlu0 %3078
        %3080 = vrot.lane.b32.xlu0 %v2988, 64
        %v3081 = vpop.permute.xlu0 %3080
        %3082 = vrot.lane.b32.xlu0 %v2989, 64
        %v3083 = vpop.permute.xlu0 %3082
        %3084 = vrot.lane.b32.xlu0 %v2990, 64
        %v3085 = vpop.permute.xlu0 %3084
        %3086 = vrot.lane.b32.xlu0 %v2991, 64
        %v3087 = vpop.permute.xlu0 %3086
        %3088 = vrot.lane.b32.xlu0 %v2992, 64
        %v3089 = vpop.permute.xlu0 %3088
        %3090 = vrot.lane.b32.xlu0 %v2993, 64
        %v3091 = vpop.permute.xlu0 %3090
        %3092 = vrot.lane.b32.xlu0 %v2994, 64
        %v3093 = vpop.permute.xlu0 %3092
        %3094 = vrot.lane.b32.xlu0 %v2995, 64
        %v3095 = vpop.permute.xlu0 %3094
        %3096 = vrot.lane.b32.xlu0 %v2996, 64
        %v3097 = vpop.permute.xlu0 %3096
        %3098 = vrot.lane.b32.xlu0 %v2997, 64
        %v3099 = vpop.permute.xlu0 %3098
        %v3130 = vadd.f32 %v2970, %v3041
        %v3131 = vadd.f32 %v2971, %v3043
        %v3132 = vadd.f32 %v2972, %v3045
        %v3133 = vadd.f32 %v2973, %v3047
        %v3134 = vadd.f32 %v2974, %v3049
        %v3135 = vadd.f32 %v2975, %v3051
        %v3136 = vadd.f32 %v2976, %v3053
        %v3137 = vadd.f32 %v2977, %v3055
        %v3138 = vadd.f32 %v2978, %v3057
        %v3139 = vadd.f32 %v2979, %v3059
        %v3140 = vadd.f32 %v2980, %v3061
        %v3141 = vadd.f32 %v2981, %v3063
        %v3142 = vadd.f32 %v2982, %v3065
        %v3143 = vadd.f32 %v2983, %v3067
        %v3144 = vadd.f32 %v2984, %v3069
        %v3145 = vadd.f32 %v2985, %v3071
        %v3146 = vadd.f32 %v2986, %v3073
        %v3147 = vadd.f32 %v2987, %v3075
        %v3148 = vadd.f32 %v2988, %v3077
        %v3149 = vadd.f32 %v2989, %v3079
        %v3150 = vadd.f32 %v2990, %v3081
        %v3151 = vadd.f32 %v2991, %v3083
        %v3152 = vadd.f32 %v2992, %v3085
        %v3153 = vadd.f32 %v2993, %v3087
        %v3154 = vadd.f32 %v2994, %v3089
        %v3155 = vadd.f32 %v2995, %v3091
        %v3156 = vadd.f32 %v2996, %v3093
        %v3157 = vadd.f32 %v2997, %v3095
        %v3158 = vadd.f32 %v2998, %v3097
        %v3159 = vadd.f32 %v2999, %v3099
        %v3160 = vadd.f32 %v3130, %v3002
        %v3161 = vadd.f32 %v3131, %v3002
        %v3162 = vadd.f32 %v3132, %v3002
        %v3163 = vadd.f32 %v3133, %v3002
        %v3164 = vadd.f32 %v3134, %v3002
        %v3165 = vadd.f32 %v3135, %v3002
        %v3166 = vadd.f32 %v3136, %v3002
        %v3167 = vadd.f32 %v3137, %v3002
        %v3168 = vadd.f32 %v3138, %v3002
        %v3169 = vadd.f32 %v3139, %v3002
        %v3170 = vadd.f32 %v3140, %v3002
        %v3171 = vadd.f32 %v3141, %v3002
        %v3172 = vadd.f32 %v3142, %v3002
        %v3173 = vadd.f32 %v3143, %v3002
        %v3174 = vadd.f32 %v3144, %v3002
        %v3175 = vadd.f32 %v3145, %v3002
        %v3176 = vadd.f32 %v3146, %v3002
        %v3177 = vadd.f32 %v3147, %v3002
        %v3178 = vadd.f32 %v3148, %v3002
        %v3179 = vadd.f32 %v3149, %v3002
        %v3180 = vadd.f32 %v3150, %v3002
        %v3181 = vadd.f32 %v3151, %v3002
        %v3182 = vadd.f32 %v3152, %v3002
        %v3183 = vadd.f32 %v3153, %v3002
        %v3184 = vadd.f32 %v3154, %v3002
        %v3185 = vadd.f32 %v3155, %v3002
        %v3186 = vadd.f32 %v3156, %v3002
        %v3187 = vadd.f32 %v3157, %v3002
        %v3188 = vadd.f32 %v3158, %v3002
        %v3189 = vadd.f32 %v3159, %v3002
        %v3190 = vmax.f32 %v3160, 0.0
        %v3191 = vmax.f32 %v3161, 0.0
        %v3192 = vmax.f32 %v3162, 0.0
        %v3193 = vmax.f32 %v3163, 0.0
        %v3194 = vmax.f32 %v3164, 0.0
        %v3195 = vmax.f32 %v3165, 0.0
        %v3196 = vmax.f32 %v3166, 0.0
        %v3197 = vmax.f32 %v3167, 0.0
        %v3198 = vmax.f32 %v3168, 0.0
        %v3199 = vmax.f32 %v3169, 0.0
        %v3200 = vmax.f32 %v3170, 0.0
        %v3201 = vmax.f32 %v3171, 0.0
        %v3202 = vmax.f32 %v3172, 0.0
        %v3203 = vmax.f32 %v3173, 0.0
        %v3204 = vmax.f32 %v3174, 0.0
        %v3205 = vmax.f32 %v3175, 0.0
        %v3206 = vmax.f32 %v3176, 0.0
        %v3207 = vmax.f32 %v3177, 0.0
        %v3208 = vmax.f32 %v3178, 0.0
        %v3209 = vmax.f32 %v3179, 0.0
        %v3210 = vmax.f32 %v3180, 0.0
        %v3211 = vmax.f32 %v3181, 0.0
        %v3212 = vmax.f32 %v3182, 0.0
        %v3213 = vmax.f32 %v3183, 0.0
        %v3214 = vmax.f32 %v3184, 0.0
        %v3215 = vmax.f32 %v3185, 0.0
        %v3216 = vmax.f32 %v3186, 0.0
        %v3217 = vmax.f32 %v3187, 0.0
        %v3218 = vmax.f32 %v3188, 0.0
        %v3219 = vmax.f32 %v3189, 0.0
        %3220 = vst.msk [vmem:[#allocation4 + $0x10] sm:$0xff] %vm457, %v3190
        %3221 = vst.msk [vmem:[#allocation4 + $0x18] sm:$0xff] %vm457, %v3191
        %3222 = vst.msk [vmem:[#allocation4 + $0x20] sm:$0xff] %vm457, %v3192
        %3223 = vst.msk [vmem:[#allocation4 + $0x28] sm:$0xff] %vm457, %v3193
        %3224 = vst.msk [vmem:[#allocation4 + $0x30] sm:$0xff] %vm457, %v3194
        %3225 = vst.msk [vmem:[#allocation4 + $0x38] sm:$0xff] %vm457, %v3195
        %3226 = vst.msk [vmem:[#allocation4 + $0x40] sm:$0xff] %vm457, %v3196
        %3227 = vst.msk [vmem:[#allocation4 + $0x48] sm:$0xff] %vm457, %v3197
        %3228 = vst.msk [vmem:[#allocation4 + $0x50] sm:$0xff] %vm457, %v3198
        %3229 = vst.msk [vmem:[#allocation4 + $0x58] sm:$0xff] %vm457, %v3199
        %3230 = vst.msk [vmem:[#allocation4 + $0x60] sm:$0xff] %vm457, %v3200
        %3231 = vst.msk [vmem:[#allocation4 + $0x68] sm:$0xff] %vm457, %v3201
        %3232 = vst.msk [vmem:[#allocation4 + $0x70] sm:$0xff] %vm457, %v3202
        %3233 = vst.msk [vmem:[#allocation4 + $0x78] sm:$0xff] %vm457, %v3203
        %3234 = vst.msk [vmem:[#allocation4 + $0x80] sm:$0xff] %vm457, %v3204
        %3235 = vst.msk [vmem:[#allocation4 + $0x88] sm:$0xff] %vm457, %v3205
        %3236 = vst.msk [vmem:[#allocation4 + $0x90] sm:$0xff] %vm457, %v3206
        %3237 = vst.msk [vmem:[#allocation4 + $0x98] sm:$0xff] %vm457, %v3207
        %3238 = vst.msk [vmem:[#allocation4 + $0xa0] sm:$0xff] %vm457, %v3208
        %3239 = vst.msk [vmem:[#allocation4 + $0xa8] sm:$0xff] %vm457, %v3209
        %3240 = vst.msk [vmem:[#allocation4 + $0xb0] sm:$0xff] %vm457, %v3210
        %3241 = vst.msk [vmem:[#allocation4 + $0xb8] sm:$0xff] %vm457, %v3211
        %3242 = vst.msk [vmem:[#allocation4 + $0xc0] sm:$0xff] %vm457, %v3212
        %3243 = vst.msk [vmem:[#allocation4 + $0xc8] sm:$0xff] %vm457, %v3213
        %3244 = vst.msk [vmem:[#allocation4 + $0xd0] sm:$0xff] %vm457, %v3214
        %3245 = vst.msk [vmem:[#allocation4 + $0xd8] sm:$0xff] %vm457, %v3215
        %3246 = vst.msk [vmem:[#allocation4 + $0xe0] sm:$0xff] %vm457, %v3216
        %3247 = vst.msk [vmem:[#allocation4 + $0xe8] sm:$0xff] %vm457, %v3217
        %3248 = vst.msk [vmem:[#allocation4 + $0xf0] sm:$0xff] %vm457, %v3218
        %3249 = vst.msk [vmem:[#allocation4 + $0xf8] sm:$0xff] %vm457, %v3219
        %v3250 = vadd.s32 %v485, 64
        %v3251 = vadd.s32 %v485, 72
        %v3252 = vadd.s32 %v485, 80
        %v3253 = vadd.s32 %v485, 88
        %v3254 = vadd.s32 %v485, 96
        %v3255 = vadd.s32 %v485, 104
        %v3256 = vadd.s32 %v485, 112
        %v3257 = vadd.s32 %v485, 120
        %v3258 = vadd.s32 %v485, 128
        %v3259 = vadd.s32 %v485, 136
        %v3260 = vadd.s32 %v485, 144
        %v3261 = vadd.s32 %v485, 152
        %v3262 = vadd.s32 %v485, 160
        %v3263 = vadd.s32 %v485, 168
        %v3264 = vadd.s32 %v485, 176
        %v3265 = vadd.s32 %v485, 184
        %v3266 = vadd.s32 %v485, 192
        %v3267 = vadd.s32 %v485, 200
        %v3268 = vadd.s32 %v485, 208
        %v3269 = vadd.s32 %v485, 216
        %v3270 = vadd.s32 %v485, 224
        %v3271 = vadd.s32 %v485, 232
        %v3272 = vadd.s32 %v485, 240
        %v3273 = vadd.s32 %v485, 248
        %v3274 = vand.u32 %v485, 15
        %v3275 = vand.u32 %v486, 15
        %v3276 = vand.u32 %v1781, 15
        %v3277 = vand.u32 %v1782, 15
        %v3278 = vand.u32 %v1783, 15
        %v3279 = vand.u32 %v1784, 15
        %v3280 = vand.u32 %v1785, 15
        %v3281 = vand.u32 %v1786, 15
        %v3282 = vand.u32 %v3250, 15
        %v3283 = vand.u32 %v3251, 15
        %v3284 = vand.u32 %v3252, 15
        %v3285 = vand.u32 %v3253, 15
        %v3286 = vand.u32 %v3254, 15
        %v3287 = vand.u32 %v3255, 15
        %v3288 = vand.u32 %v3256, 15
        %v3289 = vand.u32 %v3257, 15
        %v3290 = vand.u32 %v3258, 15
        %v3291 = vand.u32 %v3259, 15
        %v3292 = vand.u32 %v3260, 15
        %v3293 = vand.u32 %v3261, 15
        %v3294 = vand.u32 %v3262, 15
        %v3295 = vand.u32 %v3263, 15
        %v3296 = vand.u32 %v3264, 15
        %v3297 = vand.u32 %v3265, 15
        %v3298 = vand.u32 %v3266, 15
        %v3299 = vand.u32 %v3267, 15
        %v3300 = vand.u32 %v3268, 15
        %v3301 = vand.u32 %v3269, 15
        %v3302 = vand.u32 %v3270, 15
        %v3303 = vand.u32 %v3271, 15
        %v3304 = vand.u32 %v3272, 15
        %v3305 = vand.u32 %v3273, 15
        %vm3306 = vcmp.ne.s32.totalorder %v3274, 15
        %vm3307 = vcmp.ne.s32.totalorder %v3275, 15
        %vm3308 = vcmp.ne.s32.totalorder %v3276, 15
        %vm3309 = vcmp.ne.s32.totalorder %v3277, 15
        %vm3310 = vcmp.ne.s32.totalorder %v3278, 15
        %vm3311 = vcmp.ne.s32.totalorder %v3279, 15
        %vm3312 = vcmp.ne.s32.totalorder %v3280, 15
        %vm3313 = vcmp.ne.s32.totalorder %v3281, 15
        %vm3314 = vcmp.ne.s32.totalorder %v3282, 15
        %vm3315 = vcmp.ne.s32.totalorder %v3283, 15
        %vm3316 = vcmp.ne.s32.totalorder %v3284, 15
        %vm3317 = vcmp.ne.s32.totalorder %v3285, 15
        %vm3318 = vcmp.ne.s32.totalorder %v3286, 15
        %vm3319 = vcmp.ne.s32.totalorder %v3287, 15
        %vm3320 = vcmp.ne.s32.totalorder %v3288, 15
        %vm3321 = vcmp.ne.s32.totalorder %v3289, 15
        %vm3322 = vcmp.ne.s32.totalorder %v3290, 15
        %vm3323 = vcmp.ne.s32.totalorder %v3291, 15
        %vm3324 = vcmp.ne.s32.totalorder %v3292, 15
        %vm3325 = vcmp.ne.s32.totalorder %v3293, 15
        %vm3326 = vcmp.ne.s32.totalorder %v3294, 15
        %vm3327 = vcmp.ne.s32.totalorder %v3295, 15
        %vm3328 = vcmp.ne.s32.totalorder %v3296, 15
        %vm3329 = vcmp.ne.s32.totalorder %v3297, 15
        %vm3330 = vcmp.ne.s32.totalorder %v3298, 15
        %vm3331 = vcmp.ne.s32.totalorder %v3299, 15
        %vm3332 = vcmp.ne.s32.totalorder %v3300, 15
        %vm3333 = vcmp.ne.s32.totalorder %v3301, 15
        %vm3334 = vcmp.ne.s32.totalorder %v3302, 15
        %vm3335 = vcmp.ne.s32.totalorder %v3303, 15
        %vm3336 = vcmp.ne.s32.totalorder %v3304, 15
        %vm3337 = vcmp.ne.s32.totalorder %v3305, 15
        %v3338 = vsel %vm3306, 1, 0
        %v3339 = vsel %vm3307, 1, 0
        %v3340 = vsel %vm3308, 1, 0
        %v3341 = vsel %vm3309, 1, 0
        %v3342 = vsel %vm3310, 1, 0
        %v3343 = vsel %vm3311, 1, 0
        %v3344 = vsel %vm3312, 1, 0
        %v3345 = vsel %vm3313, 1, 0
        %v3346 = vsel %vm3314, 1, 0
        %v3347 = vsel %vm3315, 1, 0
        %v3348 = vsel %vm3316, 1, 0
        %v3349 = vsel %vm3317, 1, 0
        %v3350 = vsel %vm3318, 1, 0
        %v3351 = vsel %vm3319, 1, 0
        %v3352 = vsel %vm3320, 1, 0
        %v3353 = vsel %vm3321, 1, 0
        %v3354 = vsel %vm3322, 1, 0
        %v3355 = vsel %vm3323, 1, 0
        %v3356 = vsel %vm3324, 1, 0
        %v3357 = vsel %vm3325, 1, 0
        %v3358 = vsel %vm3326, 1, 0
        %v3359 = vsel %vm3327, 1, 0
        %v3360 = vsel %vm3328, 1, 0
        %v3361 = vsel %vm3329, 1, 0
        %v3362 = vsel %vm3330, 1, 0
        %v3363 = vsel %vm3331, 1, 0
        %v3364 = vsel %vm3332, 1, 0
        %v3365 = vsel %vm3333, 1, 0
        %v3366 = vsel %vm3334, 1, 0
        %v3367 = vsel %vm3335, 1, 0
        %v3368 = vsel %vm3336, 1, 0
        %v3369 = vsel %vm3337, 1, 0
        %v3370 = vcvt.s32.f32 %v3338
        %v3371 = vcvt.s32.f32 %v3339
        %v3372 = vcvt.s32.f32 %v3340
        %v3373 = vcvt.s32.f32 %v3341
        %v3374 = vcvt.s32.f32 %v3342
        %v3375 = vcvt.s32.f32 %v3343
        %v3376 = vcvt.s32.f32 %v3344
        %v3377 = vcvt.s32.f32 %v3345
        %v3378 = vcvt.s32.f32 %v3346
        %v3379 = vcvt.s32.f32 %v3347
        %v3380 = vcvt.s32.f32 %v3348
        %v3381 = vcvt.s32.f32 %v3349
        %v3382 = vcvt.s32.f32 %v3350
        %v3383 = vcvt.s32.f32 %v3351
        %v3384 = vcvt.s32.f32 %v3352
        %v3385 = vcvt.s32.f32 %v3353
        %v3386 = vcvt.s32.f32 %v3354
        %v3387 = vcvt.s32.f32 %v3355
        %v3388 = vcvt.s32.f32 %v3356
        %v3389 = vcvt.s32.f32 %v3357
        %v3390 = vcvt.s32.f32 %v3358
        %v3391 = vcvt.s32.f32 %v3359
        %v3392 = vcvt.s32.f32 %v3360
        %v3393 = vcvt.s32.f32 %v3361
        %v3394 = vcvt.s32.f32 %v3362
        %v3395 = vcvt.s32.f32 %v3363
        %v3396 = vcvt.s32.f32 %v3364
        %v3397 = vcvt.s32.f32 %v3365
        %v3398 = vcvt.s32.f32 %v3366
        %v3399 = vcvt.s32.f32 %v3367
        %v3400 = vcvt.s32.f32 %v3368
        %v3401 = vcvt.s32.f32 %v3369
        %v3402 = vld [vmem:[#allocation4] sm:$0xff]
        %v3403 = vld [vmem:[#allocation4 + $0x8] sm:$0xff]
        %v3404 = vld [vmem:[#allocation4 + $0x10] sm:$0xff]
        %v3405 = vld [vmem:[#allocation4 + $0x18] sm:$0xff]
        %v3406 = vld [vmem:[#allocation4 + $0x20] sm:$0xff]
        %v3407 = vld [vmem:[#allocation4 + $0x28] sm:$0xff]
        %v3408 = vld [vmem:[#allocation4 + $0x30] sm:$0xff]
        %v3409 = vld [vmem:[#allocation4 + $0x38] sm:$0xff]
        %v3410 = vld [vmem:[#allocation4 + $0x40] sm:$0xff]
        %v3411 = vld [vmem:[#allocation4 + $0x48] sm:$0xff]
        %v3412 = vld [vmem:[#allocation4 + $0x50] sm:$0xff]
        %v3413 = vld [vmem:[#allocation4 + $0x58] sm:$0xff]
        %v3414 = vld [vmem:[#allocation4 + $0x60] sm:$0xff]
        %v3415 = vld [vmem:[#allocation4 + $0x68] sm:$0xff]
        %v3416 = vld [vmem:[#allocation4 + $0x70] sm:$0xff]
        %v3417 = vld [vmem:[#allocation4 + $0x78] sm:$0xff]
        %v3418 = vld [vmem:[#allocation4 + $0x80] sm:$0xff]
        %v3419 = vld [vmem:[#allocation4 + $0x88] sm:$0xff]
        %v3420 = vld [vmem:[#allocation4 + $0x90] sm:$0xff]
        %v3421 = vld [vmem:[#allocation4 + $0x98] sm:$0xff]
        %v3422 = vld [vmem:[#allocation4 + $0xa0] sm:$0xff]
        %v3423 = vld [vmem:[#allocation4 + $0xa8] sm:$0xff]
        %v3424 = vld [vmem:[#allocation4 + $0xb0] sm:$0xff]
        %v3425 = vld [vmem:[#allocation4 + $0xb8] sm:$0xff]
        %v3426 = vld [vmem:[#allocation4 + $0xc0] sm:$0xff]
        %v3427 = vld [vmem:[#allocation4 + $0xc8] sm:$0xff]
        %v3428 = vld [vmem:[#allocation4 + $0xd0] sm:$0xff]
        %v3429 = vld [vmem:[#allocation4 + $0xd8] sm:$0xff]
        %v3430 = vld [vmem:[#allocation4 + $0xe0] sm:$0xff]
        %v3431 = vld [vmem:[#allocation4 + $0xe8] sm:$0xff]
        %v3432 = vld [vmem:[#allocation4 + $0xf0] sm:$0xff]
        %v3433 = vld [vmem:[#allocation4 + $0xf8] sm:$0xff]
        %v3434 = vld [vmem:[#allocation4 + $0x1] sm:$0xff]
        %v3435 = vld [vmem:[#allocation4 + $0x9] sm:$0xff]
        %v3436 = vld [vmem:[#allocation4 + $0x11] sm:$0xff]
        %v3437 = vld [vmem:[#allocation4 + $0x19] sm:$0xff]
        %v3438 = vld [vmem:[#allocation4 + $0x21] sm:$0xff]
        %v3439 = vld [vmem:[#allocation4 + $0x29] sm:$0xff]
        %v3440 = vld [vmem:[#allocation4 + $0x31] sm:$0xff]
        %v3441 = vld [vmem:[#allocation4 + $0x39] sm:$0xff]
        %v3442 = vld [vmem:[#allocation4 + $0x41] sm:$0xff]
        %v3443 = vld [vmem:[#allocation4 + $0x49] sm:$0xff]
        %v3444 = vld [vmem:[#allocation4 + $0x51] sm:$0xff]
        %v3445 = vld [vmem:[#allocation4 + $0x59] sm:$0xff]
        %v3446 = vld [vmem:[#allocation4 + $0x61] sm:$0xff]
        %v3447 = vld [vmem:[#allocation4 + $0x69] sm:$0xff]
        %v3448 = vld [vmem:[#allocation4 + $0x71] sm:$0xff]
        %v3449 = vld [vmem:[#allocation4 + $0x79] sm:$0xff]
        %v3450 = vld [vmem:[#allocation4 + $0x81] sm:$0xff]
        %v3451 = vld [vmem:[#allocation4 + $0x89] sm:$0xff]
        %v3452 = vld [vmem:[#allocation4 + $0x91] sm:$0xff]
        %v3453 = vld [vmem:[#allocation4 + $0x99] sm:$0xff]
        %v3454 = vld [vmem:[#allocation4 + $0xa1] sm:$0xff]
        %v3455 = vld [vmem:[#allocation4 + $0xa9] sm:$0xff]
        %v3456 = vld [vmem:[#allocation4 + $0xb1] sm:$0xff]
        %v3457 = vld [vmem:[#allocation4 + $0xb9] sm:$0xff]
        %v3458 = vld [vmem:[#allocation4 + $0xc1] sm:$0xff]
        %v3459 = vld [vmem:[#allocation4 + $0xc9] sm:$0xff]
        %v3460 = vld [vmem:[#allocation4 + $0xd1] sm:$0xff]
        %v3461 = vld [vmem:[#allocation4 + $0xd9] sm:$0xff]
        %v3462 = vld [vmem:[#allocation4 + $0xe1] sm:$0xff]
        %v3463 = vld [vmem:[#allocation4 + $0xe9] sm:$0xff]
        %v3464 = vld [vmem:[#allocation4 + $0xf1] sm:$0xff]
        %v3465 = vld [vmem:[#allocation4 + $0xf9] sm:$0xff]
        %v3466 = vmul.f32 %v3434, %v3370
        %v3467 = vmul.f32 %v3435, %v3371
        %v3468 = vmul.f32 %v3436, %v3372
        %v3469 = vmul.f32 %v3437, %v3373
        %v3470 = vmul.f32 %v3438, %v3374
        %v3471 = vmul.f32 %v3439, %v3375
        %v3472 = vmul.f32 %v3440, %v3376
        %v3473 = vmul.f32 %v3441, %v3377
        %v3474 = vmul.f32 %v3442, %v3378
        %v3475 = vmul.f32 %v3443, %v3379
        %v3476 = vmul.f32 %v3444, %v3380
        %v3477 = vmul.f32 %v3445, %v3381
        %v3478 = vmul.f32 %v3446, %v3382
        %v3479 = vmul.f32 %v3447, %v3383
        %v3480 = vmul.f32 %v3448, %v3384
        %v3481 = vmul.f32 %v3449, %v3385
        %v3482 = vmul.f32 %v3450, %v3386
        %v3483 = vmul.f32 %v3451, %v3387
        %v3484 = vmul.f32 %v3452, %v3388
        %v3485 = vmul.f32 %v3453, %v3389
        %v3486 = vmul.f32 %v3454, %v3390
        %v3487 = vmul.f32 %v3455, %v3391
        %v3488 = vmul.f32 %v3456, %v3392
        %v3489 = vmul.f32 %v3457, %v3393
        %v3490 = vmul.f32 %v3458, %v3394
        %v3491 = vmul.f32 %v3459, %v3395
        %v3492 = vmul.f32 %v3460, %v3396
        %v3493 = vmul.f32 %v3461, %v3397
        %v3494 = vmul.f32 %v3462, %v3398
        %v3495 = vmul.f32 %v3463, %v3399
        %v3496 = vmul.f32 %v3464, %v3400
        %v3497 = vmul.f32 %v3465, %v3401
        %v3498 = vld [vmem:[#allocation4 + $0x100] sm:$0xff]
        %v3499 = vld [vmem:[#allocation4 + $0x108] sm:$0xff]
        %v3500 = vld [vmem:[#allocation4 + $0x101] sm:$0xff]
        %v3501 = vld [vmem:[#allocation4 + $0x109] sm:$0xff]
        %v3502 = vmul.f32 %v3436, %v3370
        %v3503 = vmul.f32 %v3437, %v3371
        %v3504 = vmul.f32 %v3438, %v3372
        %v3505 = vmul.f32 %v3439, %v3373
        %v3506 = vmul.f32 %v3440, %v3374
        %v3507 = vmul.f32 %v3441, %v3375
        %v3508 = vmul.f32 %v3442, %v3376
        %v3509 = vmul.f32 %v3443, %v3377
        %v3510 = vmul.f32 %v3444, %v3378
        %v3511 = vmul.f32 %v3445, %v3379
        %v3512 = vmul.f32 %v3446, %v3380
        %v3513 = vmul.f32 %v3447, %v3381
        %v3514 = vmul.f32 %v3448, %v3382
        %v3515 = vmul.f32 %v3449, %v3383
        %v3516 = vmul.f32 %v3450, %v3384
        %v3517 = vmul.f32 %v3451, %v3385
        %v3518 = vmul.f32 %v3452, %v3386
        %v3519 = vmul.f32 %v3453, %v3387
        %v3520 = vmul.f32 %v3454, %v3388
        %v3521 = vmul.f32 %v3455, %v3389
        %v3522 = vmul.f32 %v3456, %v3390
        %v3523 = vmul.f32 %v3457, %v3391
        %v3524 = vmul.f32 %v3458, %v3392
        %v3525 = vmul.f32 %v3459, %v3393
        %v3526 = vmul.f32 %v3460, %v3394
        %v3527 = vmul.f32 %v3461, %v3395
        %v3528 = vmul.f32 %v3462, %v3396
        %v3529 = vmul.f32 %v3463, %v3397
        %v3530 = vmul.f32 %v3464, %v3398
        %v3531 = vmul.f32 %v3465, %v3399
        %v3532 = vmul.f32 %v3500, %v3400
        %v3533 = vmul.f32 %v3501, %v3401
        %3566 = vrot.lane.b32.xlu0 %v3466, 64
        %v3567 = vpop.permute.xlu0 %3566
        %3568 = vrot.lane.b32.xlu0 %v3467, 64
        %v3569 = vpop.permute.xlu0 %3568
        %3570 = vrot.lane.b32.xlu0 %v3468, 64
        %v3571 = vpop.permute.xlu0 %3570
        %3572 = vrot.lane.b32.xlu0 %v3469, 64
        %v3573 = vpop.permute.xlu0 %3572
        %3574 = vrot.lane.b32.xlu0 %v3470, 64
        %v3575 = vpop.permute.xlu0 %3574
        %3576 = vrot.lane.b32.xlu0 %v3471, 64
        %v3577 = vpop.permute.xlu0 %3576
        %3578 = vrot.lane.b32.xlu0 %v3472, 64
        %v3579 = vpop.permute.xlu0 %3578
        %3580 = vrot.lane.b32.xlu0 %v3473, 64
        %v3581 = vpop.permute.xlu0 %3580
        %3582 = vrot.lane.b32.xlu0 %v3474, 64
        %v3583 = vpop.permute.xlu0 %3582
        %3584 = vrot.lane.b32.xlu0 %v3475, 64
        %v3585 = vpop.permute.xlu0 %3584
        %3586 = vrot.lane.b32.xlu0 %v3476, 64
        %v3587 = vpop.permute.xlu0 %3586
        %3588 = vrot.lane.b32.xlu0 %v3477, 64
        %v3589 = vpop.permute.xlu0 %3588
        %3590 = vrot.lane.b32.xlu0 %v3478, 64
        %v3591 = vpop.permute.xlu0 %3590
        %3592 = vrot.lane.b32.xlu0 %v3479, 64
        %v3593 = vpop.permute.xlu0 %3592
        %3594 = vrot.lane.b32.xlu0 %v3480, 64
        %v3595 = vpop.permute.xlu0 %3594
        %3596 = vrot.lane.b32.xlu0 %v3481, 64
        %v3597 = vpop.permute.xlu0 %3596
        %3598 = vrot.lane.b32.xlu0 %v3482, 64
        %v3599 = vpop.permute.xlu0 %3598
        %3600 = vrot.lane.b32.xlu0 %v3483, 64
        %v3601 = vpop.permute.xlu0 %3600
        %3602 = vrot.lane.b32.xlu0 %v3484, 64
        %v3603 = vpop.permute.xlu0 %3602
        %3604 = vrot.lane.b32.xlu0 %v3485, 64
        %v3605 = vpop.permute.xlu0 %3604
        %3606 = vrot.lane.b32.xlu0 %v3486, 64
        %v3607 = vpop.permute.xlu0 %3606
        %3608 = vrot.lane.b32.xlu0 %v3487, 64
        %v3609 = vpop.permute.xlu0 %3608
        %3610 = vrot.lane.b32.xlu0 %v3488, 64
        %v3611 = vpop.permute.xlu0 %3610
        %3612 = vrot.lane.b32.xlu0 %v3489, 64
        %v3613 = vpop.permute.xlu0 %3612
        %3614 = vrot.lane.b32.xlu0 %v3490, 64
        %v3615 = vpop.permute.xlu0 %3614
        %3616 = vrot.lane.b32.xlu0 %v3491, 64
        %v3617 = vpop.permute.xlu0 %3616
        %3618 = vrot.lane.b32.xlu0 %v3492, 64
        %v3619 = vpop.permute.xlu0 %3618
        %3620 = vrot.lane.b32.xlu0 %v3493, 64
        %v3621 = vpop.permute.xlu0 %3620
        %3622 = vrot.lane.b32.xlu0 %v3494, 64
        %v3623 = vpop.permute.xlu0 %3622
        %3624 = vrot.lane.b32.xlu0 %v3495, 64
        %v3625 = vpop.permute.xlu0 %3624
        %3626 = vrot.lane.b32.xlu0 %v3496, 64
        %v3627 = vpop.permute.xlu0 %3626
        %3628 = vrot.lane.b32.xlu0 %v3497, 64
        %v3629 = vpop.permute.xlu0 %3628
        %3694 = vrot.lane.b32.xlu0 %v3502, 64
        %v3695 = vpop.permute.xlu0 %3694
        %3696 = vrot.lane.b32.xlu0 %v3503, 64
        %v3697 = vpop.permute.xlu0 %3696
        %3698 = vrot.lane.b32.xlu0 %v3504, 64
        %v3699 = vpop.permute.xlu0 %3698
        %3700 = vrot.lane.b32.xlu0 %v3505, 64
        %v3701 = vpop.permute.xlu0 %3700
        %3702 = vrot.lane.b32.xlu0 %v3506, 64
        %v3703 = vpop.permute.xlu0 %3702
        %3704 = vrot.lane.b32.xlu0 %v3507, 64
        %v3705 = vpop.permute.xlu0 %3704
        %3706 = vrot.lane.b32.xlu0 %v3508, 64
        %v3707 = vpop.permute.xlu0 %3706
        %3708 = vrot.lane.b32.xlu0 %v3509, 64
        %v3709 = vpop.permute.xlu0 %3708
        %3710 = vrot.lane.b32.xlu0 %v3510, 64
        %v3711 = vpop.permute.xlu0 %3710
        %3712 = vrot.lane.b32.xlu0 %v3511, 64
        %v3713 = vpop.permute.xlu0 %3712
        %3714 = vrot.lane.b32.xlu0 %v3512, 64
        %v3715 = vpop.permute.xlu0 %3714
        %3716 = vrot.lane.b32.xlu0 %v3513, 64
        %v3717 = vpop.permute.xlu0 %3716
        %3718 = vrot.lane.b32.xlu0 %v3514, 64
        %v3719 = vpop.permute.xlu0 %3718
        %3720 = vrot.lane.b32.xlu0 %v3515, 64
        %v3721 = vpop.permute.xlu0 %3720
        %3722 = vrot.lane.b32.xlu0 %v3516, 64
        %v3723 = vpop.permute.xlu0 %3722
        %3724 = vrot.lane.b32.xlu0 %v3517, 64
        %v3725 = vpop.permute.xlu0 %3724
        %3726 = vrot.lane.b32.xlu0 %v3518, 64
        %v3727 = vpop.permute.xlu0 %3726
        %3728 = vrot.lane.b32.xlu0 %v3519, 64
        %v3729 = vpop.permute.xlu0 %3728
        %3730 = vrot.lane.b32.xlu0 %v3520, 64
        %v3731 = vpop.permute.xlu0 %3730
        %3732 = vrot.lane.b32.xlu0 %v3521, 64
        %v3733 = vpop.permute.xlu0 %3732
        %3734 = vrot.lane.b32.xlu0 %v3522, 64
        %v3735 = vpop.permute.xlu0 %3734
        %3736 = vrot.lane.b32.xlu0 %v3523, 64
        %v3737 = vpop.permute.xlu0 %3736
        %3738 = vrot.lane.b32.xlu0 %v3524, 64
        %v3739 = vpop.permute.xlu0 %3738
        %3740 = vrot.lane.b32.xlu0 %v3525, 64
        %v3741 = vpop.permute.xlu0 %3740
        %3742 = vrot.lane.b32.xlu0 %v3526, 64
        %v3743 = vpop.permute.xlu0 %3742
        %3744 = vrot.lane.b32.xlu0 %v3527, 64
        %v3745 = vpop.permute.xlu0 %3744
        %3746 = vrot.lane.b32.xlu0 %v3528, 64
        %v3747 = vpop.permute.xlu0 %3746
        %3748 = vrot.lane.b32.xlu0 %v3529, 64
        %v3749 = vpop.permute.xlu0 %3748
        %3750 = vrot.lane.b32.xlu0 %v3530, 64
        %v3751 = vpop.permute.xlu0 %3750
        %3752 = vrot.lane.b32.xlu0 %v3531, 64
        %v3753 = vpop.permute.xlu0 %3752
        %3754 = vrot.lane.b32.xlu0 %v3532, 64
        %v3755 = vpop.permute.xlu0 %3754
        %3756 = vrot.lane.b32.xlu0 %v3533, 64
        %v3757 = vpop.permute.xlu0 %3756
        %v3790 = vsel %vm457, %v3402, %v3567
        %v3791 = vsel %vm457, %v3403, %v3569
        %v3792 = vsel %vm457, %v3404, %v3571
        %v3793 = vsel %vm457, %v3405, %v3573
        %v3794 = vsel %vm457, %v3406, %v3575
        %v3795 = vsel %vm457, %v3407, %v3577
        %v3796 = vsel %vm457, %v3408, %v3579
        %v3797 = vsel %vm457, %v3409, %v3581
        %v3798 = vsel %vm457, %v3410, %v3583
        %v3799 = vsel %vm457, %v3411, %v3585
        %v3800 = vsel %vm457, %v3412, %v3587
        %v3801 = vsel %vm457, %v3413, %v3589
        %v3802 = vsel %vm457, %v3414, %v3591
        %v3803 = vsel %vm457, %v3415, %v3593
        %v3804 = vsel %vm457, %v3416, %v3595
        %v3805 = vsel %vm457, %v3417, %v3597
        %v3806 = vsel %vm457, %v3418, %v3599
        %v3807 = vsel %vm457, %v3419, %v3601
        %v3808 = vsel %vm457, %v3420, %v3603
        %v3809 = vsel %vm457, %v3421, %v3605
        %v3810 = vsel %vm457, %v3422, %v3607
        %v3811 = vsel %vm457, %v3423, %v3609
        %v3812 = vsel %vm457, %v3424, %v3611
        %v3813 = vsel %vm457, %v3425, %v3613
        %v3814 = vsel %vm457, %v3426, %v3615
        %v3815 = vsel %vm457, %v3427, %v3617
        %v3816 = vsel %vm457, %v3428, %v3619
        %v3817 = vsel %vm457, %v3429, %v3621
        %v3818 = vsel %vm457, %v3430, %v3623
        %v3819 = vsel %vm457, %v3431, %v3625
        %v3820 = vsel %vm457, %v3432, %v3627
        %v3821 = vsel %vm457, %v3433, %v3629
        %v3822 = vsel %vm457, %v3404, %v3695
        %v3823 = vsel %vm457, %v3405, %v3697
        %v3824 = vsel %vm457, %v3406, %v3699
        %v3825 = vsel %vm457, %v3407, %v3701
        %v3826 = vsel %vm457, %v3408, %v3703
        %v3827 = vsel %vm457, %v3409, %v3705
        %v3828 = vsel %vm457, %v3410, %v3707
        %v3829 = vsel %vm457, %v3411, %v3709
        %v3830 = vsel %vm457, %v3412, %v3711
        %v3831 = vsel %vm457, %v3413, %v3713
        %v3832 = vsel %vm457, %v3414, %v3715
        %v3833 = vsel %vm457, %v3415, %v3717
        %v3834 = vsel %vm457, %v3416, %v3719
        %v3835 = vsel %vm457, %v3417, %v3721
        %v3836 = vsel %vm457, %v3418, %v3723
        %v3837 = vsel %vm457, %v3419, %v3725
        %v3838 = vsel %vm457, %v3420, %v3727
        %v3839 = vsel %vm457, %v3421, %v3729
        %v3840 = vsel %vm457, %v3422, %v3731
        %v3841 = vsel %vm457, %v3423, %v3733
        %v3842 = vsel %vm457, %v3424, %v3735
        %v3843 = vsel %vm457, %v3425, %v3737
        %v3844 = vsel %vm457, %v3426, %v3739
        %v3845 = vsel %vm457, %v3427, %v3741
        %v3846 = vsel %vm457, %v3428, %v3743
        %v3847 = vsel %vm457, %v3429, %v3745
        %v3848 = vsel %vm457, %v3430, %v3747
        %v3849 = vsel %vm457, %v3431, %v3749
        %v3850 = vsel %vm457, %v3432, %v3751
        %v3851 = vsel %vm457, %v3433, %v3753
        %v3852 = vsel %vm457, %v3498, %v3755
        %v3853 = vsel %vm457, %v3499, %v3757
        %v3854 = vpack.c.bf16 %v3791, %v3790
        %v3855 = vpack.c.bf16 %v3823, %v3822
        %v3856 = vpack.c.bf16 %v3793, %v3792
        %v3857 = vpack.c.bf16 %v3825, %v3824
        %v3858 = vpack.c.bf16 %v3795, %v3794
        %v3859 = vpack.c.bf16 %v3827, %v3826
        %v3860 = vpack.c.bf16 %v3797, %v3796
        %v3861 = vpack.c.bf16 %v3829, %v3828
        %v3862 = vpack.c.bf16 %v3799, %v3798
        %v3863 = vpack.c.bf16 %v3831, %v3830
        %v3864 = vpack.c.bf16 %v3801, %v3800
        %v3865 = vpack.c.bf16 %v3833, %v3832
        %v3866 = vpack.c.bf16 %v3803, %v3802
        %v3867 = vpack.c.bf16 %v3835, %v3834
        %v3868 = vpack.c.bf16 %v3805, %v3804
        %v3869 = vpack.c.bf16 %v3837, %v3836
        %v3870 = vpack.c.bf16 %v3807, %v3806
        %v3871 = vpack.c.bf16 %v3839, %v3838
        %v3872 = vpack.c.bf16 %v3809, %v3808
        %v3873 = vpack.c.bf16 %v3841, %v3840
        %v3874 = vpack.c.bf16 %v3811, %v3810
        %v3875 = vpack.c.bf16 %v3843, %v3842
        %v3876 = vpack.c.bf16 %v3813, %v3812
        %v3877 = vpack.c.bf16 %v3845, %v3844
        %v3878 = vpack.c.bf16 %v3815, %v3814
        %v3879 = vpack.c.bf16 %v3847, %v3846
        %v3880 = vpack.c.bf16 %v3817, %v3816
        %v3881 = vpack.c.bf16 %v3849, %v3848
        %v3882 = vpack.c.bf16 %v3819, %v3818
        %v3883 = vpack.c.bf16 %v3851, %v3850
        %v3884 = vpack.c.bf16 %v3821, %v3820
        %v3885 = vpack.c.bf16 %v3853, %v3852
        %v3886 = vld [vmem:[%s9] sm:$0xf]
        %v3887 = vld [vmem:[%s9 + $0x4] sm:$0xf]
        %v3888 = vld [vmem:[%s9 + $0x8] sm:$0xf]
        %v3889 = vld [vmem:[%s9 + $0xc] sm:$0xf]
        %v3890 = vld [vmem:[%s9 + $0x10] sm:$0xf]
        %v3891 = vld [vmem:[%s9 + $0x14] sm:$0xf]
        %v3892 = vld [vmem:[%s9 + $0x18] sm:$0xf]
        %v3893 = vld [vmem:[%s9 + $0x1c] sm:$0xf]
        %v3894 = vld [vmem:[%s9 + $0x20] sm:$0xf]
        %v3895 = vld [vmem:[%s9 + $0x24] sm:$0xf]
        %v3896 = vld [vmem:[%s9 + $0x28] sm:$0xf]
        %v3897 = vld [vmem:[%s9 + $0x2c] sm:$0xf]
        %v3898 = vld [vmem:[%s9 + $0x30] sm:$0xf]
        %v3899 = vld [vmem:[%s9 + $0x34] sm:$0xf]
        %v3900 = vld [vmem:[%s9 + $0x38] sm:$0xf]
        %v3901 = vld [vmem:[%s9 + $0x3c] sm:$0xf]
        %v3902 = vld [vmem:[%s9 + $0x40] sm:$0xf]
        %v3903 = vld [vmem:[%s9 + $0x44] sm:$0xf]
        %v3904 = vld [vmem:[%s9 + $0x48] sm:$0xf]
        %v3905 = vld [vmem:[%s9 + $0x4c] sm:$0xf]
        %v3906 = vld [vmem:[%s9 + $0x50] sm:$0xf]
        %v3907 = vld [vmem:[%s9 + $0x54] sm:$0xf]
        %v3908 = vld [vmem:[%s9 + $0x58] sm:$0xf]
        %v3909 = vld [vmem:[%s9 + $0x5c] sm:$0xf]
        %v3910 = vld [vmem:[%s9 + $0x60] sm:$0xf]
        %v3911 = vld [vmem:[%s9 + $0x64] sm:$0xf]
        %v3912 = vld [vmem:[%s9 + $0x68] sm:$0xf]
        %v3913 = vld [vmem:[%s9 + $0x6c] sm:$0xf]
        %v3914 = vld [vmem:[%s9 + $0x70] sm:$0xf]
        %v3915 = vld [vmem:[%s9 + $0x74] sm:$0xf]
        %v3916 = vld [vmem:[%s9 + $0x78] sm:$0xf]
        %v3917 = vld [vmem:[%s9 + $0x7c] sm:$0xf]
        %v3918 = vld [vmem:[%s10] sm:$0x1]
        %v3920 = vperm.slane %v3918, 0
        %v3954 = vunpack.c.l.b16 %v3886
        %v3955 = vunpack.c.l.b16 %v3887
        %v3956 = vunpack.c.l.b16 %v3888
        %v3957 = vunpack.c.l.b16 %v3889
        %v3958 = vunpack.c.l.b16 %v3890
        %v3959 = vunpack.c.l.b16 %v3891
        %v3960 = vunpack.c.l.b16 %v3892
        %v3961 = vunpack.c.l.b16 %v3893
        %v3962 = vunpack.c.l.b16 %v3894
        %v3963 = vunpack.c.l.b16 %v3895
        %v3964 = vunpack.c.l.b16 %v3896
        %v3965 = vunpack.c.l.b16 %v3897
        %v3966 = vunpack.c.l.b16 %v3898
        %v3967 = vunpack.c.l.b16 %v3899
        %v3968 = vunpack.c.l.b16 %v3900
        %v3969 = vunpack.c.l.b16 %v3901
        %v3970 = vunpack.c.l.b16 %v3902
        %v3971 = vunpack.c.l.b16 %v3903
        %v3972 = vunpack.c.l.b16 %v3904
        %v3973 = vunpack.c.l.b16 %v3905
        %v3974 = vunpack.c.l.b16 %v3906
        %v3975 = vunpack.c.l.b16 %v3907
        %v3976 = vunpack.c.l.b16 %v3908
        %v3977 = vunpack.c.l.b16 %v3909
        %v3978 = vunpack.c.l.b16 %v3910
        %v3979 = vunpack.c.l.b16 %v3911
        %v3980 = vunpack.c.l.b16 %v3912
        %v3981 = vunpack.c.l.b16 %v3913
        %v3982 = vunpack.c.l.b16 %v3914
        %v3983 = vunpack.c.l.b16 %v3915
        %v3984 = vunpack.c.l.b16 %v3916
        %v3985 = vunpack.c.l.b16 %v3917
        %v3986 = vpack.c.b16 %v3955, %v3954
        %v3987 = vpack.c.b16 %v3957, %v3956
        %v3988 = vpack.c.b16 %v3959, %v3958
        %v3989 = vpack.c.b16 %v3961, %v3960
        %v3990 = vpack.c.b16 %v3963, %v3962
        %v3991 = vpack.c.b16 %v3965, %v3964
        %v3992 = vpack.c.b16 %v3967, %v3966
        %v3993 = vpack.c.b16 %v3969, %v3968
        %v3994 = vpack.c.b16 %v3971, %v3970
        %v3995 = vpack.c.b16 %v3973, %v3972
        %v3996 = vpack.c.b16 %v3975, %v3974
        %v3997 = vpack.c.b16 %v3977, %v3976
        %v3998 = vpack.c.b16 %v3979, %v3978
        %v3999 = vpack.c.b16 %v3981, %v3980
        %v4000 = vpack.c.b16 %v3983, %v3982
        %v4001 = vpack.c.b16 %v3985, %v3984
        %4018 = vmatpush.bf16.msra.mxu0 %v3993
        %4019 = vmatpush.bf16.msra.mxu0 %v3992
        %4020 = vmatpush.bf16.msra.mxu0 %v3991
        %4021 = vmatpush.bf16.msra.mxu0 %v3990
        %4022 = vmatpush.bf16.msra.mxu0 %v3989
        %4023 = vmatpush.bf16.msra.mxu0 %v3988
        %4024 = vmatpush.bf16.msra.mxu0 %v3987
        %4025 = vmatpush.bf16.msra.mxu0 %v3986
        %4026 = vmatmul.bf16.gmra.mxu0 %v3854
        %v4027 = vpop.f32.mrf.mxu0
        %v4028 = vadd.f32 %v3920, %v4027
        %v4029 = vpop.f32.mrf.mxu0
        %v4030 = vadd.f32 %v3920, %v4029
        %4031 = vmatmul.bf16.gmra.mxu0 %v3856
        %v4032 = vpop.f32.mrf.mxu0
        %v4033 = vadd.f32 %v3920, %v4032
        %v4034 = vpop.f32.mrf.mxu0
        %v4035 = vadd.f32 %v3920, %v4034
        %4036 = vmatmul.bf16.gmra.mxu0 %v3858
        %v4037 = vpop.f32.mrf.mxu0
        %v4038 = vadd.f32 %v3920, %v4037
        %v4039 = vpop.f32.mrf.mxu0
        %v4040 = vadd.f32 %v3920, %v4039
        %4041 = vmatmul.bf16.gmra.mxu0 %v3860
        %v4042 = vpop.f32.mrf.mxu0
        %v4043 = vadd.f32 %v3920, %v4042
        %v4044 = vpop.f32.mrf.mxu0
        %v4045 = vadd.f32 %v3920, %v4044
        %4046 = vmatmul.bf16.gmra.mxu0 %v3862
        %v4047 = vpop.f32.mrf.mxu0
        %v4048 = vadd.f32 %v3920, %v4047
        %v4049 = vpop.f32.mrf.mxu0
        %v4050 = vadd.f32 %v3920, %v4049
        %4051 = vmatmul.bf16.gmra.mxu0 %v3864
        %v4052 = vpop.f32.mrf.mxu0
        %v4053 = vadd.f32 %v3920, %v4052
        %v4054 = vpop.f32.mrf.mxu0
        %v4055 = vadd.f32 %v3920, %v4054
        %4056 = vmatmul.bf16.gmra.mxu0 %v3866
        %v4057 = vpop.f32.mrf.mxu0
        %v4058 = vadd.f32 %v3920, %v4057
        %v4059 = vpop.f32.mrf.mxu0
        %v4060 = vadd.f32 %v3920, %v4059
        %4061 = vmatmul.bf16.gmra.mxu0 %v3868
        %v4062 = vpop.f32.mrf.mxu0
        %v4063 = vadd.f32 %v3920, %v4062
        %v4064 = vpop.f32.mrf.mxu0
        %v4065 = vadd.f32 %v3920, %v4064
        %4066 = vmatmul.bf16.gmra.mxu0 %v3870
        %v4067 = vpop.f32.mrf.mxu0
        %v4068 = vadd.f32 %v3920, %v4067
        %v4069 = vpop.f32.mrf.mxu0
        %v4070 = vadd.f32 %v3920, %v4069
        %4071 = vmatmul.bf16.gmra.mxu0 %v3872
        %v4072 = vpop.f32.mrf.mxu0
        %v4073 = vadd.f32 %v3920, %v4072
        %v4074 = vpop.f32.mrf.mxu0
        %v4075 = vadd.f32 %v3920, %v4074
        %4076 = vmatmul.bf16.gmra.mxu0 %v3874
        %v4077 = vpop.f32.mrf.mxu0
        %v4078 = vadd.f32 %v3920, %v4077
        %v4079 = vpop.f32.mrf.mxu0
        %v4080 = vadd.f32 %v3920, %v4079
        %4081 = vmatmul.bf16.gmra.mxu0 %v3876
        %v4082 = vpop.f32.mrf.mxu0
        %v4083 = vadd.f32 %v3920, %v4082
        %v4084 = vpop.f32.mrf.mxu0
        %v4085 = vadd.f32 %v3920, %v4084
        %4086 = vmatmul.bf16.gmra.mxu0 %v3878
        %v4087 = vpop.f32.mrf.mxu0
        %v4088 = vadd.f32 %v3920, %v4087
        %v4089 = vpop.f32.mrf.mxu0
        %v4090 = vadd.f32 %v3920, %v4089
        %4091 = vmatmul.bf16.gmra.mxu0 %v3880
        %v4092 = vpop.f32.mrf.mxu0
        %v4093 = vadd.f32 %v3920, %v4092
        %v4094 = vpop.f32.mrf.mxu0
        %v4095 = vadd.f32 %v3920, %v4094
        %4096 = vmatmul.bf16.gmra.mxu0 %v3882
        %v4097 = vpop.f32.mrf.mxu0
        %v4098 = vadd.f32 %v3920, %v4097
        %v4099 = vpop.f32.mrf.mxu0
        %v4100 = vadd.f32 %v3920, %v4099
        %4101 = vmatmul.bf16.gmra.mxu0 %v3884
        %v4102 = vpop.f32.mrf.mxu0
        %v4103 = vadd.f32 %v3920, %v4102
        %v4104 = vpop.f32.mrf.mxu0
        %v4105 = vadd.f32 %v3920, %v4104
        %4106 = vdwg.mxu0
        %4107 = vmatpush.bf16.msra.mxu0 %v4001
        %4108 = vmatpush.bf16.msra.mxu0 %v4000
        %4109 = vmatpush.bf16.msra.mxu0 %v3999
        %4110 = vmatpush.bf16.msra.mxu0 %v3998
        %4111 = vmatpush.bf16.msra.mxu0 %v3997
        %4112 = vmatpush.bf16.msra.mxu0 %v3996
        %4113 = vmatpush.bf16.msra.mxu0 %v3995
        %4114 = vmatpush.bf16.msra.mxu0 %v3994
        %4115 = vmatmul.bf16.gmra.mxu0 %v3855
        %v4116 = vpop.f32.mrf.mxu0
        %v4117 = vadd.f32 %v4028, %v4116
        %v4118 = vpop.f32.mrf.mxu0
        %v4119 = vadd.f32 %v4030, %v4118
        %4120 = vmatmul.bf16.gmra.mxu0 %v3857
        %v4121 = vpop.f32.mrf.mxu0
        %v4122 = vadd.f32 %v4033, %v4121
        %v4123 = vpop.f32.mrf.mxu0
        %v4124 = vadd.f32 %v4035, %v4123
        %4125 = vmatmul.bf16.gmra.mxu0 %v3859
        %v4126 = vpop.f32.mrf.mxu0
        %v4127 = vadd.f32 %v4038, %v4126
        %v4128 = vpop.f32.mrf.mxu0
        %v4129 = vadd.f32 %v4040, %v4128
        %4130 = vmatmul.bf16.gmra.mxu0 %v3861
        %v4131 = vpop.f32.mrf.mxu0
        %v4132 = vadd.f32 %v4043, %v4131
        %v4133 = vpop.f32.mrf.mxu0
        %v4134 = vadd.f32 %v4045, %v4133
        %4135 = vmatmul.bf16.gmra.mxu0 %v3863
        %v4136 = vpop.f32.mrf.mxu0
        %v4137 = vadd.f32 %v4048, %v4136
        %v4138 = vpop.f32.mrf.mxu0
        %v4139 = vadd.f32 %v4050, %v4138
        %4140 = vmatmul.bf16.gmra.mxu0 %v3865
        %v4141 = vpop.f32.mrf.mxu0
        %v4142 = vadd.f32 %v4053, %v4141
        %v4143 = vpop.f32.mrf.mxu0
        %v4144 = vadd.f32 %v4055, %v4143
        %4145 = vmatmul.bf16.gmra.mxu0 %v3867
        %v4146 = vpop.f32.mrf.mxu0
        %v4147 = vadd.f32 %v4058, %v4146
        %v4148 = vpop.f32.mrf.mxu0
        %v4149 = vadd.f32 %v4060, %v4148
        %4150 = vmatmul.bf16.gmra.mxu0 %v3869
        %v4151 = vpop.f32.mrf.mxu0
        %v4152 = vadd.f32 %v4063, %v4151
        %v4153 = vpop.f32.mrf.mxu0
        %v4154 = vadd.f32 %v4065, %v4153
        %4155 = vmatmul.bf16.gmra.mxu0 %v3871
        %v4156 = vpop.f32.mrf.mxu0
        %v4157 = vadd.f32 %v4068, %v4156
        %v4158 = vpop.f32.mrf.mxu0
        %v4159 = vadd.f32 %v4070, %v4158
        %4160 = vmatmul.bf16.gmra.mxu0 %v3873
        %v4161 = vpop.f32.mrf.mxu0
        %v4162 = vadd.f32 %v4073, %v4161
        %v4163 = vpop.f32.mrf.mxu0
        %v4164 = vadd.f32 %v4075, %v4163
        %4165 = vmatmul.bf16.gmra.mxu0 %v3875
        %v4166 = vpop.f32.mrf.mxu0
        %v4167 = vadd.f32 %v4078, %v4166
        %v4168 = vpop.f32.mrf.mxu0
        %v4169 = vadd.f32 %v4080, %v4168
        %4170 = vmatmul.bf16.gmra.mxu0 %v3877
        %v4171 = vpop.f32.mrf.mxu0
        %v4172 = vadd.f32 %v4083, %v4171
        %v4173 = vpop.f32.mrf.mxu0
        %v4174 = vadd.f32 %v4085, %v4173
        %4175 = vmatmul.bf16.gmra.mxu0 %v3879
        %v4176 = vpop.f32.mrf.mxu0
        %v4177 = vadd.f32 %v4088, %v4176
        %v4178 = vpop.f32.mrf.mxu0
        %v4179 = vadd.f32 %v4090, %v4178
        %4180 = vmatmul.bf16.gmra.mxu0 %v3881
        %v4181 = vpop.f32.mrf.mxu0
        %v4182 = vadd.f32 %v4093, %v4181
        %v4183 = vpop.f32.mrf.mxu0
        %v4184 = vadd.f32 %v4095, %v4183
        %4185 = vmatmul.bf16.gmra.mxu0 %v3883
        %v4186 = vpop.f32.mrf.mxu0
        %v4187 = vadd.f32 %v4098, %v4186
        %v4188 = vpop.f32.mrf.mxu0
        %v4189 = vadd.f32 %v4100, %v4188
        %4190 = vmatmul.bf16.gmra.mxu0 %v3885
        %v4191 = vpop.f32.mrf.mxu0
        %v4192 = vadd.f32 %v4103, %v4191
        %v4193 = vpop.f32.mrf.mxu0
        %v4194 = vadd.f32 %v4105, %v4193
        %4195 = vdwg.mxu0
        %v4196 = vmax.f32 %v4117, 0.0
        %v4197 = vmax.f32 %v4119, 0.0
        %v4198 = vmax.f32 %v4122, 0.0
        %v4199 = vmax.f32 %v4124, 0.0
        %v4200 = vmax.f32 %v4127, 0.0
        %v4201 = vmax.f32 %v4129, 0.0
        %v4202 = vmax.f32 %v4132, 0.0
        %v4203 = vmax.f32 %v4134, 0.0
        %v4204 = vmax.f32 %v4137, 0.0
        %v4205 = vmax.f32 %v4139, 0.0
        %v4206 = vmax.f32 %v4142, 0.0
        %v4207 = vmax.f32 %v4144, 0.0
        %v4208 = vmax.f32 %v4147, 0.0
        %v4209 = vmax.f32 %v4149, 0.0
        %v4210 = vmax.f32 %v4152, 0.0
        %v4211 = vmax.f32 %v4154, 0.0
        %v4212 = vmax.f32 %v4157, 0.0
        %v4213 = vmax.f32 %v4159, 0.0
        %v4214 = vmax.f32 %v4162, 0.0
        %v4215 = vmax.f32 %v4164, 0.0
        %v4216 = vmax.f32 %v4167, 0.0
        %v4217 = vmax.f32 %v4169, 0.0
        %v4218 = vmax.f32 %v4172, 0.0
        %v4219 = vmax.f32 %v4174, 0.0
        %v4220 = vmax.f32 %v4177, 0.0
        %v4221 = vmax.f32 %v4179, 0.0
        %v4222 = vmax.f32 %v4182, 0.0
        %v4223 = vmax.f32 %v4184, 0.0
        %v4224 = vmax.f32 %v4187, 0.0
        %v4225 = vmax.f32 %v4189, 0.0
        %v4226 = vmax.f32 %v4192, 0.0
        %v4227 = vmax.f32 %v4194, 0.0
        %4228 = vxpose.xlu0.b32.start [1/16] %v4196, 128
        %4229 = vxpose.xlu0.b32.cont [2/16] %v4197, 128
        %4230 = vxpose.xlu0.b32.cont [3/16] %v4198, 128
        %4231 = vxpose.xlu0.b32.cont [4/16] %v4199, 128
        %4232 = vxpose.xlu0.b32.cont [5/16] %v4200, 128
        %4233 = vxpose.xlu0.b32.cont [6/16] %v4201, 128
        %4234 = vxpose.xlu0.b32.cont [7/16] %v4202, 128
        %4235 = vxpose.xlu0.b32.cont [8/16] %v4203, 128
        %4236 = vxpose.xlu0.b32.cont [9/16] %v4204, 128
        %4237 = vxpose.xlu0.b32.cont [10/16] %v4205, 128
        %4238 = vxpose.xlu0.b32.cont [11/16] %v4206, 128
        %4239 = vxpose.xlu0.b32.cont [12/16] %v4207, 128
        %4240 = vxpose.xlu0.b32.cont [13/16] %v4208, 128
        %4241 = vxpose.xlu0.b32.cont [14/16] %v4209, 128
        %4242 = vxpose.xlu0.b32.cont [15/16] %v4210, 128
        %4243 = vxpose.xlu0.b32.end [16/16] %v4211, 128
        %v4244 = vpop.trf.xlu0
        %v4245 = vpop.trf.xlu0
        %v4246 = vpop.trf.xlu0
        %v4247 = vpop.trf.xlu0
        %v4248 = vpop.trf.xlu0
        %v4249 = vpop.trf.xlu0
        %v4250 = vpop.trf.xlu0
        %v4251 = vpop.trf.xlu0
        %v4252 = vpop.trf.xlu0
        %v4253 = vpop.trf.xlu0
        %v4254 = vpop.trf.xlu0
        %v4255 = vpop.trf.xlu0
        %v4256 = vpop.trf.xlu0
        %v4257 = vpop.trf.xlu0
        %v4258 = vpop.trf.xlu0
        %v4259 = vpop.trf.xlu0
        %4260 = vxpose.xlu0.b32.start [1/16] %v4212, 128
        %4261 = vxpose.xlu0.b32.cont [2/16] %v4213, 128
        %4262 = vxpose.xlu0.b32.cont [3/16] %v4214, 128
        %4263 = vxpose.xlu0.b32.cont [4/16] %v4215, 128
        %4264 = vxpose.xlu0.b32.cont [5/16] %v4216, 128
        %4265 = vxpose.xlu0.b32.cont [6/16] %v4217, 128
        %4266 = vxpose.xlu0.b32.cont [7/16] %v4218, 128
        %4267 = vxpose.xlu0.b32.cont [8/16] %v4219, 128
        %4268 = vxpose.xlu0.b32.cont [9/16] %v4220, 128
        %4269 = vxpose.xlu0.b32.cont [10/16] %v4221, 128
        %4270 = vxpose.xlu0.b32.cont [11/16] %v4222, 128
        %4271 = vxpose.xlu0.b32.cont [12/16] %v4223, 128
        %4272 = vxpose.xlu0.b32.cont [13/16] %v4224, 128
        %4273 = vxpose.xlu0.b32.cont [14/16] %v4225, 128
        %4274 = vxpose.xlu0.b32.cont [15/16] %v4226, 128
        %4275 = vxpose.xlu0.b32.end [16/16] %v4227, 128
        %v4276 = vpop.trf.xlu0
        %v4277 = vpop.trf.xlu0
        %v4278 = vpop.trf.xlu0
        %v4279 = vpop.trf.xlu0
        %v4280 = vpop.trf.xlu0
        %v4281 = vpop.trf.xlu0
        %v4282 = vpop.trf.xlu0
        %v4283 = vpop.trf.xlu0
        %v4284 = vpop.trf.xlu0
        %v4285 = vpop.trf.xlu0
        %v4286 = vpop.trf.xlu0
        %v4287 = vpop.trf.xlu0
        %v4288 = vpop.trf.xlu0
        %v4289 = vpop.trf.xlu0
        %v4290 = vpop.trf.xlu0
        %v4291 = vpop.trf.xlu0
        %v4292 = vlaneseq
        %v4293 = vand.u32 %v4292, 127
        %v4294 = vadd.s32 %v4293, 128
        %v4295 = vand.u32 %v4293, 15
        %v4296 = vand.u32 %v4294, 15
        %vm4297 = vcmp.ne.s32.totalorder %v4295, 15
        %vm4298 = vcmp.ne.s32.totalorder %v4296, 15
        %v4299 = vsel %vm4297, 1, 0
        %v4300 = vsel %vm4298, 1, 0
        %v4301 = vcvt.s32.f32 %v4299
        %v4302 = vcvt.s32.f32 %v4300
        %vm4303 = vcmp.ne.s32.totalorder %v4295, 0
        %vm4304 = vcmp.ne.s32.totalorder %v4296, 0
        %v4305 = vsel %vm4303, 1, 0
        %v4306 = vsel %vm4304, 1, 0
        %v4307 = vcvt.s32.f32 %v4305
        %v4308 = vcvt.s32.f32 %v4306
        %vm4309 = vcmp.lt.s32.totalorder %v4293, 240
        %vm4310 = vcmp.lt.s32.totalorder %v4294, 240
        %v4311 = vsel %vm4309, 1, 0
        %v4312 = vsel %vm4310, 1, 0
        %v4313 = vcvt.s32.f32 %v4311
        %v4314 = vcvt.s32.f32 %v4312
        %vm4315 = vcmp.ge.s32.totalorder %v4293, 16
        %vm4316 = vcmp.ge.s32.totalorder %v4294, 16
        %v4317 = vsel %vm4315, 1, 0
        %v4318 = vsel %vm4316, 1, 0
        %v4319 = vcvt.s32.f32 %v4317
        %v4320 = vcvt.s32.f32 %v4318
        %4337 = vrot.lane.b32.xlu0 %v4276, 17
        %v4338 = vpop.permute.xlu0 %4337
        %4339 = vrot.lane.b32.xlu0 %v4277, 17
        %v4340 = vpop.permute.xlu0 %4339
        %4341 = vrot.lane.b32.xlu0 %v4278, 17
        %v4342 = vpop.permute.xlu0 %4341
        %4343 = vrot.lane.b32.xlu0 %v4279, 17
        %v4344 = vpop.permute.xlu0 %4343
        %4345 = vrot.lane.b32.xlu0 %v4280, 17
        %v4346 = vpop.permute.xlu0 %4345
        %4347 = vrot.lane.b32.xlu0 %v4281, 17
        %v4348 = vpop.permute.xlu0 %4347
        %4349 = vrot.lane.b32.xlu0 %v4282, 17
        %v4350 = vpop.permute.xlu0 %4349
        %4351 = vrot.lane.b32.xlu0 %v4283, 17
        %v4352 = vpop.permute.xlu0 %4351
        %4353 = vrot.lane.b32.xlu0 %v4284, 17
        %v4354 = vpop.permute.xlu0 %4353
        %4355 = vrot.lane.b32.xlu0 %v4285, 17
        %v4356 = vpop.permute.xlu0 %4355
        %4357 = vrot.lane.b32.xlu0 %v4286, 17
        %v4358 = vpop.permute.xlu0 %4357
        %4359 = vrot.lane.b32.xlu0 %v4287, 17
        %v4360 = vpop.permute.xlu0 %4359
        %4361 = vrot.lane.b32.xlu0 %v4288, 17
        %v4362 = vpop.permute.xlu0 %4361
        %4363 = vrot.lane.b32.xlu0 %v4289, 17
        %v4364 = vpop.permute.xlu0 %4363
        %4365 = vrot.lane.b32.xlu0 %v4290, 17
        %v4366 = vpop.permute.xlu0 %4365
        %4367 = vrot.lane.b32.xlu0 %v4291, 17
        %v4368 = vpop.permute.xlu0 %4367
        %4401 = vrot.lane.b32.xlu0 %v4244, 17
        %v4402 = vpop.permute.xlu0 %4401
        %4403 = vrot.lane.b32.xlu0 %v4245, 17
        %v4404 = vpop.permute.xlu0 %4403
        %4405 = vrot.lane.b32.xlu0 %v4246, 17
        %v4406 = vpop.permute.xlu0 %4405
        %4407 = vrot.lane.b32.xlu0 %v4247, 17
        %v4408 = vpop.permute.xlu0 %4407
        %4409 = vrot.lane.b32.xlu0 %v4248, 17
        %v4410 = vpop.permute.xlu0 %4409
        %4411 = vrot.lane.b32.xlu0 %v4249, 17
        %v4412 = vpop.permute.xlu0 %4411
        %4413 = vrot.lane.b32.xlu0 %v4250, 17
        %v4414 = vpop.permute.xlu0 %4413
        %4415 = vrot.lane.b32.xlu0 %v4251, 17
        %v4416 = vpop.permute.xlu0 %4415
        %4417 = vrot.lane.b32.xlu0 %v4252, 17
        %v4418 = vpop.permute.xlu0 %4417
        %4419 = vrot.lane.b32.xlu0 %v4253, 17
        %v4420 = vpop.permute.xlu0 %4419
        %4421 = vrot.lane.b32.xlu0 %v4254, 17
        %v4422 = vpop.permute.xlu0 %4421
        %4423 = vrot.lane.b32.xlu0 %v4255, 17
        %v4424 = vpop.permute.xlu0 %4423
        %4425 = vrot.lane.b32.xlu0 %v4256, 17
        %v4426 = vpop.permute.xlu0 %4425
        %4427 = vrot.lane.b32.xlu0 %v4257, 17
        %v4428 = vpop.permute.xlu0 %4427
        %4429 = vrot.lane.b32.xlu0 %v4258, 17
        %v4430 = vpop.permute.xlu0 %4429
        %4431 = vrot.lane.b32.xlu0 %v4259, 17
        %v4432 = vpop.permute.xlu0 %4431
        %vm4433 = vcmask 138240
        %v4434 = vsel %vm4433, %v4402, %v4338
        %v4435 = vsel %vm4433, %v4404, %v4340
        %v4436 = vsel %vm4433, %v4406, %v4342
        %v4437 = vsel %vm4433, %v4408, %v4344
        %v4438 = vsel %vm4433, %v4410, %v4346
        %v4439 = vsel %vm4433, %v4412, %v4348
        %v4440 = vsel %vm4433, %v4414, %v4350
        %v4441 = vsel %vm4433, %v4416, %v4352
        %v4442 = vsel %vm4433, %v4418, %v4354
        %v4443 = vsel %vm4433, %v4420, %v4356
        %v4444 = vsel %vm4433, %v4422, %v4358
        %v4445 = vsel %vm4433, %v4424, %v4360
        %v4446 = vsel %vm4433, %v4426, %v4362
        %v4447 = vsel %vm4433, %v4428, %v4364
        %v4448 = vsel %vm4433, %v4430, %v4366
        %v4449 = vsel %vm4433, %v4432, %v4368
        %v4482 = vsel %vm4433, %v4338, %v4402
        %v4483 = vsel %vm4433, %v4340, %v4404
        %v4484 = vsel %vm4433, %v4342, %v4406
        %v4485 = vsel %vm4433, %v4344, %v4408
        %v4486 = vsel %vm4433, %v4346, %v4410
        %v4487 = vsel %vm4433, %v4348, %v4412
        %v4488 = vsel %vm4433, %v4350, %v4414
        %v4489 = vsel %vm4433, %v4352, %v4416
        %v4490 = vsel %vm4433, %v4354, %v4418
        %v4491 = vsel %vm4433, %v4356, %v4420
        %v4492 = vsel %vm4433, %v4358, %v4422
        %v4493 = vsel %vm4433, %v4360, %v4424
        %v4494 = vsel %vm4433, %v4362, %v4426
        %v4495 = vsel %vm4433, %v4364, %v4428
        %v4496 = vsel %vm4433, %v4366, %v4430
        %v4497 = vsel %vm4433, %v4368, %v4432
        %v4498 = vmul.f32 %v4482, %v4307
        %v4499 = vmul.f32 %v4434, %v4308
        %v4500 = vmul.f32 %v4483, %v4307
        %v4501 = vmul.f32 %v4435, %v4308
        %v4502 = vmul.f32 %v4484, %v4307
        %v4503 = vmul.f32 %v4436, %v4308
        %v4504 = vmul.f32 %v4485, %v4307
        %v4505 = vmul.f32 %v4437, %v4308
        %v4506 = vmul.f32 %v4486, %v4307
        %v4507 = vmul.f32 %v4438, %v4308
        %v4508 = vmul.f32 %v4487, %v4307
        %v4509 = vmul.f32 %v4439, %v4308
        %v4510 = vmul.f32 %v4488, %v4307
        %v4511 = vmul.f32 %v4440, %v4308
        %v4512 = vmul.f32 %v4489, %v4307
        %v4513 = vmul.f32 %v4441, %v4308
        %v4514 = vmul.f32 %v4490, %v4307
        %v4515 = vmul.f32 %v4442, %v4308
        %v4516 = vmul.f32 %v4491, %v4307
        %v4517 = vmul.f32 %v4443, %v4308
        %v4518 = vmul.f32 %v4492, %v4307
        %v4519 = vmul.f32 %v4444, %v4308
        %v4520 = vmul.f32 %v4493, %v4307
        %v4521 = vmul.f32 %v4445, %v4308
        %v4522 = vmul.f32 %v4494, %v4307
        %v4523 = vmul.f32 %v4446, %v4308
        %v4524 = vmul.f32 %v4495, %v4307
        %v4525 = vmul.f32 %v4447, %v4308
        %v4526 = vmul.f32 %v4496, %v4307
        %v4527 = vmul.f32 %v4448, %v4308
        %v4528 = vmul.f32 %v4497, %v4307
        %v4529 = vmul.f32 %v4449, %v4308
        %v4530 = vmul.f32 %v4498, %v4319
        %v4531 = vmul.f32 %v4499, %v4320
        %v4532 = vmul.f32 %v4500, %v4319
        %v4533 = vmul.f32 %v4501, %v4320
        %v4534 = vmul.f32 %v4502, %v4319
        %v4535 = vmul.f32 %v4503, %v4320
        %v4536 = vmul.f32 %v4504, %v4319
        %v4537 = vmul.f32 %v4505, %v4320
        %v4538 = vmul.f32 %v4506, %v4319
        %v4539 = vmul.f32 %v4507, %v4320
        %v4540 = vmul.f32 %v4508, %v4319
        %v4541 = vmul.f32 %v4509, %v4320
        %v4542 = vmul.f32 %v4510, %v4319
        %v4543 = vmul.f32 %v4511, %v4320
        %v4544 = vmul.f32 %v4512, %v4319
        %v4545 = vmul.f32 %v4513, %v4320
        %v4546 = vmul.f32 %v4514, %v4319
        %v4547 = vmul.f32 %v4515, %v4320
        %v4548 = vmul.f32 %v4516, %v4319
        %v4549 = vmul.f32 %v4517, %v4320
        %v4550 = vmul.f32 %v4518, %v4319
        %v4551 = vmul.f32 %v4519, %v4320
        %v4552 = vmul.f32 %v4520, %v4319
        %v4553 = vmul.f32 %v4521, %v4320
        %v4554 = vmul.f32 %v4522, %v4319
        %v4555 = vmul.f32 %v4523, %v4320
        %v4556 = vmul.f32 %v4524, %v4319
        %v4557 = vmul.f32 %v4525, %v4320
        %v4558 = vmul.f32 %v4526, %v4319
        %v4559 = vmul.f32 %v4527, %v4320
        %v4560 = vmul.f32 %v4528, %v4319
        %v4561 = vmul.f32 %v4529, %v4320
        %v4562 = vld [vmem:[%s11] sm:$0xff]
        %4563 = vrot.lane.b32.xlu0 %v4276, 16
        %v4564 = vpop.permute.xlu0 %4563
        %4565 = vrot.lane.b32.xlu0 %v4277, 16
        %v4566 = vpop.permute.xlu0 %4565
        %4567 = vrot.lane.b32.xlu0 %v4278, 16
        %v4568 = vpop.permute.xlu0 %4567
        %4569 = vrot.lane.b32.xlu0 %v4279, 16
        %v4570 = vpop.permute.xlu0 %4569
        %4571 = vrot.lane.b32.xlu0 %v4280, 16
        %v4572 = vpop.permute.xlu0 %4571
        %4573 = vrot.lane.b32.xlu0 %v4281, 16
        %v4574 = vpop.permute.xlu0 %4573
        %4575 = vrot.lane.b32.xlu0 %v4282, 16
        %v4576 = vpop.permute.xlu0 %4575
        %4577 = vrot.lane.b32.xlu0 %v4283, 16
        %v4578 = vpop.permute.xlu0 %4577
        %4579 = vrot.lane.b32.xlu0 %v4284, 16
        %v4580 = vpop.permute.xlu0 %4579
        %4581 = vrot.lane.b32.xlu0 %v4285, 16
        %v4582 = vpop.permute.xlu0 %4581
        %4583 = vrot.lane.b32.xlu0 %v4286, 16
        %v4584 = vpop.permute.xlu0 %4583
        %4585 = vrot.lane.b32.xlu0 %v4287, 16
        %v4586 = vpop.permute.xlu0 %4585
        %4587 = vrot.lane.b32.xlu0 %v4288, 16
        %v4588 = vpop.permute.xlu0 %4587
        %4589 = vrot.lane.b32.xlu0 %v4289, 16
        %v4590 = vpop.permute.xlu0 %4589
        %4591 = vrot.lane.b32.xlu0 %v4290, 16
        %v4592 = vpop.permute.xlu0 %4591
        %4593 = vrot.lane.b32.xlu0 %v4291, 16
        %v4594 = vpop.permute.xlu0 %4593
        %4611 = vrot.lane.b32.xlu0 %v4244, 16
        %v4612 = vpop.permute.xlu0 %4611
        %4613 = vrot.lane.b32.xlu0 %v4245, 16
        %v4614 = vpop.permute.xlu0 %4613
        %4615 = vrot.lane.b32.xlu0 %v4246, 16
        %v4616 = vpop.permute.xlu0 %4615
        %4617 = vrot.lane.b32.xlu0 %v4247, 16
        %v4618 = vpop.permute.xlu0 %4617
        %4619 = vrot.lane.b32.xlu0 %v4248, 16
        %v4620 = vpop.permute.xlu0 %4619
        %4621 = vrot.lane.b32.xlu0 %v4249, 16
        %v4622 = vpop.permute.xlu0 %4621
        %4623 = vrot.lane.b32.xlu0 %v4250, 16
        %v4624 = vpop.permute.xlu0 %4623
        %4625 = vrot.lane.b32.xlu0 %v4251, 16
        %v4626 = vpop.permute.xlu0 %4625
        %4627 = vrot.lane.b32.xlu0 %v4252, 16
        %v4628 = vpop.permute.xlu0 %4627
        %4629 = vrot.lane.b32.xlu0 %v4253, 16
        %v4630 = vpop.permute.xlu0 %4629
        %4631 = vrot.lane.b32.xlu0 %v4254, 16
        %v4632 = vpop.permute.xlu0 %4631
        %4633 = vrot.lane.b32.xlu0 %v4255, 16
        %v4634 = vpop.permute.xlu0 %4633
        %4635 = vrot.lane.b32.xlu0 %v4256, 16
        %v4636 = vpop.permute.xlu0 %4635
        %4637 = vrot.lane.b32.xlu0 %v4257, 16
        %v4638 = vpop.permute.xlu0 %4637
        %4639 = vrot.lane.b32.xlu0 %v4258, 16
        %v4640 = vpop.permute.xlu0 %4639
        %4641 = vrot.lane.b32.xlu0 %v4259, 16
        %v4642 = vpop.permute.xlu0 %4641
        %v4643 = vsel %vm1511, %v4612, %v4564
        %v4644 = vsel %vm1511, %v4614, %v4566
        %v4645 = vsel %vm1511, %v4616, %v4568
        %v4646 = vsel %vm1511, %v4618, %v4570
        %v4647 = vsel %vm1511, %v4620, %v4572
        %v4648 = vsel %vm1511, %v4622, %v4574
        %v4649 = vsel %vm1511, %v4624, %v4576
        %v4650 = vsel %vm1511, %v4626, %v4578
        %v4651 = vsel %vm1511, %v4628, %v4580
        %v4652 = vsel %vm1511, %v4630, %v4582
        %v4653 = vsel %vm1511, %v4632, %v4584
        %v4654 = vsel %vm1511, %v4634, %v4586
        %v4655 = vsel %vm1511, %v4636, %v4588
        %v4656 = vsel %vm1511, %v4638, %v4590
        %v4657 = vsel %vm1511, %v4640, %v4592
        %v4658 = vsel %vm1511, %v4642, %v4594
        %v4691 = vsel %vm1511, %v4564, %v4612
        %v4692 = vsel %vm1511, %v4566, %v4614
        %v4693 = vsel %vm1511, %v4568, %v4616
        %v4694 = vsel %vm1511, %v4570, %v4618
        %v4695 = vsel %vm1511, %v4572, %v4620
        %v4696 = vsel %vm1511, %v4574, %v4622
        %v4697 = vsel %vm1511, %v4576, %v4624
        %v4698 = vsel %vm1511, %v4578, %v4626
        %v4699 = vsel %vm1511, %v4580, %v4628
        %v4700 = vsel %vm1511, %v4582, %v4630
        %v4701 = vsel %vm1511, %v4584, %v4632
        %v4702 = vsel %vm1511, %v4586, %v4634
        %v4703 = vsel %vm1511, %v4588, %v4636
        %v4704 = vsel %vm1511, %v4590, %v4638
        %v4705 = vsel %vm1511, %v4592, %v4640
        %v4706 = vsel %vm1511, %v4594, %v4642
        %v4707 = vmul.f32 %v4691, %v4319
        %v4708 = vmul.f32 %v4643, %v4320
        %v4709 = vmul.f32 %v4692, %v4319
        %v4710 = vmul.f32 %v4644, %v4320
        %v4711 = vmul.f32 %v4693, %v4319
        %v4712 = vmul.f32 %v4645, %v4320
        %v4713 = vmul.f32 %v4694, %v4319
        %v4714 = vmul.f32 %v4646, %v4320
        %v4715 = vmul.f32 %v4695, %v4319
        %v4716 = vmul.f32 %v4647, %v4320
        %v4717 = vmul.f32 %v4696, %v4319
        %v4718 = vmul.f32 %v4648, %v4320
        %v4719 = vmul.f32 %v4697, %v4319
        %v4720 = vmul.f32 %v4649, %v4320
        %v4721 = vmul.f32 %v4698, %v4319
        %v4722 = vmul.f32 %v4650, %v4320
        %v4723 = vmul.f32 %v4699, %v4319
        %v4724 = vmul.f32 %v4651, %v4320
        %v4725 = vmul.f32 %v4700, %v4319
        %v4726 = vmul.f32 %v4652, %v4320
        %v4727 = vmul.f32 %v4701, %v4319
        %v4728 = vmul.f32 %v4653, %v4320
        %v4729 = vmul.f32 %v4702, %v4319
        %v4730 = vmul.f32 %v4654, %v4320
        %v4731 = vmul.f32 %v4703, %v4319
        %v4732 = vmul.f32 %v4655, %v4320
        %v4733 = vmul.f32 %v4704, %v4319
        %v4734 = vmul.f32 %v4656, %v4320
        %v4735 = vmul.f32 %v4705, %v4319
        %v4736 = vmul.f32 %v4657, %v4320
        %v4737 = vmul.f32 %v4706, %v4319
        %v4738 = vmul.f32 %v4658, %v4320
        %s4739 = scalar_lea.vmem %s11, 8
        %v4740 = vld [vmem:[%s4739] sm:$0xff]
        %4741 = vmatpush.msra.mxu0 %v4737
        %4742 = vmatpush.msra.mxu0 %v4735
        %4743 = vmatpush.msra.mxu0 %v4733
        %4744 = vmatpush.msra.mxu0 %v4731
        %4745 = vmatpush.msra.mxu0 %v4729
        %4746 = vmatpush.msra.mxu0 %v4727
        %4747 = vmatpush.msra.mxu0 %v4725
        %4748 = vmatpush.msra.mxu0 %v4723
        %4749 = vmatpush.msra.mxu0 %v4721
        %4750 = vmatpush.msra.mxu0 %v4719
        %4751 = vmatpush.msra.mxu0 %v4717
        %4752 = vmatpush.msra.mxu0 %v4715
        %4753 = vmatpush.msra.mxu0 %v4713
        %4754 = vmatpush.msra.mxu0 %v4711
        %4755 = vmatpush.msra.mxu0 %v4709
        %4756 = vmatpush.msra.mxu0 %v4707
        %4757 = vmatmul.f32.gmra.mxu0 %v4740
        %v4758 = vpop.f32.mrf.mxu0
        %v4759 = vadd.f32 0.0, %v4758
        %4760 = vdwg.mxu0
        %4761 = vmatpush.msra.mxu0 %v4738
        %4762 = vmatpush.msra.mxu0 %v4736
        %4763 = vmatpush.msra.mxu0 %v4734
        %4764 = vmatpush.msra.mxu0 %v4732
        %4765 = vmatpush.msra.mxu0 %v4730
        %4766 = vmatpush.msra.mxu0 %v4728
        %4767 = vmatpush.msra.mxu0 %v4726
        %4768 = vmatpush.msra.mxu0 %v4724
        %4769 = vmatpush.msra.mxu0 %v4722
        %4770 = vmatpush.msra.mxu0 %v4720
        %4771 = vmatpush.msra.mxu0 %v4718
        %4772 = vmatpush.msra.mxu0 %v4716
        %4773 = vmatpush.msra.mxu0 %v4714
        %4774 = vmatpush.msra.mxu0 %v4712
        %4775 = vmatpush.msra.mxu0 %v4710
        %4776 = vmatpush.msra.mxu0 %v4708
        %4777 = vmatmul.f32.gmra.mxu0 %v4740
        %v4778 = vpop.f32.mrf.mxu0
        %v4779 = vadd.f32 0.0, %v4778
        %4780 = vdwg.mxu0
        %4781 = vmatpush.msra.mxu0 %v4560
        %4782 = vmatpush.msra.mxu0 %v4558
        %4783 = vmatpush.msra.mxu0 %v4556
        %4784 = vmatpush.msra.mxu0 %v4554
        %4785 = vmatpush.msra.mxu0 %v4552
        %4786 = vmatpush.msra.mxu0 %v4550
        %4787 = vmatpush.msra.mxu0 %v4548
        %4788 = vmatpush.msra.mxu0 %v4546
        %4789 = vmatpush.msra.mxu0 %v4544
        %4790 = vmatpush.msra.mxu0 %v4542
        %4791 = vmatpush.msra.mxu0 %v4540
        %4792 = vmatpush.msra.mxu0 %v4538
        %4793 = vmatpush.msra.mxu0 %v4536
        %4794 = vmatpush.msra.mxu0 %v4534
        %4795 = vmatpush.msra.mxu0 %v4532
        %4796 = vmatpush.msra.mxu0 %v4530
        %4797 = vmatmul.f32.gmra.mxu0 %v4562
        %v4798 = vpop.f32.mrf.mxu0
        %v4799 = vadd.f32 %v4759, %v4798
        %4800 = vdwg.mxu0
        %4801 = vmatpush.msra.mxu0 %v4561
        %4802 = vmatpush.msra.mxu0 %v4559
        %4803 = vmatpush.msra.mxu0 %v4557
        %4804 = vmatpush.msra.mxu0 %v4555
        %4805 = vmatpush.msra.mxu0 %v4553
        %4806 = vmatpush.msra.mxu0 %v4551
        %4807 = vmatpush.msra.mxu0 %v4549
        %4808 = vmatpush.msra.mxu0 %v4547
        %4809 = vmatpush.msra.mxu0 %v4545
        %4810 = vmatpush.msra.mxu0 %v4543
        %4811 = vmatpush.msra.mxu0 %v4541
        %4812 = vmatpush.msra.mxu0 %v4539
        %4813 = vmatpush.msra.mxu0 %v4537
        %4814 = vmatpush.msra.mxu0 %v4535
        %4815 = vmatpush.msra.mxu0 %v4533
        %4816 = vmatpush.msra.mxu0 %v4531
        %4817 = vmatmul.f32.gmra.mxu0 %v4562
        %v4818 = vpop.f32.mrf.mxu0
        %v4819 = vadd.f32 %v4779, %v4818
        %4820 = vdwg.mxu0
        %4821 = vrot.lane.b32.xlu0 %v4276, 15
        %v4822 = vpop.permute.xlu0 %4821
        %4823 = vrot.lane.b32.xlu0 %v4277, 15
        %v4824 = vpop.permute.xlu0 %4823
        %4825 = vrot.lane.b32.xlu0 %v4278, 15
        %v4826 = vpop.permute.xlu0 %4825
        %4827 = vrot.lane.b32.xlu0 %v4279, 15
        %v4828 = vpop.permute.xlu0 %4827
        %4829 = vrot.lane.b32.xlu0 %v4280, 15
        %v4830 = vpop.permute.xlu0 %4829
        %4831 = vrot.lane.b32.xlu0 %v4281, 15
        %v4832 = vpop.permute.xlu0 %4831
        %4833 = vrot.lane.b32.xlu0 %v4282, 15
        %v4834 = vpop.permute.xlu0 %4833
        %4835 = vrot.lane.b32.xlu0 %v4283, 15
        %v4836 = vpop.permute.xlu0 %4835
        %4837 = vrot.lane.b32.xlu0 %v4284, 15
        %v4838 = vpop.permute.xlu0 %4837
        %4839 = vrot.lane.b32.xlu0 %v4285, 15
        %v4840 = vpop.permute.xlu0 %4839
        %4841 = vrot.lane.b32.xlu0 %v4286, 15
        %v4842 = vpop.permute.xlu0 %4841
        %4843 = vrot.lane.b32.xlu0 %v4287, 15
        %v4844 = vpop.permute.xlu0 %4843
        %4845 = vrot.lane.b32.xlu0 %v4288, 15
        %v4846 = vpop.permute.xlu0 %4845
        %4847 = vrot.lane.b32.xlu0 %v4289, 15
        %v4848 = vpop.permute.xlu0 %4847
        %4849 = vrot.lane.b32.xlu0 %v4290, 15
        %v4850 = vpop.permute.xlu0 %4849
        %4851 = vrot.lane.b32.xlu0 %v4291, 15
        %v4852 = vpop.permute.xlu0 %4851
        %4869 = vrot.lane.b32.xlu0 %v4244, 15
        %v4870 = vpop.permute.xlu0 %4869
        %4871 = vrot.lane.b32.xlu0 %v4245, 15
        %v4872 = vpop.permute.xlu0 %4871
        %4873 = vrot.lane.b32.xlu0 %v4246, 15
        %v4874 = vpop.permute.xlu0 %4873
        %4875 = vrot.lane.b32.xlu0 %v4247, 15
        %v4876 = vpop.permute.xlu0 %4875
        %4877 = vrot.lane.b32.xlu0 %v4248, 15
        %v4878 = vpop.permute.xlu0 %4877
        %4879 = vrot.lane.b32.xlu0 %v4249, 15
        %v4880 = vpop.permute.xlu0 %4879
        %4881 = vrot.lane.b32.xlu0 %v4250, 15
        %v4882 = vpop.permute.xlu0 %4881
        %4883 = vrot.lane.b32.xlu0 %v4251, 15
        %v4884 = vpop.permute.xlu0 %4883
        %4885 = vrot.lane.b32.xlu0 %v4252, 15
        %v4886 = vpop.permute.xlu0 %4885
        %4887 = vrot.lane.b32.xlu0 %v4253, 15
        %v4888 = vpop.permute.xlu0 %4887
        %4889 = vrot.lane.b32.xlu0 %v4254, 15
        %v4890 = vpop.permute.xlu0 %4889
        %4891 = vrot.lane.b32.xlu0 %v4255, 15
        %v4892 = vpop.permute.xlu0 %4891
        %4893 = vrot.lane.b32.xlu0 %v4256, 15
        %v4894 = vpop.permute.xlu0 %4893
        %4895 = vrot.lane.b32.xlu0 %v4257, 15
        %v4896 = vpop.permute.xlu0 %4895
        %4897 = vrot.lane.b32.xlu0 %v4258, 15
        %v4898 = vpop.permute.xlu0 %4897
        %4899 = vrot.lane.b32.xlu0 %v4259, 15
        %v4900 = vpop.permute.xlu0 %4899
        %vm4901 = vcmask 121856
        %v4902 = vsel %vm4901, %v4870, %v4822
        %v4903 = vsel %vm4901, %v4872, %v4824
        %v4904 = vsel %vm4901, %v4874, %v4826
        %v4905 = vsel %vm4901, %v4876, %v4828
        %v4906 = vsel %vm4901, %v4878, %v4830
        %v4907 = vsel %vm4901, %v4880, %v4832
        %v4908 = vsel %vm4901, %v4882, %v4834
        %v4909 = vsel %vm4901, %v4884, %v4836
        %v4910 = vsel %vm4901, %v4886, %v4838
        %v4911 = vsel %vm4901, %v4888, %v4840
        %v4912 = vsel %vm4901, %v4890, %v4842
        %v4913 = vsel %vm4901, %v4892, %v4844
        %v4914 = vsel %vm4901, %v4894, %v4846
        %v4915 = vsel %vm4901, %v4896, %v4848
        %v4916 = vsel %vm4901, %v4898, %v4850
        %v4917 = vsel %vm4901, %v4900, %v4852
        %v4950 = vsel %vm4901, %v4822, %v4870
        %v4951 = vsel %vm4901, %v4824, %v4872
        %v4952 = vsel %vm4901, %v4826, %v4874
        %v4953 = vsel %vm4901, %v4828, %v4876
        %v4954 = vsel %vm4901, %v4830, %v4878
        %v4955 = vsel %vm4901, %v4832, %v4880
        %v4956 = vsel %vm4901, %v4834, %v4882
        %v4957 = vsel %vm4901, %v4836, %v4884
        %v4958 = vsel %vm4901, %v4838, %v4886
        %v4959 = vsel %vm4901, %v4840, %v4888
        %v4960 = vsel %vm4901, %v4842, %v4890
        %v4961 = vsel %vm4901, %v4844, %v4892
        %v4962 = vsel %vm4901, %v4846, %v4894
        %v4963 = vsel %vm4901, %v4848, %v4896
        %v4964 = vsel %vm4901, %v4850, %v4898
        %v4965 = vsel %vm4901, %v4852, %v4900
        %v4966 = vmul.f32 %v4950, %v4301
        %v4967 = vmul.f32 %v4902, %v4302
        %v4968 = vmul.f32 %v4951, %v4301
        %v4969 = vmul.f32 %v4903, %v4302
        %v4970 = vmul.f32 %v4952, %v4301
        %v4971 = vmul.f32 %v4904, %v4302
        %v4972 = vmul.f32 %v4953, %v4301
        %v4973 = vmul.f32 %v4905, %v4302
        %v4974 = vmul.f32 %v4954, %v4301
        %v4975 = vmul.f32 %v4906, %v4302
        %v4976 = vmul.f32 %v4955, %v4301
        %v4977 = vmul.f32 %v4907, %v4302
        %v4978 = vmul.f32 %v4956, %v4301
        %v4979 = vmul.f32 %v4908, %v4302
        %v4980 = vmul.f32 %v4957, %v4301
        %v4981 = vmul.f32 %v4909, %v4302
        %v4982 = vmul.f32 %v4958, %v4301
        %v4983 = vmul.f32 %v4910, %v4302
        %v4984 = vmul.f32 %v4959, %v4301
        %v4985 = vmul.f32 %v4911, %v4302
        %v4986 = vmul.f32 %v4960, %v4301
        %v4987 = vmul.f32 %v4912, %v4302
        %v4988 = vmul.f32 %v4961, %v4301
        %v4989 = vmul.f32 %v4913, %v4302
        %v4990 = vmul.f32 %v4962, %v4301
        %v4991 = vmul.f32 %v4914, %v4302
        %v4992 = vmul.f32 %v4963, %v4301
        %v4993 = vmul.f32 %v4915, %v4302
        %v4994 = vmul.f32 %v4964, %v4301
        %v4995 = vmul.f32 %v4916, %v4302
        %v4996 = vmul.f32 %v4965, %v4301
        %v4997 = vmul.f32 %v4917, %v4302
        %v4998 = vmul.f32 %v4966, %v4319
        %v4999 = vmul.f32 %v4967, %v4320
        %v5000 = vmul.f32 %v4968, %v4319
        %v5001 = vmul.f32 %v4969, %v4320
        %v5002 = vmul.f32 %v4970, %v4319
        %v5003 = vmul.f32 %v4971, %v4320
        %v5004 = vmul.f32 %v4972, %v4319
        %v5005 = vmul.f32 %v4973, %v4320
        %v5006 = vmul.f32 %v4974, %v4319
        %v5007 = vmul.f32 %v4975, %v4320
        %v5008 = vmul.f32 %v4976, %v4319
        %v5009 = vmul.f32 %v4977, %v4320
        %v5010 = vmul.f32 %v4978, %v4319
        %v5011 = vmul.f32 %v4979, %v4320
        %v5012 = vmul.f32 %v4980, %v4319
        %v5013 = vmul.f32 %v4981, %v4320
        %v5014 = vmul.f32 %v4982, %v4319
        %v5015 = vmul.f32 %v4983, %v4320
        %v5016 = vmul.f32 %v4984, %v4319
        %v5017 = vmul.f32 %v4985, %v4320
        %v5018 = vmul.f32 %v4986, %v4319
        %v5019 = vmul.f32 %v4987, %v4320
        %v5020 = vmul.f32 %v4988, %v4319
        %v5021 = vmul.f32 %v4989, %v4320
        %v5022 = vmul.f32 %v4990, %v4319
        %v5023 = vmul.f32 %v4991, %v4320
        %v5024 = vmul.f32 %v4992, %v4319
        %v5025 = vmul.f32 %v4993, %v4320
        %v5026 = vmul.f32 %v4994, %v4319
        %v5027 = vmul.f32 %v4995, %v4320
        %v5028 = vmul.f32 %v4996, %v4319
        %v5029 = vmul.f32 %v4997, %v4320
        %s5030 = scalar_lea.vmem %s11, 16
        %v5031 = vld [vmem:[%s5030] sm:$0xff]
        %5032 = vmatpush.msra.mxu0 %v5028
        %5033 = vmatpush.msra.mxu0 %v5026
        %5034 = vmatpush.msra.mxu0 %v5024
        %5035 = vmatpush.msra.mxu0 %v5022
        %5036 = vmatpush.msra.mxu0 %v5020
        %5037 = vmatpush.msra.mxu0 %v5018
        %5038 = vmatpush.msra.mxu0 %v5016
        %5039 = vmatpush.msra.mxu0 %v5014
        %5040 = vmatpush.msra.mxu0 %v5012
        %5041 = vmatpush.msra.mxu0 %v5010
        %5042 = vmatpush.msra.mxu0 %v5008
        %5043 = vmatpush.msra.mxu0 %v5006
        %5044 = vmatpush.msra.mxu0 %v5004
        %5045 = vmatpush.msra.mxu0 %v5002
        %5046 = vmatpush.msra.mxu0 %v5000
        %5047 = vmatpush.msra.mxu0 %v4998
        %5048 = vmatmul.f32.gmra.mxu0 %v5031
        %v5049 = vpop.f32.mrf.mxu0
        %v5050 = vadd.f32 0.0, %v5049
        %5051 = vdwg.mxu0
        %5052 = vmatpush.msra.mxu0 %v5029
        %5053 = vmatpush.msra.mxu0 %v5027
        %5054 = vmatpush.msra.mxu0 %v5025
        %5055 = vmatpush.msra.mxu0 %v5023
        %5056 = vmatpush.msra.mxu0 %v5021
        %5057 = vmatpush.msra.mxu0 %v5019
        %5058 = vmatpush.msra.mxu0 %v5017
        %5059 = vmatpush.msra.mxu0 %v5015
        %5060 = vmatpush.msra.mxu0 %v5013
        %5061 = vmatpush.msra.mxu0 %v5011
        %5062 = vmatpush.msra.mxu0 %v5009
        %5063 = vmatpush.msra.mxu0 %v5007
        %5064 = vmatpush.msra.mxu0 %v5005
        %5065 = vmatpush.msra.mxu0 %v5003
        %5066 = vmatpush.msra.mxu0 %v5001
        %5067 = vmatpush.msra.mxu0 %v4999
        %5068 = vmatmul.f32.gmra.mxu0 %v5031
        %v5069 = vpop.f32.mrf.mxu0
        %v5070 = vadd.f32 0.0, %v5069
        %5071 = vdwg.mxu0
        %v5072 = vadd.f32 %v4799, %v5050
        %v5073 = vadd.f32 %v4819, %v5070
        %5074 = vrot.lane.b32.xlu0 %v4276, 1
        %v5075 = vpop.permute.xlu0 %5074
        %5076 = vrot.lane.b32.xlu0 %v4277, 1
        %v5077 = vpop.permute.xlu0 %5076
        %5078 = vrot.lane.b32.xlu0 %v4278, 1
        %v5079 = vpop.permute.xlu0 %5078
        %5080 = vrot.lane.b32.xlu0 %v4279, 1
        %v5081 = vpop.permute.xlu0 %5080
        %5082 = vrot.lane.b32.xlu0 %v4280, 1
        %v5083 = vpop.permute.xlu0 %5082
        %5084 = vrot.lane.b32.xlu0 %v4281, 1
        %v5085 = vpop.permute.xlu0 %5084
        %5086 = vrot.lane.b32.xlu0 %v4282, 1
        %v5087 = vpop.permute.xlu0 %5086
        %5088 = vrot.lane.b32.xlu0 %v4283, 1
        %v5089 = vpop.permute.xlu0 %5088
        %5090 = vrot.lane.b32.xlu0 %v4284, 1
        %v5091 = vpop.permute.xlu0 %5090
        %5092 = vrot.lane.b32.xlu0 %v4285, 1
        %v5093 = vpop.permute.xlu0 %5092
        %5094 = vrot.lane.b32.xlu0 %v4286, 1
        %v5095 = vpop.permute.xlu0 %5094
        %5096 = vrot.lane.b32.xlu0 %v4287, 1
        %v5097 = vpop.permute.xlu0 %5096
        %5098 = vrot.lane.b32.xlu0 %v4288, 1
        %v5099 = vpop.permute.xlu0 %5098
        %5100 = vrot.lane.b32.xlu0 %v4289, 1
        %v5101 = vpop.permute.xlu0 %5100
        %5102 = vrot.lane.b32.xlu0 %v4290, 1
        %v5103 = vpop.permute.xlu0 %5102
        %5104 = vrot.lane.b32.xlu0 %v4291, 1
        %v5105 = vpop.permute.xlu0 %5104
        %5122 = vrot.lane.b32.xlu0 %v4244, 1
        %v5123 = vpop.permute.xlu0 %5122
        %5124 = vrot.lane.b32.xlu0 %v4245, 1
        %v5125 = vpop.permute.xlu0 %5124
        %5126 = vrot.lane.b32.xlu0 %v4246, 1
        %v5127 = vpop.permute.xlu0 %5126
        %5128 = vrot.lane.b32.xlu0 %v4247, 1
        %v5129 = vpop.permute.xlu0 %5128
        %5130 = vrot.lane.b32.xlu0 %v4248, 1
        %v5131 = vpop.permute.xlu0 %5130
        %5132 = vrot.lane.b32.xlu0 %v4249, 1
        %v5133 = vpop.permute.xlu0 %5132
        %5134 = vrot.lane.b32.xlu0 %v4250, 1
        %v5135 = vpop.permute.xlu0 %5134
        %5136 = vrot.lane.b32.xlu0 %v4251, 1
        %v5137 = vpop.permute.xlu0 %5136
        %5138 = vrot.lane.b32.xlu0 %v4252, 1
        %v5139 = vpop.permute.xlu0 %5138
        %5140 = vrot.lane.b32.xlu0 %v4253, 1
        %v5141 = vpop.permute.xlu0 %5140
        %5142 = vrot.lane.b32.xlu0 %v4254, 1
        %v5143 = vpop.permute.xlu0 %5142
        %5144 = vrot.lane.b32.xlu0 %v4255, 1
        %v5145 = vpop.permute.xlu0 %5144
        %5146 = vrot.lane.b32.xlu0 %v4256, 1
        %v5147 = vpop.permute.xlu0 %5146
        %5148 = vrot.lane.b32.xlu0 %v4257, 1
        %v5149 = vpop.permute.xlu0 %5148
        %5150 = vrot.lane.b32.xlu0 %v4258, 1
        %v5151 = vpop.permute.xlu0 %5150
        %5152 = vrot.lane.b32.xlu0 %v4259, 1
        %v5153 = vpop.permute.xlu0 %5152
        %vm5154 = vcmask 7168
        %v5155 = vsel %vm5154, %v5123, %v5075
        %v5156 = vsel %vm5154, %v5125, %v5077
        %v5157 = vsel %vm5154, %v5127, %v5079
        %v5158 = vsel %vm5154, %v5129, %v5081
        %v5159 = vsel %vm5154, %v5131, %v5083
        %v5160 = vsel %vm5154, %v5133, %v5085
        %v5161 = vsel %vm5154, %v5135, %v5087
        %v5162 = vsel %vm5154, %v5137, %v5089
        %v5163 = vsel %vm5154, %v5139, %v5091
        %v5164 = vsel %vm5154, %v5141, %v5093
        %v5165 = vsel %vm5154, %v5143, %v5095
        %v5166 = vsel %vm5154, %v5145, %v5097
        %v5167 = vsel %vm5154, %v5147, %v5099
        %v5168 = vsel %vm5154, %v5149, %v5101
        %v5169 = vsel %vm5154, %v5151, %v5103
        %v5170 = vsel %vm5154, %v5153, %v5105
        %v5203 = vsel %vm5154, %v5075, %v5123
        %v5204 = vsel %vm5154, %v5077, %v5125
        %v5205 = vsel %vm5154, %v5079, %v5127
        %v5206 = vsel %vm5154, %v5081, %v5129
        %v5207 = vsel %vm5154, %v5083, %v5131
        %v5208 = vsel %vm5154, %v5085, %v5133
        %v5209 = vsel %vm5154, %v5087, %v5135
        %v5210 = vsel %vm5154, %v5089, %v5137
        %v5211 = vsel %vm5154, %v5091, %v5139
        %v5212 = vsel %vm5154, %v5093, %v5141
        %v5213 = vsel %vm5154, %v5095, %v5143
        %v5214 = vsel %vm5154, %v5097, %v5145
        %v5215 = vsel %vm5154, %v5099, %v5147
        %v5216 = vsel %vm5154, %v5101, %v5149
        %v5217 = vsel %vm5154, %v5103, %v5151
        %v5218 = vsel %vm5154, %v5105, %v5153
        %v5219 = vmul.f32 %v5203, %v4307
        %v5220 = vmul.f32 %v5155, %v4308
        %v5221 = vmul.f32 %v5204, %v4307
        %v5222 = vmul.f32 %v5156, %v4308
        %v5223 = vmul.f32 %v5205, %v4307
        %v5224 = vmul.f32 %v5157, %v4308
        %v5225 = vmul.f32 %v5206, %v4307
        %v5226 = vmul.f32 %v5158, %v4308
        %v5227 = vmul.f32 %v5207, %v4307
        %v5228 = vmul.f32 %v5159, %v4308
        %v5229 = vmul.f32 %v5208, %v4307
        %v5230 = vmul.f32 %v5160, %v4308
        %v5231 = vmul.f32 %v5209, %v4307
        %v5232 = vmul.f32 %v5161, %v4308
        %v5233 = vmul.f32 %v5210, %v4307
        %v5234 = vmul.f32 %v5162, %v4308
        %v5235 = vmul.f32 %v5211, %v4307
        %v5236 = vmul.f32 %v5163, %v4308
        %v5237 = vmul.f32 %v5212, %v4307
        %v5238 = vmul.f32 %v5164, %v4308
        %v5239 = vmul.f32 %v5213, %v4307
        %v5240 = vmul.f32 %v5165, %v4308
        %v5241 = vmul.f32 %v5214, %v4307
        %v5242 = vmul.f32 %v5166, %v4308
        %v5243 = vmul.f32 %v5215, %v4307
        %v5244 = vmul.f32 %v5167, %v4308
        %v5245 = vmul.f32 %v5216, %v4307
        %v5246 = vmul.f32 %v5168, %v4308
        %v5247 = vmul.f32 %v5217, %v4307
        %v5248 = vmul.f32 %v5169, %v4308
        %v5249 = vmul.f32 %v5218, %v4307
        %v5250 = vmul.f32 %v5170, %v4308
        %s5251 = scalar_lea.vmem %s11, 24
        %v5252 = vld [vmem:[%s5251] sm:$0xff]
        %5253 = vmatpush.msra.mxu0 %v5249
        %5254 = vmatpush.msra.mxu0 %v5247
        %5255 = vmatpush.msra.mxu0 %v5245
        %5256 = vmatpush.msra.mxu0 %v5243
        %5257 = vmatpush.msra.mxu0 %v5241
        %5258 = vmatpush.msra.mxu0 %v5239
        %5259 = vmatpush.msra.mxu0 %v5237
        %5260 = vmatpush.msra.mxu0 %v5235
        %5261 = vmatpush.msra.mxu0 %v5233
        %5262 = vmatpush.msra.mxu0 %v5231
        %5263 = vmatpush.msra.mxu0 %v5229
        %5264 = vmatpush.msra.mxu0 %v5227
        %5265 = vmatpush.msra.mxu0 %v5225
        %5266 = vmatpush.msra.mxu0 %v5223
        %5267 = vmatpush.msra.mxu0 %v5221
        %5268 = vmatpush.msra.mxu0 %v5219
        %5269 = vmatmul.f32.gmra.mxu0 %v5252
        %v5270 = vpop.f32.mrf.mxu0
        %v5271 = vadd.f32 0.0, %v5270
        %5272 = vdwg.mxu0
        %5273 = vmatpush.msra.mxu0 %v5250
        %5274 = vmatpush.msra.mxu0 %v5248
        %5275 = vmatpush.msra.mxu0 %v5246
        %5276 = vmatpush.msra.mxu0 %v5244
        %5277 = vmatpush.msra.mxu0 %v5242
        %5278 = vmatpush.msra.mxu0 %v5240
        %5279 = vmatpush.msra.mxu0 %v5238
        %5280 = vmatpush.msra.mxu0 %v5236
        %5281 = vmatpush.msra.mxu0 %v5234
        %5282 = vmatpush.msra.mxu0 %v5232
        %5283 = vmatpush.msra.mxu0 %v5230
        %5284 = vmatpush.msra.mxu0 %v5228
        %5285 = vmatpush.msra.mxu0 %v5226
        %5286 = vmatpush.msra.mxu0 %v5224
        %5287 = vmatpush.msra.mxu0 %v5222
        %5288 = vmatpush.msra.mxu0 %v5220
        %5289 = vmatmul.f32.gmra.mxu0 %v5252
        %v5290 = vpop.f32.mrf.mxu0
        %v5291 = vadd.f32 0.0, %v5290
        %5292 = vdwg.mxu0
        %v5293 = vadd.f32 %v5072, %v5271
        %v5294 = vadd.f32 %v5073, %v5291
        %s5295 = scalar_lea.vmem %s11, 32
        %v5296 = vld [vmem:[%s5295] sm:$0xff]
        %5297 = vmatpush.msra.mxu0 %v4259
        %5298 = vmatpush.msra.mxu0 %v4258
        %5299 = vmatpush.msra.mxu0 %v4257
        %5300 = vmatpush.msra.mxu0 %v4256
        %5301 = vmatpush.msra.mxu0 %v4255
        %5302 = vmatpush.msra.mxu0 %v4254
        %5303 = vmatpush.msra.mxu0 %v4253
        %5304 = vmatpush.msra.mxu0 %v4252
        %5305 = vmatpush.msra.mxu0 %v4251
        %5306 = vmatpush.msra.mxu0 %v4250
        %5307 = vmatpush.msra.mxu0 %v4249
        %5308 = vmatpush.msra.mxu0 %v4248
        %5309 = vmatpush.msra.mxu0 %v4247
        %5310 = vmatpush.msra.mxu0 %v4246
        %5311 = vmatpush.msra.mxu0 %v4245
        %5312 = vmatpush.msra.mxu0 %v4244
        %5313 = vmatmul.f32.gmra.mxu0 %v5296
        %v5314 = vpop.f32.mrf.mxu0
        %v5315 = vadd.f32 0.0, %v5314
        %5316 = vdwg.mxu0
        %5317 = vmatpush.msra.mxu0 %v4291
        %5318 = vmatpush.msra.mxu0 %v4290
        %5319 = vmatpush.msra.mxu0 %v4289
        %5320 = vmatpush.msra.mxu0 %v4288
        %5321 = vmatpush.msra.mxu0 %v4287
        %5322 = vmatpush.msra.mxu0 %v4286
        %5323 = vmatpush.msra.mxu0 %v4285
        %5324 = vmatpush.msra.mxu0 %v4284
        %5325 = vmatpush.msra.mxu0 %v4283
        %5326 = vmatpush.msra.mxu0 %v4282
        %5327 = vmatpush.msra.mxu0 %v4281
        %5328 = vmatpush.msra.mxu0 %v4280
        %5329 = vmatpush.msra.mxu0 %v4279
        %5330 = vmatpush.msra.mxu0 %v4278
        %5331 = vmatpush.msra.mxu0 %v4277
        %5332 = vmatpush.msra.mxu0 %v4276
        %5333 = vmatmul.f32.gmra.mxu0 %v5296
        %v5334 = vpop.f32.mrf.mxu0
        %v5335 = vadd.f32 0.0, %v5334
        %5336 = vdwg.mxu0
        %v5337 = vadd.f32 %v5293, %v5315
        %v5338 = vadd.f32 %v5294, %v5335
        %5339 = vrot.lane.b32.xlu0 %v4244, 127
        %v5340 = vpop.permute.xlu0 %5339
        %5341 = vrot.lane.b32.xlu0 %v4276, 127
        %v5342 = vpop.permute.xlu0 %5341
        %5343 = vrot.lane.b32.xlu0 %v4245, 127
        %v5344 = vpop.permute.xlu0 %5343
        %5345 = vrot.lane.b32.xlu0 %v4277, 127
        %v5346 = vpop.permute.xlu0 %5345
        %5347 = vrot.lane.b32.xlu0 %v4246, 127
        %v5348 = vpop.permute.xlu0 %5347
        %5349 = vrot.lane.b32.xlu0 %v4278, 127
        %v5350 = vpop.permute.xlu0 %5349
        %5351 = vrot.lane.b32.xlu0 %v4247, 127
        %v5352 = vpop.permute.xlu0 %5351
        %5353 = vrot.lane.b32.xlu0 %v4279, 127
        %v5354 = vpop.permute.xlu0 %5353
        %5355 = vrot.lane.b32.xlu0 %v4248, 127
        %v5356 = vpop.permute.xlu0 %5355
        %5357 = vrot.lane.b32.xlu0 %v4280, 127
        %v5358 = vpop.permute.xlu0 %5357
        %5359 = vrot.lane.b32.xlu0 %v4249, 127
        %v5360 = vpop.permute.xlu0 %5359
        %5361 = vrot.lane.b32.xlu0 %v4281, 127
        %v5362 = vpop.permute.xlu0 %5361
        %5363 = vrot.lane.b32.xlu0 %v4250, 127
        %v5364 = vpop.permute.xlu0 %5363
        %5365 = vrot.lane.b32.xlu0 %v4282, 127
        %v5366 = vpop.permute.xlu0 %5365
        %5367 = vrot.lane.b32.xlu0 %v4251, 127
        %v5368 = vpop.permute.xlu0 %5367
        %5369 = vrot.lane.b32.xlu0 %v4283, 127
        %v5370 = vpop.permute.xlu0 %5369
        %5371 = vrot.lane.b32.xlu0 %v4252, 127
        %v5372 = vpop.permute.xlu0 %5371
        %5373 = vrot.lane.b32.xlu0 %v4284, 127
        %v5374 = vpop.permute.xlu0 %5373
        %5375 = vrot.lane.b32.xlu0 %v4253, 127
        %v5376 = vpop.permute.xlu0 %5375
        %5377 = vrot.lane.b32.xlu0 %v4285, 127
        %v5378 = vpop.permute.xlu0 %5377
        %5379 = vrot.lane.b32.xlu0 %v4254, 127
        %v5380 = vpop.permute.xlu0 %5379
        %5381 = vrot.lane.b32.xlu0 %v4286, 127
        %v5382 = vpop.permute.xlu0 %5381
        %5383 = vrot.lane.b32.xlu0 %v4255, 127
        %v5384 = vpop.permute.xlu0 %5383
        %5385 = vrot.lane.b32.xlu0 %v4287, 127
        %v5386 = vpop.permute.xlu0 %5385
        %5387 = vrot.lane.b32.xlu0 %v4256, 127
        %v5388 = vpop.permute.xlu0 %5387
        %5389 = vrot.lane.b32.xlu0 %v4288, 127
        %v5390 = vpop.permute.xlu0 %5389
        %5391 = vrot.lane.b32.xlu0 %v4257, 127
        %v5392 = vpop.permute.xlu0 %5391
        %5393 = vrot.lane.b32.xlu0 %v4289, 127
        %v5394 = vpop.permute.xlu0 %5393
        %5395 = vrot.lane.b32.xlu0 %v4258, 127
        %v5396 = vpop.permute.xlu0 %5395
        %5397 = vrot.lane.b32.xlu0 %v4290, 127
        %v5398 = vpop.permute.xlu0 %5397
        %5399 = vrot.lane.b32.xlu0 %v4259, 127
        %v5400 = vpop.permute.xlu0 %5399
        %5401 = vrot.lane.b32.xlu0 %v4291, 127
        %v5402 = vpop.permute.xlu0 %5401
        %vm5403 = vcmask 1039360
        %v5404 = vsel %vm5403, %v5340, %v5342
        %v5405 = vsel %vm5403, %v5344, %v5346
        %v5406 = vsel %vm5403, %v5348, %v5350
        %v5407 = vsel %vm5403, %v5352, %v5354
        %v5408 = vsel %vm5403, %v5356, %v5358
        %v5409 = vsel %vm5403, %v5360, %v5362
        %v5410 = vsel %vm5403, %v5364, %v5366
        %v5411 = vsel %vm5403, %v5368, %v5370
        %v5412 = vsel %vm5403, %v5372, %v5374
        %v5413 = vsel %vm5403, %v5376, %v5378
        %v5414 = vsel %vm5403, %v5380, %v5382
        %v5415 = vsel %vm5403, %v5384, %v5386
        %v5416 = vsel %vm5403, %v5388, %v5390
        %v5417 = vsel %vm5403, %v5392, %v5394
        %v5418 = vsel %vm5403, %v5396, %v5398
        %v5419 = vsel %vm5403, %v5400, %v5402
        %v5468 = vsel %vm5403, %v5342, %v5340
        %v5469 = vsel %vm5403, %v5346, %v5344
        %v5470 = vsel %vm5403, %v5350, %v5348
        %v5471 = vsel %vm5403, %v5354, %v5352
        %v5472 = vsel %vm5403, %v5358, %v5356
        %v5473 = vsel %vm5403, %v5362, %v5360
        %v5474 = vsel %vm5403, %v5366, %v5364
        %v5475 = vsel %vm5403, %v5370, %v5368
        %v5476 = vsel %vm5403, %v5374, %v5372
        %v5477 = vsel %vm5403, %v5378, %v5376
        %v5478 = vsel %vm5403, %v5382, %v5380
        %v5479 = vsel %vm5403, %v5386, %v5384
        %v5480 = vsel %vm5403, %v5390, %v5388
        %v5481 = vsel %vm5403, %v5394, %v5392
        %v5482 = vsel %vm5403, %v5398, %v5396
        %v5483 = vsel %vm5403, %v5402, %v5400
        %v5484 = vmul.f32 %v5404, %v4301
        %v5485 = vmul.f32 %v5468, %v4302
        %v5486 = vmul.f32 %v5405, %v4301
        %v5487 = vmul.f32 %v5469, %v4302
        %v5488 = vmul.f32 %v5406, %v4301
        %v5489 = vmul.f32 %v5470, %v4302
        %v5490 = vmul.f32 %v5407, %v4301
        %v5491 = vmul.f32 %v5471, %v4302
        %v5492 = vmul.f32 %v5408, %v4301
        %v5493 = vmul.f32 %v5472, %v4302
        %v5494 = vmul.f32 %v5409, %v4301
        %v5495 = vmul.f32 %v5473, %v4302
        %v5496 = vmul.f32 %v5410, %v4301
        %v5497 = vmul.f32 %v5474, %v4302
        %v5498 = vmul.f32 %v5411, %v4301
        %v5499 = vmul.f32 %v5475, %v4302
        %v5500 = vmul.f32 %v5412, %v4301
        %v5501 = vmul.f32 %v5476, %v4302
        %v5502 = vmul.f32 %v5413, %v4301
        %v5503 = vmul.f32 %v5477, %v4302
        %v5504 = vmul.f32 %v5414, %v4301
        %v5505 = vmul.f32 %v5478, %v4302
        %v5506 = vmul.f32 %v5415, %v4301
        %v5507 = vmul.f32 %v5479, %v4302
        %v5508 = vmul.f32 %v5416, %v4301
        %v5509 = vmul.f32 %v5480, %v4302
        %v5510 = vmul.f32 %v5417, %v4301
        %v5511 = vmul.f32 %v5481, %v4302
        %v5512 = vmul.f32 %v5418, %v4301
        %v5513 = vmul.f32 %v5482, %v4302
        %v5514 = vmul.f32 %v5419, %v4301
        %v5515 = vmul.f32 %v5483, %v4302
        %s5516 = scalar_lea.vmem %s11, 40
        %v5517 = vld [vmem:[%s5516] sm:$0xff]
        %5518 = vmatpush.msra.mxu0 %v5514
        %5519 = vmatpush.msra.mxu0 %v5512
        %5520 = vmatpush.msra.mxu0 %v5510
        %5521 = vmatpush.msra.mxu0 %v5508
        %5522 = vmatpush.msra.mxu0 %v5506
        %5523 = vmatpush.msra.mxu0 %v5504
        %5524 = vmatpush.msra.mxu0 %v5502
        %5525 = vmatpush.msra.mxu0 %v5500
        %5526 = vmatpush.msra.mxu0 %v5498
        %5527 = vmatpush.msra.mxu0 %v5496
        %5528 = vmatpush.msra.mxu0 %v5494
        %5529 = vmatpush.msra.mxu0 %v5492
        %5530 = vmatpush.msra.mxu0 %v5490
        %5531 = vmatpush.msra.mxu0 %v5488
        %5532 = vmatpush.msra.mxu0 %v5486
        %5533 = vmatpush.msra.mxu0 %v5484
        %5534 = vmatmul.f32.gmra.mxu0 %v5517
        %v5535 = vpop.f32.mrf.mxu0
        %v5536 = vadd.f32 0.0, %v5535
        %5537 = vdwg.mxu0
        %5538 = vmatpush.msra.mxu0 %v5515
        %5539 = vmatpush.msra.mxu0 %v5513
        %5540 = vmatpush.msra.mxu0 %v5511
        %5541 = vmatpush.msra.mxu0 %v5509
        %5542 = vmatpush.msra.mxu0 %v5507
        %5543 = vmatpush.msra.mxu0 %v5505
        %5544 = vmatpush.msra.mxu0 %v5503
        %5545 = vmatpush.msra.mxu0 %v5501
        %5546 = vmatpush.msra.mxu0 %v5499
        %5547 = vmatpush.msra.mxu0 %v5497
        %5548 = vmatpush.msra.mxu0 %v5495
        %5549 = vmatpush.msra.mxu0 %v5493
        %5550 = vmatpush.msra.mxu0 %v5491
        %5551 = vmatpush.msra.mxu0 %v5489
        %5552 = vmatpush.msra.mxu0 %v5487
        %5553 = vmatpush.msra.mxu0 %v5485
        %5554 = vmatmul.f32.gmra.mxu0 %v5517
        %v5555 = vpop.f32.mrf.mxu0
        %v5556 = vadd.f32 0.0, %v5555
        %5557 = vdwg.mxu0
        %v5558 = vadd.f32 %v5337, %v5536
        %v5559 = vadd.f32 %v5338, %v5556
        %5560 = vrot.lane.b32.xlu0 %v4244, 113
        %v5561 = vpop.permute.xlu0 %5560
        %5562 = vrot.lane.b32.xlu0 %v4276, 113
        %v5563 = vpop.permute.xlu0 %5562
        %5564 = vrot.lane.b32.xlu0 %v4245, 113
        %v5565 = vpop.permute.xlu0 %5564
        %5566 = vrot.lane.b32.xlu0 %v4277, 113
        %v5567 = vpop.permute.xlu0 %5566
        %5568 = vrot.lane.b32.xlu0 %v4246, 113
        %v5569 = vpop.permute.xlu0 %5568
        %5570 = vrot.lane.b32.xlu0 %v4278, 113
        %v5571 = vpop.permute.xlu0 %5570
        %5572 = vrot.lane.b32.xlu0 %v4247, 113
        %v5573 = vpop.permute.xlu0 %5572
        %5574 = vrot.lane.b32.xlu0 %v4279, 113
        %v5575 = vpop.permute.xlu0 %5574
        %5576 = vrot.lane.b32.xlu0 %v4248, 113
        %v5577 = vpop.permute.xlu0 %5576
        %5578 = vrot.lane.b32.xlu0 %v4280, 113
        %v5579 = vpop.permute.xlu0 %5578
        %5580 = vrot.lane.b32.xlu0 %v4249, 113
        %v5581 = vpop.permute.xlu0 %5580
        %5582 = vrot.lane.b32.xlu0 %v4281, 113
        %v5583 = vpop.permute.xlu0 %5582
        %5584 = vrot.lane.b32.xlu0 %v4250, 113
        %v5585 = vpop.permute.xlu0 %5584
        %5586 = vrot.lane.b32.xlu0 %v4282, 113
        %v5587 = vpop.permute.xlu0 %5586
        %5588 = vrot.lane.b32.xlu0 %v4251, 113
        %v5589 = vpop.permute.xlu0 %5588
        %5590 = vrot.lane.b32.xlu0 %v4283, 113
        %v5591 = vpop.permute.xlu0 %5590
        %5592 = vrot.lane.b32.xlu0 %v4252, 113
        %v5593 = vpop.permute.xlu0 %5592
        %5594 = vrot.lane.b32.xlu0 %v4284, 113
        %v5595 = vpop.permute.xlu0 %5594
        %5596 = vrot.lane.b32.xlu0 %v4253, 113
        %v5597 = vpop.permute.xlu0 %5596
        %5598 = vrot.lane.b32.xlu0 %v4285, 113
        %v5599 = vpop.permute.xlu0 %5598
        %5600 = vrot.lane.b32.xlu0 %v4254, 113
        %v5601 = vpop.permute.xlu0 %5600
        %5602 = vrot.lane.b32.xlu0 %v4286, 113
        %v5603 = vpop.permute.xlu0 %5602
        %5604 = vrot.lane.b32.xlu0 %v4255, 113
        %v5605 = vpop.permute.xlu0 %5604
        %5606 = vrot.lane.b32.xlu0 %v4287, 113
        %v5607 = vpop.permute.xlu0 %5606
        %5608 = vrot.lane.b32.xlu0 %v4256, 113
        %v5609 = vpop.permute.xlu0 %5608
        %5610 = vrot.lane.b32.xlu0 %v4288, 113
        %v5611 = vpop.permute.xlu0 %5610
        %5612 = vrot.lane.b32.xlu0 %v4257, 113
        %v5613 = vpop.permute.xlu0 %5612
        %5614 = vrot.lane.b32.xlu0 %v4289, 113
        %v5615 = vpop.permute.xlu0 %5614
        %5616 = vrot.lane.b32.xlu0 %v4258, 113
        %v5617 = vpop.permute.xlu0 %5616
        %5618 = vrot.lane.b32.xlu0 %v4290, 113
        %v5619 = vpop.permute.xlu0 %5618
        %5620 = vrot.lane.b32.xlu0 %v4259, 113
        %v5621 = vpop.permute.xlu0 %5620
        %5622 = vrot.lane.b32.xlu0 %v4291, 113
        %v5623 = vpop.permute.xlu0 %5622
        %vm5624 = vcmask 924672
        %v5625 = vsel %vm5624, %v5561, %v5563
        %v5626 = vsel %vm5624, %v5565, %v5567
        %v5627 = vsel %vm5624, %v5569, %v5571
        %v5628 = vsel %vm5624, %v5573, %v5575
        %v5629 = vsel %vm5624, %v5577, %v5579
        %v5630 = vsel %vm5624, %v5581, %v5583
        %v5631 = vsel %vm5624, %v5585, %v5587
        %v5632 = vsel %vm5624, %v5589, %v5591
        %v5633 = vsel %vm5624, %v5593, %v5595
        %v5634 = vsel %vm5624, %v5597, %v5599
        %v5635 = vsel %vm5624, %v5601, %v5603
        %v5636 = vsel %vm5624, %v5605, %v5607
        %v5637 = vsel %vm5624, %v5609, %v5611
        %v5638 = vsel %vm5624, %v5613, %v5615
        %v5639 = vsel %vm5624, %v5617, %v5619
        %v5640 = vsel %vm5624, %v5621, %v5623
        %v5689 = vsel %vm5624, %v5563, %v5561
        %v5690 = vsel %vm5624, %v5567, %v5565
        %v5691 = vsel %vm5624, %v5571, %v5569
        %v5692 = vsel %vm5624, %v5575, %v5573
        %v5693 = vsel %vm5624, %v5579, %v5577
        %v5694 = vsel %vm5624, %v5583, %v5581
        %v5695 = vsel %vm5624, %v5587, %v5585
        %v5696 = vsel %vm5624, %v5591, %v5589
        %v5697 = vsel %vm5624, %v5595, %v5593
        %v5698 = vsel %vm5624, %v5599, %v5597
        %v5699 = vsel %vm5624, %v5603, %v5601
        %v5700 = vsel %vm5624, %v5607, %v5605
        %v5701 = vsel %vm5624, %v5611, %v5609
        %v5702 = vsel %vm5624, %v5615, %v5613
        %v5703 = vsel %vm5624, %v5619, %v5617
        %v5704 = vsel %vm5624, %v5623, %v5621
        %v5705 = vmul.f32 %v5625, %v4307
        %v5706 = vmul.f32 %v5689, %v4308
        %v5707 = vmul.f32 %v5626, %v4307
        %v5708 = vmul.f32 %v5690, %v4308
        %v5709 = vmul.f32 %v5627, %v4307
        %v5710 = vmul.f32 %v5691, %v4308
        %v5711 = vmul.f32 %v5628, %v4307
        %v5712 = vmul.f32 %v5692, %v4308
        %v5713 = vmul.f32 %v5629, %v4307
        %v5714 = vmul.f32 %v5693, %v4308
        %v5715 = vmul.f32 %v5630, %v4307
        %v5716 = vmul.f32 %v5694, %v4308
        %v5717 = vmul.f32 %v5631, %v4307
        %v5718 = vmul.f32 %v5695, %v4308
        %v5719 = vmul.f32 %v5632, %v4307
        %v5720 = vmul.f32 %v5696, %v4308
        %v5721 = vmul.f32 %v5633, %v4307
        %v5722 = vmul.f32 %v5697, %v4308
        %v5723 = vmul.f32 %v5634, %v4307
        %v5724 = vmul.f32 %v5698, %v4308
        %v5725 = vmul.f32 %v5635, %v4307
        %v5726 = vmul.f32 %v5699, %v4308
        %v5727 = vmul.f32 %v5636, %v4307
        %v5728 = vmul.f32 %v5700, %v4308
        %v5729 = vmul.f32 %v5637, %v4307
        %v5730 = vmul.f32 %v5701, %v4308
        %v5731 = vmul.f32 %v5638, %v4307
        %v5732 = vmul.f32 %v5702, %v4308
        %v5733 = vmul.f32 %v5639, %v4307
        %v5734 = vmul.f32 %v5703, %v4308
        %v5735 = vmul.f32 %v5640, %v4307
        %v5736 = vmul.f32 %v5704, %v4308
        %v5737 = vmul.f32 %v5705, %v4313
        %v5738 = vmul.f32 %v5706, %v4314
        %v5739 = vmul.f32 %v5707, %v4313
        %v5740 = vmul.f32 %v5708, %v4314
        %v5741 = vmul.f32 %v5709, %v4313
        %v5742 = vmul.f32 %v5710, %v4314
        %v5743 = vmul.f32 %v5711, %v4313
        %v5744 = vmul.f32 %v5712, %v4314
        %v5745 = vmul.f32 %v5713, %v4313
        %v5746 = vmul.f32 %v5714, %v4314
        %v5747 = vmul.f32 %v5715, %v4313
        %v5748 = vmul.f32 %v5716, %v4314
        %v5749 = vmul.f32 %v5717, %v4313
        %v5750 = vmul.f32 %v5718, %v4314
        %v5751 = vmul.f32 %v5719, %v4313
        %v5752 = vmul.f32 %v5720, %v4314
        %v5753 = vmul.f32 %v5721, %v4313
        %v5754 = vmul.f32 %v5722, %v4314
        %v5755 = vmul.f32 %v5723, %v4313
        %v5756 = vmul.f32 %v5724, %v4314
        %v5757 = vmul.f32 %v5725, %v4313
        %v5758 = vmul.f32 %v5726, %v4314
        %v5759 = vmul.f32 %v5727, %v4313
        %v5760 = vmul.f32 %v5728, %v4314
        %v5761 = vmul.f32 %v5729, %v4313
        %v5762 = vmul.f32 %v5730, %v4314
        %v5763 = vmul.f32 %v5731, %v4313
        %v5764 = vmul.f32 %v5732, %v4314
        %v5765 = vmul.f32 %v5733, %v4313
        %v5766 = vmul.f32 %v5734, %v4314
        %v5767 = vmul.f32 %v5735, %v4313
        %v5768 = vmul.f32 %v5736, %v4314
        %s5769 = scalar_lea.vmem %s11, 48
        %v5770 = vld [vmem:[%s5769] sm:$0xff]
        %5771 = vmatpush.msra.mxu0 %v5767
        %5772 = vmatpush.msra.mxu0 %v5765
        %5773 = vmatpush.msra.mxu0 %v5763
        %5774 = vmatpush.msra.mxu0 %v5761
        %5775 = vmatpush.msra.mxu0 %v5759
        %5776 = vmatpush.msra.mxu0 %v5757
        %5777 = vmatpush.msra.mxu0 %v5755
        %5778 = vmatpush.msra.mxu0 %v5753
        %5779 = vmatpush.msra.mxu0 %v5751
        %5780 = vmatpush.msra.mxu0 %v5749
        %5781 = vmatpush.msra.mxu0 %v5747
        %5782 = vmatpush.msra.mxu0 %v5745
        %5783 = vmatpush.msra.mxu0 %v5743
        %5784 = vmatpush.msra.mxu0 %v5741
        %5785 = vmatpush.msra.mxu0 %v5739
        %5786 = vmatpush.msra.mxu0 %v5737
        %5787 = vmatmul.f32.gmra.mxu0 %v5770
        %v5788 = vpop.f32.mrf.mxu0
        %v5789 = vadd.f32 0.0, %v5788
        %5790 = vdwg.mxu0
        %5791 = vmatpush.msra.mxu0 %v5768
        %5792 = vmatpush.msra.mxu0 %v5766
        %5793 = vmatpush.msra.mxu0 %v5764
        %5794 = vmatpush.msra.mxu0 %v5762
        %5795 = vmatpush.msra.mxu0 %v5760
        %5796 = vmatpush.msra.mxu0 %v5758
        %5797 = vmatpush.msra.mxu0 %v5756
        %5798 = vmatpush.msra.mxu0 %v5754
        %5799 = vmatpush.msra.mxu0 %v5752
        %5800 = vmatpush.msra.mxu0 %v5750
        %5801 = vmatpush.msra.mxu0 %v5748
        %5802 = vmatpush.msra.mxu0 %v5746
        %5803 = vmatpush.msra.mxu0 %v5744
        %5804 = vmatpush.msra.mxu0 %v5742
        %5805 = vmatpush.msra.mxu0 %v5740
        %5806 = vmatpush.msra.mxu0 %v5738
        %5807 = vmatmul.f32.gmra.mxu0 %v5770
        %v5808 = vpop.f32.mrf.mxu0
        %v5809 = vadd.f32 0.0, %v5808
        %5810 = vdwg.mxu0
        %v5811 = vadd.f32 %v5558, %v5789
        %v5812 = vadd.f32 %v5559, %v5809
        %5813 = vrot.lane.b32.xlu0 %v4244, 112
        %v5814 = vpop.permute.xlu0 %5813
        %5815 = vrot.lane.b32.xlu0 %v4276, 112
        %v5816 = vpop.permute.xlu0 %5815
        %5817 = vrot.lane.b32.xlu0 %v4245, 112
        %v5818 = vpop.permute.xlu0 %5817
        %5819 = vrot.lane.b32.xlu0 %v4277, 112
        %v5820 = vpop.permute.xlu0 %5819
        %5821 = vrot.lane.b32.xlu0 %v4246, 112
        %v5822 = vpop.permute.xlu0 %5821
        %5823 = vrot.lane.b32.xlu0 %v4278, 112
        %v5824 = vpop.permute.xlu0 %5823
        %5825 = vrot.lane.b32.xlu0 %v4247, 112
        %v5826 = vpop.permute.xlu0 %5825
        %5827 = vrot.lane.b32.xlu0 %v4279, 112
        %v5828 = vpop.permute.xlu0 %5827
        %5829 = vrot.lane.b32.xlu0 %v4248, 112
        %v5830 = vpop.permute.xlu0 %5829
        %5831 = vrot.lane.b32.xlu0 %v4280, 112
        %v5832 = vpop.permute.xlu0 %5831
        %5833 = vrot.lane.b32.xlu0 %v4249, 112
        %v5834 = vpop.permute.xlu0 %5833
        %5835 = vrot.lane.b32.xlu0 %v4281, 112
        %v5836 = vpop.permute.xlu0 %5835
        %5837 = vrot.lane.b32.xlu0 %v4250, 112
        %v5838 = vpop.permute.xlu0 %5837
        %5839 = vrot.lane.b32.xlu0 %v4282, 112
        %v5840 = vpop.permute.xlu0 %5839
        %5841 = vrot.lane.b32.xlu0 %v4251, 112
        %v5842 = vpop.permute.xlu0 %5841
        %5843 = vrot.lane.b32.xlu0 %v4283, 112
        %v5844 = vpop.permute.xlu0 %5843
        %5845 = vrot.lane.b32.xlu0 %v4252, 112
        %v5846 = vpop.permute.xlu0 %5845
        %5847 = vrot.lane.b32.xlu0 %v4284, 112
        %v5848 = vpop.permute.xlu0 %5847
        %5849 = vrot.lane.b32.xlu0 %v4253, 112
        %v5850 = vpop.permute.xlu0 %5849
        %5851 = vrot.lane.b32.xlu0 %v4285, 112
        %v5852 = vpop.permute.xlu0 %5851
        %5853 = vrot.lane.b32.xlu0 %v4254, 112
        %v5854 = vpop.permute.xlu0 %5853
        %5855 = vrot.lane.b32.xlu0 %v4286, 112
        %v5856 = vpop.permute.xlu0 %5855
        %5857 = vrot.lane.b32.xlu0 %v4255, 112
        %v5858 = vpop.permute.xlu0 %5857
        %5859 = vrot.lane.b32.xlu0 %v4287, 112
        %v5860 = vpop.permute.xlu0 %5859
        %5861 = vrot.lane.b32.xlu0 %v4256, 112
        %v5862 = vpop.permute.xlu0 %5861
        %5863 = vrot.lane.b32.xlu0 %v4288, 112
        %v5864 = vpop.permute.xlu0 %5863
        %5865 = vrot.lane.b32.xlu0 %v4257, 112
        %v5866 = vpop.permute.xlu0 %5865
        %5867 = vrot.lane.b32.xlu0 %v4289, 112
        %v5868 = vpop.permute.xlu0 %5867
        %5869 = vrot.lane.b32.xlu0 %v4258, 112
        %v5870 = vpop.permute.xlu0 %5869
        %5871 = vrot.lane.b32.xlu0 %v4290, 112
        %v5872 = vpop.permute.xlu0 %5871
        %5873 = vrot.lane.b32.xlu0 %v4259, 112
        %v5874 = vpop.permute.xlu0 %5873
        %5875 = vrot.lane.b32.xlu0 %v4291, 112
        %v5876 = vpop.permute.xlu0 %5875
        %vm5877 = vcmask 916480
        %v5878 = vsel %vm5877, %v5814, %v5816
        %v5879 = vsel %vm5877, %v5818, %v5820
        %v5880 = vsel %vm5877, %v5822, %v5824
        %v5881 = vsel %vm5877, %v5826, %v5828
        %v5882 = vsel %vm5877, %v5830, %v5832
        %v5883 = vsel %vm5877, %v5834, %v5836
        %v5884 = vsel %vm5877, %v5838, %v5840
        %v5885 = vsel %vm5877, %v5842, %v5844
        %v5886 = vsel %vm5877, %v5846, %v5848
        %v5887 = vsel %vm5877, %v5850, %v5852
        %v5888 = vsel %vm5877, %v5854, %v5856
        %v5889 = vsel %vm5877, %v5858, %v5860
        %v5890 = vsel %vm5877, %v5862, %v5864
        %v5891 = vsel %vm5877, %v5866, %v5868
        %v5892 = vsel %vm5877, %v5870, %v5872
        %v5893 = vsel %vm5877, %v5874, %v5876
        %v5942 = vsel %vm5877, %v5816, %v5814
        %v5943 = vsel %vm5877, %v5820, %v5818
        %v5944 = vsel %vm5877, %v5824, %v5822
        %v5945 = vsel %vm5877, %v5828, %v5826
        %v5946 = vsel %vm5877, %v5832, %v5830
        %v5947 = vsel %vm5877, %v5836, %v5834
        %v5948 = vsel %vm5877, %v5840, %v5838
        %v5949 = vsel %vm5877, %v5844, %v5842
        %v5950 = vsel %vm5877, %v5848, %v5846
        %v5951 = vsel %vm5877, %v5852, %v5850
        %v5952 = vsel %vm5877, %v5856, %v5854
        %v5953 = vsel %vm5877, %v5860, %v5858
        %v5954 = vsel %vm5877, %v5864, %v5862
        %v5955 = vsel %vm5877, %v5868, %v5866
        %v5956 = vsel %vm5877, %v5872, %v5870
        %v5957 = vsel %vm5877, %v5876, %v5874
        %v5958 = vmul.f32 %v5878, %v4313
        %v5959 = vmul.f32 %v5942, %v4314
        %v5960 = vmul.f32 %v5879, %v4313
        %v5961 = vmul.f32 %v5943, %v4314
        %v5962 = vmul.f32 %v5880, %v4313
        %v5963 = vmul.f32 %v5944, %v4314
        %v5964 = vmul.f32 %v5881, %v4313
        %v5965 = vmul.f32 %v5945, %v4314
        %v5966 = vmul.f32 %v5882, %v4313
        %v5967 = vmul.f32 %v5946, %v4314
        %v5968 = vmul.f32 %v5883, %v4313
        %v5969 = vmul.f32 %v5947, %v4314
        %v5970 = vmul.f32 %v5884, %v4313
        %v5971 = vmul.f32 %v5948, %v4314
        %v5972 = vmul.f32 %v5885, %v4313
        %v5973 = vmul.f32 %v5949, %v4314
        %v5974 = vmul.f32 %v5886, %v4313
        %v5975 = vmul.f32 %v5950, %v4314
        %v5976 = vmul.f32 %v5887, %v4313
        %v5977 = vmul.f32 %v5951, %v4314
        %v5978 = vmul.f32 %v5888, %v4313
        %v5979 = vmul.f32 %v5952, %v4314
        %v5980 = vmul.f32 %v5889, %v4313
        %v5981 = vmul.f32 %v5953, %v4314
        %v5982 = vmul.f32 %v5890, %v4313
        %v5983 = vmul.f32 %v5954, %v4314
        %v5984 = vmul.f32 %v5891, %v4313
        %v5985 = vmul.f32 %v5955, %v4314
        %v5986 = vmul.f32 %v5892, %v4313
        %v5987 = vmul.f32 %v5956, %v4314
        %v5988 = vmul.f32 %v5893, %v4313
        %v5989 = vmul.f32 %v5957, %v4314
        %s5990 = scalar_lea.vmem %s11, 56
        %v5991 = vld [vmem:[%s5990] sm:$0xff]
        %5992 = vmatpush.msra.mxu0 %v5988
        %5993 = vmatpush.msra.mxu0 %v5986
        %5994 = vmatpush.msra.mxu0 %v5984
        %5995 = vmatpush.msra.mxu0 %v5982
        %5996 = vmatpush.msra.mxu0 %v5980
        %5997 = vmatpush.msra.mxu0 %v5978
        %5998 = vmatpush.msra.mxu0 %v5976
        %5999 = vmatpush.msra.mxu0 %v5974
        %6000 = vmatpush.msra.mxu0 %v5972
        %6001 = vmatpush.msra.mxu0 %v5970
        %6002 = vmatpush.msra.mxu0 %v5968
        %6003 = vmatpush.msra.mxu0 %v5966
        %6004 = vmatpush.msra.mxu0 %v5964
        %6005 = vmatpush.msra.mxu0 %v5962
        %6006 = vmatpush.msra.mxu0 %v5960
        %6007 = vmatpush.msra.mxu0 %v5958
        %6008 = vmatmul.f32.gmra.mxu0 %v5991
        %v6009 = vpop.f32.mrf.mxu0
        %v6010 = vadd.f32 0.0, %v6009
        %6011 = vdwg.mxu0
        %6012 = vmatpush.msra.mxu0 %v5989
        %6013 = vmatpush.msra.mxu0 %v5987
        %6014 = vmatpush.msra.mxu0 %v5985
        %6015 = vmatpush.msra.mxu0 %v5983
        %6016 = vmatpush.msra.mxu0 %v5981
        %6017 = vmatpush.msra.mxu0 %v5979
        %6018 = vmatpush.msra.mxu0 %v5977
        %6019 = vmatpush.msra.mxu0 %v5975
        %6020 = vmatpush.msra.mxu0 %v5973
        %6021 = vmatpush.msra.mxu0 %v5971
        %6022 = vmatpush.msra.mxu0 %v5969
        %6023 = vmatpush.msra.mxu0 %v5967
        %6024 = vmatpush.msra.mxu0 %v5965
        %6025 = vmatpush.msra.mxu0 %v5963
        %6026 = vmatpush.msra.mxu0 %v5961
        %6027 = vmatpush.msra.mxu0 %v5959
        %6028 = vmatmul.f32.gmra.mxu0 %v5991
        %v6029 = vpop.f32.mrf.mxu0
        %v6030 = vadd.f32 0.0, %v6029
        %6031 = vdwg.mxu0
        %v6032 = vadd.f32 %v5811, %v6010
        %v6033 = vadd.f32 %v5812, %v6030
        %6034 = vrot.lane.b32.xlu0 %v4244, 111
        %v6035 = vpop.permute.xlu0 %6034
        %6036 = vrot.lane.b32.xlu0 %v4276, 111
        %v6037 = vpop.permute.xlu0 %6036
        %6038 = vrot.lane.b32.xlu0 %v4245, 111
        %v6039 = vpop.permute.xlu0 %6038
        %6040 = vrot.lane.b32.xlu0 %v4277, 111
        %v6041 = vpop.permute.xlu0 %6040
        %6042 = vrot.lane.b32.xlu0 %v4246, 111
        %v6043 = vpop.permute.xlu0 %6042
        %6044 = vrot.lane.b32.xlu0 %v4278, 111
        %v6045 = vpop.permute.xlu0 %6044
        %6046 = vrot.lane.b32.xlu0 %v4247, 111
        %v6047 = vpop.permute.xlu0 %6046
        %6048 = vrot.lane.b32.xlu0 %v4279, 111
        %v6049 = vpop.permute.xlu0 %6048
        %6050 = vrot.lane.b32.xlu0 %v4248, 111
        %v6051 = vpop.permute.xlu0 %6050
        %6052 = vrot.lane.b32.xlu0 %v4280, 111
        %v6053 = vpop.permute.xlu0 %6052
        %6054 = vrot.lane.b32.xlu0 %v4249, 111
        %v6055 = vpop.permute.xlu0 %6054
        %6056 = vrot.lane.b32.xlu0 %v4281, 111
        %v6057 = vpop.permute.xlu0 %6056
        %6058 = vrot.lane.b32.xlu0 %v4250, 111
        %v6059 = vpop.permute.xlu0 %6058
        %6060 = vrot.lane.b32.xlu0 %v4282, 111
        %v6061 = vpop.permute.xlu0 %6060
        %6062 = vrot.lane.b32.xlu0 %v4251, 111
        %v6063 = vpop.permute.xlu0 %6062
        %6064 = vrot.lane.b32.xlu0 %v4283, 111
        %v6065 = vpop.permute.xlu0 %6064
        %6066 = vrot.lane.b32.xlu0 %v4252, 111
        %v6067 = vpop.permute.xlu0 %6066
        %6068 = vrot.lane.b32.xlu0 %v4284, 111
        %v6069 = vpop.permute.xlu0 %6068
        %6070 = vrot.lane.b32.xlu0 %v4253, 111
        %v6071 = vpop.permute.xlu0 %6070
        %6072 = vrot.lane.b32.xlu0 %v4285, 111
        %v6073 = vpop.permute.xlu0 %6072
        %6074 = vrot.lane.b32.xlu0 %v4254, 111
        %v6075 = vpop.permute.xlu0 %6074
        %6076 = vrot.lane.b32.xlu0 %v4286, 111
        %v6077 = vpop.permute.xlu0 %6076
        %6078 = vrot.lane.b32.xlu0 %v4255, 111
        %v6079 = vpop.permute.xlu0 %6078
        %6080 = vrot.lane.b32.xlu0 %v4287, 111
        %v6081 = vpop.permute.xlu0 %6080
        %6082 = vrot.lane.b32.xlu0 %v4256, 111
        %v6083 = vpop.permute.xlu0 %6082
        %6084 = vrot.lane.b32.xlu0 %v4288, 111
        %v6085 = vpop.permute.xlu0 %6084
        %6086 = vrot.lane.b32.xlu0 %v4257, 111
        %v6087 = vpop.permute.xlu0 %6086
        %6088 = vrot.lane.b32.xlu0 %v4289, 111
        %v6089 = vpop.permute.xlu0 %6088
        %6090 = vrot.lane.b32.xlu0 %v4258, 111
        %v6091 = vpop.permute.xlu0 %6090
        %6092 = vrot.lane.b32.xlu0 %v4290, 111
        %v6093 = vpop.permute.xlu0 %6092
        %6094 = vrot.lane.b32.xlu0 %v4259, 111
        %v6095 = vpop.permute.xlu0 %6094
        %6096 = vrot.lane.b32.xlu0 %v4291, 111
        %v6097 = vpop.permute.xlu0 %6096
        %vm6098 = vcmask 908288
        %v6099 = vsel %vm6098, %v6035, %v6037
        %v6100 = vsel %vm6098, %v6039, %v6041
        %v6101 = vsel %vm6098, %v6043, %v6045
        %v6102 = vsel %vm6098, %v6047, %v6049
        %v6103 = vsel %vm6098, %v6051, %v6053
        %v6104 = vsel %vm6098, %v6055, %v6057
        %v6105 = vsel %vm6098, %v6059, %v6061
        %v6106 = vsel %vm6098, %v6063, %v6065
        %v6107 = vsel %vm6098, %v6067, %v6069
        %v6108 = vsel %vm6098, %v6071, %v6073
        %v6109 = vsel %vm6098, %v6075, %v6077
        %v6110 = vsel %vm6098, %v6079, %v6081
        %v6111 = vsel %vm6098, %v6083, %v6085
        %v6112 = vsel %vm6098, %v6087, %v6089
        %v6113 = vsel %vm6098, %v6091, %v6093
        %v6114 = vsel %vm6098, %v6095, %v6097
        %v6163 = vsel %vm6098, %v6037, %v6035
        %v6164 = vsel %vm6098, %v6041, %v6039
        %v6165 = vsel %vm6098, %v6045, %v6043
        %v6166 = vsel %vm6098, %v6049, %v6047
        %v6167 = vsel %vm6098, %v6053, %v6051
        %v6168 = vsel %vm6098, %v6057, %v6055
        %v6169 = vsel %vm6098, %v6061, %v6059
        %v6170 = vsel %vm6098, %v6065, %v6063
        %v6171 = vsel %vm6098, %v6069, %v6067
        %v6172 = vsel %vm6098, %v6073, %v6071
        %v6173 = vsel %vm6098, %v6077, %v6075
        %v6174 = vsel %vm6098, %v6081, %v6079
        %v6175 = vsel %vm6098, %v6085, %v6083
        %v6176 = vsel %vm6098, %v6089, %v6087
        %v6177 = vsel %vm6098, %v6093, %v6091
        %v6178 = vsel %vm6098, %v6097, %v6095
        %v6179 = vmul.f32 %v6099, %v4301
        %v6180 = vmul.f32 %v6163, %v4302
        %v6181 = vmul.f32 %v6100, %v4301
        %v6182 = vmul.f32 %v6164, %v4302
        %v6183 = vmul.f32 %v6101, %v4301
        %v6184 = vmul.f32 %v6165, %v4302
        %v6185 = vmul.f32 %v6102, %v4301
        %v6186 = vmul.f32 %v6166, %v4302
        %v6187 = vmul.f32 %v6103, %v4301
        %v6188 = vmul.f32 %v6167, %v4302
        %v6189 = vmul.f32 %v6104, %v4301
        %v6190 = vmul.f32 %v6168, %v4302
        %v6191 = vmul.f32 %v6105, %v4301
        %v6192 = vmul.f32 %v6169, %v4302
        %v6193 = vmul.f32 %v6106, %v4301
        %v6194 = vmul.f32 %v6170, %v4302
        %v6195 = vmul.f32 %v6107, %v4301
        %v6196 = vmul.f32 %v6171, %v4302
        %v6197 = vmul.f32 %v6108, %v4301
        %v6198 = vmul.f32 %v6172, %v4302
        %v6199 = vmul.f32 %v6109, %v4301
        %v6200 = vmul.f32 %v6173, %v4302
        %v6201 = vmul.f32 %v6110, %v4301
        %v6202 = vmul.f32 %v6174, %v4302
        %v6203 = vmul.f32 %v6111, %v4301
        %v6204 = vmul.f32 %v6175, %v4302
        %v6205 = vmul.f32 %v6112, %v4301
        %v6206 = vmul.f32 %v6176, %v4302
        %v6207 = vmul.f32 %v6113, %v4301
        %v6208 = vmul.f32 %v6177, %v4302
        %v6209 = vmul.f32 %v6114, %v4301
        %v6210 = vmul.f32 %v6178, %v4302
        %v6211 = vmul.f32 %v6179, %v4313
        %v6212 = vmul.f32 %v6180, %v4314
        %v6213 = vmul.f32 %v6181, %v4313
        %v6214 = vmul.f32 %v6182, %v4314
        %v6215 = vmul.f32 %v6183, %v4313
        %v6216 = vmul.f32 %v6184, %v4314
        %v6217 = vmul.f32 %v6185, %v4313
        %v6218 = vmul.f32 %v6186, %v4314
        %v6219 = vmul.f32 %v6187, %v4313
        %v6220 = vmul.f32 %v6188, %v4314
        %v6221 = vmul.f32 %v6189, %v4313
        %v6222 = vmul.f32 %v6190, %v4314
        %v6223 = vmul.f32 %v6191, %v4313
        %v6224 = vmul.f32 %v6192, %v4314
        %v6225 = vmul.f32 %v6193, %v4313
        %v6226 = vmul.f32 %v6194, %v4314
        %v6227 = vmul.f32 %v6195, %v4313
        %v6228 = vmul.f32 %v6196, %v4314
        %v6229 = vmul.f32 %v6197, %v4313
        %v6230 = vmul.f32 %v6198, %v4314
        %v6231 = vmul.f32 %v6199, %v4313
        %v6232 = vmul.f32 %v6200, %v4314
        %v6233 = vmul.f32 %v6201, %v4313
        %v6234 = vmul.f32 %v6202, %v4314
        %v6235 = vmul.f32 %v6203, %v4313
        %v6236 = vmul.f32 %v6204, %v4314
        %v6237 = vmul.f32 %v6205, %v4313
        %v6238 = vmul.f32 %v6206, %v4314
        %v6239 = vmul.f32 %v6207, %v4313
        %v6240 = vmul.f32 %v6208, %v4314
        %v6241 = vmul.f32 %v6209, %v4313
        %v6242 = vmul.f32 %v6210, %v4314
        %s6243 = scalar_lea.vmem %s11, 64
        %v6244 = vld [vmem:[%s6243] sm:$0xff]
        %6245 = vmatpush.msra.mxu0 %v6241
        %6246 = vmatpush.msra.mxu0 %v6239
        %6247 = vmatpush.msra.mxu0 %v6237
        %6248 = vmatpush.msra.mxu0 %v6235
        %6249 = vmatpush.msra.mxu0 %v6233
        %6250 = vmatpush.msra.mxu0 %v6231
        %6251 = vmatpush.msra.mxu0 %v6229
        %6252 = vmatpush.msra.mxu0 %v6227
        %6253 = vmatpush.msra.mxu0 %v6225
        %6254 = vmatpush.msra.mxu0 %v6223
        %6255 = vmatpush.msra.mxu0 %v6221
        %6256 = vmatpush.msra.mxu0 %v6219
        %6257 = vmatpush.msra.mxu0 %v6217
        %6258 = vmatpush.msra.mxu0 %v6215
        %6259 = vmatpush.msra.mxu0 %v6213
        %6260 = vmatpush.msra.mxu0 %v6211
        %6261 = vmatmul.f32.gmra.mxu0 %v6244
        %v6262 = vpop.f32.mrf.mxu0
        %v6263 = vadd.f32 0.0, %v6262
        %6264 = vdwg.mxu0
        %6265 = vmatpush.msra.mxu0 %v6242
        %6266 = vmatpush.msra.mxu0 %v6240
        %6267 = vmatpush.msra.mxu0 %v6238
        %6268 = vmatpush.msra.mxu0 %v6236
        %6269 = vmatpush.msra.mxu0 %v6234
        %6270 = vmatpush.msra.mxu0 %v6232
        %6271 = vmatpush.msra.mxu0 %v6230
        %6272 = vmatpush.msra.mxu0 %v6228
        %6273 = vmatpush.msra.mxu0 %v6226
        %6274 = vmatpush.msra.mxu0 %v6224
        %6275 = vmatpush.msra.mxu0 %v6222
        %6276 = vmatpush.msra.mxu0 %v6220
        %6277 = vmatpush.msra.mxu0 %v6218
        %6278 = vmatpush.msra.mxu0 %v6216
        %6279 = vmatpush.msra.mxu0 %v6214
        %6280 = vmatpush.msra.mxu0 %v6212
        %6281 = vmatmul.f32.gmra.mxu0 %v6244
        %v6282 = vpop.f32.mrf.mxu0
        %v6283 = vadd.f32 0.0, %v6282
        %6284 = vdwg.mxu0
        %v6285 = vadd.f32 %v6032, %v6263
        %v6286 = vadd.f32 %v6033, %v6283
        %v6287 = vld [vmem:[#allocation5] sm:$0x1]
        %v6289 = vperm.slane %v6287, 0
        %6290 = vset.pattern.permute.xlu0 0
        %6291 = vperm.xlu0 %6290, %v6289
        %v6292 = vpop.permute.xlu0 %6291
        %v6294 = vadd.f32 %v6285, %v6292
        %v6295 = vadd.f32 %v6286, %v6292
        %v6296 = vxor.u32 %v6294, 2147483648
        %v6297 = vxor.u32 %v6295, 2147483648
        %v6298 = vmul.f32 %v6296, 1.442695
        %v6299 = vpow.pop %v6298
        %v6300 = vmul.f32 %v6297, 1.442695
        %v6301 = vpow.pop %v6300
        %v6302 = vadd.f32 %v6299, 1.0
        %v6303 = vadd.f32 %v6301, 1.0
        %v6304 = vrcp.pop %v6302
        %v6305 = vmul.f32 %v6302, %v6304
        %v6306 = vsub.f32 1.0, %v6305
        %v6307 = vmul.f32 %v6304, %v6306
        %v6308 = vadd.f32 %v6304, %v6307
        %vm6309 = vweird.f32 %v6302
        %vm6310 = vweird.f32 %v6304
        %vm6311 = vmor %vm6309, %vm6310
        %v6312 = vsel %vm6311, %v6304, %v6308
        %v6313 = vand.u32 2147483647, %v6302
        %vm6314 = vcmp.eq.f32.partialorder %v6313, 8.507059e+37
        %v6315 = vand.u32 %v6302, 2147483648
        %v6316 = vor.u32 1.1754944e-38, %v6315
        %v6317 = vsel %vm6314, %v6316, %v6312
        %v6318 = vmul.f32 1.0, %v6317
        %v6319 = vrcp.pop %v6303
        %v6320 = vmul.f32 %v6303, %v6319
        %v6321 = vsub.f32 1.0, %v6320
        %v6322 = vmul.f32 %v6319, %v6321
        %v6323 = vadd.f32 %v6319, %v6322
        %vm6324 = vweird.f32 %v6303
        %vm6325 = vweird.f32 %v6319
        %vm6326 = vmor %vm6324, %vm6325
        %v6327 = vsel %vm6326, %v6319, %v6323
        %v6328 = vand.u32 2147483647, %v6303
        %vm6329 = vcmp.eq.f32.partialorder %v6328, 8.507059e+37
        %v6330 = vand.u32 %v6303, 2147483648
        %v6331 = vor.u32 1.1754944e-38, %v6330
        %v6332 = vsel %vm6329, %v6331, %v6327
        %v6333 = vmul.f32 1.0, %v6332
        %v6336 = vrot.slane %v6333, 4
        %vm6337 = vcmask 1043456
        %v6338 = vsel %vm6337, %v6318, %v6336
        %6340 = vst [vmem:[%s453] sm:$0xff] %v6338
        %p6341 = scmp.lt.s32.totalorder %s28, 1
        %s6342 = scalar_select %p6341, %s28, 1
        %s6343 = smul.addr %s6342, 2
        %s6344 = smul.addr %s6343, 4
        %s6345 = scalar_lea.vmem %s13, %s6344
        // Predicated region
        $region81: #{decoder_forward.1} parent=71 // pred_check
          %p6346 = pneg %p319
        $region82: #{decoder_forward.1} parent=71 // pred_check_branch
          %6348 = sbr.rel (%p6346) target = $region84
        $region83: #{decoder_forward.1} parent=71 // pred_region
          _
        $region84: #{decoder_forward.1} parent=71 // pred_fallthru
          _
      $region72: #{decoder_forward.1} parent=5 // pred_fallthru
        _
      %p6349 = scmp.le.s32.totalorder 2, %s23
      // Predicated region
      $region85: #{decoder_forward.1} parent=5 // pred_check
        %p6350 = pneg %p6349
      $region86: #{decoder_forward.1} parent=5 // pred_check_branch
        %6352 = sbr.rel (%p6350) target = $region88
      $region87: #{decoder_forward.1} parent=5 // pred_region
        %s6353 = ssub.s32 %s23, 2
        // Predicated region
        $region89: #{decoder_forward.1} parent=87 // pred_check
          %p6354 = pneg %p325
        $region90: #{decoder_forward.1} parent=87 // pred_check_branch
          %6356 = sbr.rel (%p6354) target = $region92
        $region91: #{decoder_forward.1} parent=87 // pred_region
          %p6357 = scmp.lt.s32.totalorder %s29, 1
          %s6358 = scalar_select %p6357, %s29, 1
          %s6359 = smul.addr %s6358, 2
          %s6360 = smul.addr %s6359, 4
          %s6361 = scalar_lea.vmem %s13, %s6360
        $region92: #{decoder_forward.1} parent=87 // pred_fallthru
          _
      $region88: #{decoder_forward.1} parent=5 // pred_fallthru
        _
    $region6: #{decoder_forward.1} parent=1 // loop_footer
      %s27 = sadd.s32 1, %s23
    $region7: #{decoder_forward.1} parent=1 // loop_footer_branch
      %22 = sbr.rel target = $region3
    $region8: #{decoder_forward.1} parent=1 // loop_exit
      _
    %6362 = vsyncpa [#allocation7], 1
    %s6363 = scalar_lea.sflag [#allocation7], 1
    %6364 = vsyncpa %s6363, 1
    %6365 = vsyncpa [#allocation8], 1
    %s6366 = scalar_lea.sflag [#allocation8], 1
    %6367 = vsyncpa %s6366, 1

</llo_original>
